<compile_context>
chip_gen: v6e
topology: v6e:2x2x1
jax: 0.10.0
libtpu: 0.0.40
codegen_flags: <defaults>
</compile_context>

<pallas_src>
import jax
import jax.numpy as jnp
from jax.experimental import pallas as pl
from jax.experimental.pallas import tpu as pltpu

NEG_SLOPE = 0.2
K = 4          # conv kernel size
S = 2          # stride
LANE = 128     # TPU lane width


def _round_up(x, m):
    return ((x + m - 1) // m) * m


def _cdiv(a, b):
    return -(-a // b)


def _step_vmem_bytes(t, Wo, Wh, CinP, CoutP, out_isize, patch_isize):
    """Estimated VMEM per grid step (pipelined blocks double-buffered + scratch)."""
    in_blk = 4 * t * Wh * CinP * 2          # bf16 main phase-row block
    halo = 4 * Wh * CinP * 2                # bf16 halo phase row
    out_blk = t * Wo * CoutP * out_isize
    w_b = K * K * CinP * CoutP * 2          # bf16 weights
    b_b = CoutP * 4
    patch = 2 * t * Wo * K * CinP * patch_isize   # ping-pong im2col buffers (scratch)
    return 2 * (in_blk + halo + out_blk + w_b + b_b) + patch


def _choose_row_tile(Ho, Wo, Wh, CinP, CoutP, N, out_isize, patch_isize):
    """Pick TH (output rows per step): VMEM-aware, >=2 grid steps, 8-aligned out rows."""
    budget = 40 * 1024 * 1024                      # conservative: fits v7x 64 MiB VMEM
    cap = max(1, min(Ho, _cdiv(1024, Wo)))         # target matmul M = TH*Wo ~ 1024
    while cap > 1 and _step_vmem_bytes(cap, Wo, Wh, CinP, CoutP,
                                       out_isize, patch_isize) > budget:
        cap -= 1
    # keep at least 2 grid steps so both v7x TensorCores get work
    if N * _cdiv(Ho, cap) < 2 and cap > 1:
        cap = max(1, _cdiv(Ho, 2))
    # out-block second-minor dim (TH*Wo) must be a multiple of 8 (or equal the full dim)
    legal = [t for t in range(1, cap + 1) if (t * Wo) % 8 == 0]
    if not legal:
        return Ho                                  # single full-height tile (block == dim)
    divs = [t for t in legal if Ho % t == 0]
    if divs and max(divs) * 2 >= max(legal):
        return max(divs)                           # prefer exact tiling (no padded tail)
    return max(legal)


def down_pallas(x_nchw, weight_oihw, bias):
    """Conv2d(k=4, s=2, p=1) + LeakyReLU(0.2).  NCHW in, NCHW out."""
    N, Cin, H, W = x_nchw.shape
    Cout = weight_oihw.shape[0]
    assert weight_oihw.shape == (Cout, Cin, K, K), weight_oihw.shape
    assert H % 2 == 0 and W % 2 == 0, (H, W)
    Ho, Wo = H // 2, W // 2
    Hh, Wh = Ho + 1, Wo + 1                        # phase-plane extents

    CinP = _round_up(Cin, LANE)                    # lane-aligned per-tap channel chunk
    CoutP = _round_up(Cout, LANE)                  # lane-dense output stores
    KC = K * CinP                                  # im2col columns per kh group

    out_dtype = x_nchw.dtype
    # The (TH, Wo, KC) -> (TH*Wo, KC) collapse before the MXU is layout-free only when Wo
    # is a multiple of the sublane pack (16 for bf16, 8 for f32); fall back to an f32 patch
    # otherwise so the collapse stays a no-op (bf16 is still used for HBM staging and MXU).
    patch_dtype = jnp.bfloat16 if Wo % 16 == 0 else jnp.float32
    out_isize = jnp.dtype(out_dtype).itemsize
    patch_isize = jnp.dtype(patch_dtype).itemsize

    TH = _choose_row_tile(Ho, Wo, Wh, CinP, CoutP, N, out_isize, patch_isize)
    n_tiles = _cdiv(Ho, TH)
    Ho_pad = n_tiles * TH                          # padded output rows (tail discarded)

    # ---- wrapper-side layout plumbing only (no conv math) ----
    xb = x_nchw.astype(jnp.bfloat16)                                     # bf16 staging
    xb = jnp.transpose(xb, (0, 2, 3, 1))                                 # NHWC
    xb = jnp.pad(xb, ((0, 0), (1, 1), (1, 1), (0, CinP - Cin)))          # spatial + chan pad
    # stride-2 phase split: xp[n, 2*dh+dw, r, c, :] = x_pad[n, 2*r+dh, 2*c+dw, :]
    xp_all = (xb.reshape(N, Hh, 2, Wh, 2, CinP)
                .transpose(0, 2, 4, 1, 3, 5)
                .reshape(N, 4, Hh, Wh, CinP))
    hh_need = Ho_pad + 1
    if hh_need > Hh:                               # zero rows for the discarded tail tile
        xp_all = jnp.pad(xp_all, ((0, 0), (0, 0), (0, hh_need - Hh), (0, 0), (0, 0)))
    xp_main = xp_all[:, :, :Ho_pad]                # (N, 4, Ho_pad, Wh, CinP)
    xh_halo = xp_all[:, :, TH::TH]                 # (N, 4, n_tiles, Wh, CinP) halo rows

    # conv taps as 4 kh-groups of the im2col weight matrix, zero-padded rows/cols
    w_t = jnp.transpose(weight_oihw, (2, 3, 1, 0))                       # (K, K, Cin, Cout)
    w_t = jnp.pad(w_t, ((0, 0), (0, 0), (0, CinP - Cin), (0, CoutP - Cout)))
    w_g = w_t.reshape(K, KC, CoutP).astype(jnp.bfloat16)
    b2 = jnp.pad(bias, (0, CoutP - Cout)).reshape(1, CoutP).astype(jnp.float32)

    vmem_need = _step_vmem_bytes(TH, Wo, Wh, CinP, CoutP, out_isize, patch_isize)
    vmem_limit = int(min(max(2 * vmem_need, 32 * 1024 * 1024), 64 * 1024 * 1024))

    def kernel(xp_ref, xh_ref, w_ref, b_ref, o_ref, pa_ref, pb_ref):
        # xp_ref: (1, 4, TH, Wh, CinP) bf16   main phase rows of this tile
        # xh_ref: (1, 4, 1,  Wh, CinP) bf16   halo phase row (for output row TH-1, kh>=2)
        # w_ref : (K, KC, CoutP)       bf16   im2col weights, one kh group per leading index
        # b_ref : (1, CoutP)           f32
        # o_ref : (1, TH*Wo, CoutP)
        # pa_ref/pb_ref: VMEM (TH, Wo, KC) ping-pong im2col group buffers

        def gather(kh, dst):
            """Gather the 4 (kh, kw) taps of one kh group into `dst` (lane-aligned stores)."""
            ph, dh = kh // 2, kh % 2
            for kw in range(K):
                pw, dw = kw // 2, kw % 2
                p = 2 * dh + dw
                c0 = kw * CinP
                if ph == 0:
                    dst[:, :, c0:c0 + CinP] = (
                        xp_ref[0, p, :, pw:pw + Wo, :].astype(patch_dtype))
                else:
                    if TH > 1:
                        dst[:TH - 1, :, c0:c0 + CinP] = (
                            xp_ref[0, p, 1:, pw:pw + Wo, :].astype(patch_dtype))
                    dst[TH - 1, :, c0:c0 + CinP] = (
                        xh_ref[0, p, 0, pw:pw + Wo, :].astype(patch_dtype))

        bufs = (pa_ref, pb_ref)
        gather(0, bufs[0])
        acc = None
        for kh in range(K):
            # Prefetch the next kh group into the other buffer while this group's matmul is
            # in the MXU (independent refs -> the scheduler is free to overlap them).
            if kh + 1 < K:
                gather(kh + 1, bufs[(kh + 1) % 2])
            lhs = bufs[kh % 2][...].reshape(TH * Wo, KC).astype(jnp.bfloat16)
            part = jnp.dot(lhs, w_ref[kh], preferred_element_type=jnp.float32)
            acc = part if acc is None else acc + part
        acc = acc + b_ref[...]                                   # bias, f32
        acc = jnp.where(acc >= 0, acc, NEG_SLOPE * acc)          # LeakyReLU(0.2), f32
        o_ref[0] = acc.astype(o_ref.dtype)

    out_flat = pl.pallas_call(
        kernel,
        out_shape=jax.ShapeDtypeStruct((N, Ho_pad * Wo, CoutP), out_dtype),
        grid_spec=pltpu.PrefetchScalarGridSpec(
            num_scalar_prefetch=0,
            grid=(N, n_tiles),
            in_specs=[
                pl.BlockSpec((1, 4, TH, Wh, CinP), lambda n, i: (n, 0, i, 0, 0)),
                pl.BlockSpec((1, 4, 1, Wh, CinP), lambda n, i: (n, 0, i, 0, 0)),
                # constant index_map -> weights/bias stay resident across the grid
                pl.BlockSpec((K, KC, CoutP), lambda n, i: (0, 0, 0)),
                pl.BlockSpec((1, CoutP), lambda n, i: (0, 0)),
            ],
            out_specs=pl.BlockSpec((1, TH * Wo, CoutP), lambda n, i: (n, i, 0)),
            scratch_shapes=[
                pltpu.VMEM((TH, Wo, KC), patch_dtype),   # ping
                pltpu.VMEM((TH, Wo, KC), patch_dtype),   # pong
            ],
        ),
        compiler_params=pltpu.CompilerParams(
            dimension_semantics=("parallel", "parallel"),
            vmem_limit_bytes=vmem_limit),
    )(xp_main, xh_halo, w_g, b2)

    out = out_flat.reshape(N, Ho_pad, Wo, CoutP)[:, :Ho, :, :Cout]
    return jnp.transpose(out, (0, 3, 1, 2))                      # back to NCHW


def down_reference(x_nchw, weight_oihw, bias):
    y = jax.lax.conv_general_dilated(
        x_nchw, weight_oihw, window_strides=(S, S),
        padding=((1, 1), (1, 1)),
        dimension_numbers=("NCHW", "OIHW", "NCHW"),
        precision=jax.lax.Precision.HIGHEST)
    y = y + bias[None, :, None, None]
    return jnp.where(y >= 0, y, NEG_SLOPE * y)


if __name__ == "__main__":
    N, in_ch, out_ch, H, W = 2, 4, 8, 16, 16
    key = jax.random.PRNGKey(0)
    kx, kw_, kb = jax.random.split(key, 3)
    x = jax.random.normal(kx, (N, in_ch, H, W), jnp.float32)
    # deterministic synthetic parameters (shapes from nn.Conv2d(in_ch, out_ch, 4, 2, 1))
    weight = jax.random.normal(kw_, (out_ch, in_ch, K, K), jnp.float32) * 0.1
    bias = jax.random.normal(kb, (out_ch,), jnp.float32) * 0.1

    down_fn = jax.jit(down_pallas)
    out = jax.block_until_ready(down_fn(x, weight, bias))
    assert out.shape == (N, out_ch, H // 2, W // 2), out.shape

    # Tight check: same computation with the kernel's bf16-rounded MXU operands.
    xq = x.astype(jnp.bfloat16).astype(jnp.float32)
    wq = weight.astype(jnp.bfloat16).astype(jnp.float32)
    ref_q = down_reference(xq, wq, bias)
    err_q = float(jnp.max(jnp.abs(out - ref_q)))
    assert jnp.allclose(out, ref_q, rtol=2e-3, atol=2e-3), err_q

    # Semantic check against the full-f32 module (bf16 MXU rounding tolerance).
    ref = down_reference(x, weight, bias)
    err = float(jnp.max(jnp.abs(out - ref)))
    assert jnp.allclose(out, ref, rtol=5e-2, atol=5e-2), err

    print("KERNEL_OK")
</pallas_src>

<mosaic_0001>
module attributes {stable_mosaic.version = 11 : i64} {
  func.func @kernel(%arg0: i32, %arg1: i32, %arg2: memref<1x4x8x9x128xbf16, #tpu.memory_space<vmem>>, %arg3: memref<1x4x1x9x128xbf16, #tpu.memory_space<vmem>>, %arg4: memref<4x512x128xbf16, #tpu.memory_space<vmem>>, %arg5: memref<1x128xf32, #tpu.memory_space<vmem>>, %arg6: memref<1x64x128xf32, #tpu.memory_space<vmem>>, %arg7: memref<8x8x512xf32, #tpu.memory_space<vmem>>, %arg8: memref<8x8x512xf32, #tpu.memory_space<vmem>>) attributes {dimension_semantics = [#tpu.dimension_semantics<parallel>, #tpu.dimension_semantics<parallel>], iteration_bounds = array<i64: 2, 1>, scalar_prefetch = 0 : i64, scratch_operands = 2 : i64, tpu.core_type = #tpu.core_type<tc>, window_params = [{transform_indices = @transform_0, window_bounds = array<i64: 1, 4, 8, 9, 128>}, {transform_indices = @transform_1, window_bounds = array<i64: 1, 4, 1, 9, 128>}, {pipeline_mode = #tpu.pipeline_mode<synchronous>, transform_indices = @transform_2, window_bounds = array<i64: 4, 512, 128>}, {pipeline_mode = #tpu.pipeline_mode<synchronous>, transform_indices = @transform_3, window_bounds = array<i64: 1, 128>}, {transform_indices = @transform_4, window_bounds = array<i64: 1, 64, 128>}]} {
    %c0 = arith.constant 0 : index
    %c0_0 = arith.constant 0 : index
    %c0_1 = arith.constant 0 : index
    %c0_2 = arith.constant 0 : index
    %c0_3 = arith.constant 0 : index
    %0 = vector.load %arg2[%c0, %c0_0, %c0_1, %c0_2, %c0_3] : memref<1x4x8x9x128xbf16, #tpu.memory_space<vmem>>, vector<1x1x8x8x128xbf16>
    %1 = vector.shape_cast %0 : vector<1x1x8x8x128xbf16> to vector<8x8x128xbf16>
    %2 = arith.extf %1 : vector<8x8x128xbf16> to vector<8x8x128xf32>
    %c0_4 = arith.constant 0 : index
    %c0_5 = arith.constant 0 : index
    %c0_6 = arith.constant 0 : index
    %3 = vector.load %arg7[%c0_4, %c0_5, %c0_6] : memref<8x8x512xf32, #tpu.memory_space<vmem>>, vector<8x8x128xf32>
    tpu.vector_store %arg7[%c0_4, %c0_5, %c0_6], %2 {strides = array<i32>} : memref<8x8x512xf32, #tpu.memory_space<vmem>>, vector<8x8x128xf32>,
    %c0_7 = arith.constant 0 : index
    %c1 = arith.constant 1 : index
    %c0_8 = arith.constant 0 : index
    %c0_9 = arith.constant 0 : index
    %c0_10 = arith.constant 0 : index
    %4 = vector.load %arg2[%c0_7, %c1, %c0_8, %c0_9, %c0_10] : memref<1x4x8x9x128xbf16, #tpu.memory_space<vmem>>, vector<1x1x8x8x128xbf16>
    %5 = vector.shape_cast %4 : vector<1x1x8x8x128xbf16> to vector<8x8x128xbf16>
    %6 = arith.extf %5 : vector<8x8x128xbf16> to vector<8x8x128xf32>
    %c0_11 = arith.constant 0 : index
    %c0_12 = arith.constant 0 : index
    %c128 = arith.constant 128 : index
    %7 = vector.load %arg7[%c0_11, %c0_12, %c128] : memref<8x8x512xf32, #tpu.memory_space<vmem>>, vector<8x8x128xf32>
    tpu.vector_store %arg7[%c0_11, %c0_12, %c128], %6 {strides = array<i32>} : memref<8x8x512xf32, #tpu.memory_space<vmem>>, vector<8x8x128xf32>,
    %c0_13 = arith.constant 0 : index
    %c0_14 = arith.constant 0 : index
    %c0_15 = arith.constant 0 : index
    %c1_16 = arith.constant 1 : index
    %c0_17 = arith.constant 0 : index
    %8 = vector.load %arg2[%c0_13, %c0_14, %c0_15, %c1_16, %c0_17] : memref<1x4x8x9x128xbf16, #tpu.memory_space<vmem>>, vector<1x1x8x8x128xbf16>
    %9 = vector.shape_cast %8 : vector<1x1x8x8x128xbf16> to vector<8x8x128xbf16>
    %10 = arith.extf %9 : vector<8x8x128xbf16> to vector<8x8x128xf32>
    %c0_18 = arith.constant 0 : index
    %c0_19 = arith.constant 0 : index
    %c256 = arith.constant 256 : index
    %11 = vector.load %arg7[%c0_18, %c0_19, %c256] : memref<8x8x512xf32, #tpu.memory_space<vmem>>, vector<8x8x128xf32>
    tpu.vector_store %arg7[%c0_18, %c0_19, %c256], %10 {strides = array<i32>} : memref<8x8x512xf32, #tpu.memory_space<vmem>>, vector<8x8x128xf32>,
    %c0_20 = arith.constant 0 : index
    %c1_21 = arith.constant 1 : index
    %c0_22 = arith.constant 0 : index
    %c1_23 = arith.constant 1 : index
    %c0_24 = arith.constant 0 : index
    %12 = vector.load %arg2[%c0_20, %c1_21, %c0_22, %c1_23, %c0_24] : memref<1x4x8x9x128xbf16, #tpu.memory_space<vmem>>, vector<1x1x8x8x128xbf16>
    %13 = vector.shape_cast %12 : vector<1x1x8x8x128xbf16> to vector<8x8x128xbf16>
    %14 = arith.extf %13 : vector<8x8x128xbf16> to vector<8x8x128xf32>
    %c0_25 = arith.constant 0 : index
    %c0_26 = arith.constant 0 : index
    %c384 = arith.constant 384 : index
    %15 = vector.load %arg7[%c0_25, %c0_26, %c384] : memref<8x8x512xf32, #tpu.memory_space<vmem>>, vector<8x8x128xf32>
    tpu.vector_store %arg7[%c0_25, %c0_26, %c384], %14 {strides = array<i32>} : memref<8x8x512xf32, #tpu.memory_space<vmem>>, vector<8x8x128xf32>,
    %c0_27 = arith.constant 0 : index
    %c2 = arith.constant 2 : index
    %c0_28 = arith.constant 0 : index
    %c0_29 = arith.constant 0 : index
    %c0_30 = arith.constant 0 : index
    %16 = vector.load %arg2[%c0_27, %c2, %c0_28, %c0_29, %c0_30] : memref<1x4x8x9x128xbf16, #tpu.memory_space<vmem>>, vector<1x1x8x8x128xbf16>
    %17 = vector.shape_cast %16 : vector<1x1x8x8x128xbf16> to vector<8x8x128xbf16>
    %18 = arith.extf %17 : vector<8x8x128xbf16> to vector<8x8x128xf32>
    %c0_31 = arith.constant 0 : index
    %c0_32 = arith.constant 0 : index
    %c0_33 = arith.constant 0 : index
    %19 = vector.load %arg8[%c0_31, %c0_32, %c0_33] : memref<8x8x512xf32, #tpu.memory_space<vmem>>, vector<8x8x128xf32>
    tpu.vector_store %arg8[%c0_31, %c0_32, %c0_33], %18 {strides = array<i32>} : memref<8x8x512xf32, #tpu.memory_space<vmem>>, vector<8x8x128xf32>,
    %c0_34 = arith.constant 0 : index
    %c3 = arith.constant 3 : index
    %c0_35 = arith.constant 0 : index
    %c0_36 = arith.constant 0 : index
    %c0_37 = arith.constant 0 : index
    %20 = vector.load %arg2[%c0_34, %c3, %c0_35, %c0_36, %c0_37] : memref<1x4x8x9x128xbf16, #tpu.memory_space<vmem>>, vector<1x1x8x8x128xbf16>
    %21 = vector.shape_cast %20 : vector<1x1x8x8x128xbf16> to vector<8x8x128xbf16>
    %22 = arith.extf %21 : vector<8x8x128xbf16> to vector<8x8x128xf32>
    %c0_38 = arith.constant 0 : index
    %c0_39 = arith.constant 0 : index
    %c128_40 = arith.constant 128 : index
    %23 = vector.load %arg8[%c0_38, %c0_39, %c128_40] : memref<8x8x512xf32, #tpu.memory_space<vmem>>, vector<8x8x128xf32>
    tpu.vector_store %arg8[%c0_38, %c0_39, %c128_40], %22 {strides = array<i32>} : memref<8x8x512xf32, #tpu.memory_space<vmem>>, vector<8x8x128xf32>,
    %c0_41 = arith.constant 0 : index
    %c2_42 = arith.constant 2 : index
    %c0_43 = arith.constant 0 : index
    %c1_44 = arith.constant 1 : index
    %c0_45 = arith.constant 0 : index
    %24 = vector.load %arg2[%c0_41, %c2_42, %c0_43, %c1_44, %c0_45] : memref<1x4x8x9x128xbf16, #tpu.memory_space<vmem>>, vector<1x1x8x8x128xbf16>
    %25 = vector.shape_cast %24 : vector<1x1x8x8x128xbf16> to vector<8x8x128xbf16>
    %26 = arith.extf %25 : vector<8x8x128xbf16> to vector<8x8x128xf32>
    %c0_46 = arith.constant 0 : index
    %c0_47 = arith.constant 0 : index
    %c256_48 = arith.constant 256 : index
    %27 = vector.load %arg8[%c0_46, %c0_47, %c256_48] : memref<8x8x512xf32, #tpu.memory_space<vmem>>, vector<8x8x128xf32>
    tpu.vector_store %arg8[%c0_46, %c0_47, %c256_48], %26 {strides = array<i32>} : memref<8x8x512xf32, #tpu.memory_space<vmem>>, vector<8x8x128xf32>,
    %c0_49 = arith.constant 0 : index
    %c3_50 = arith.constant 3 : index
    %c0_51 = arith.constant 0 : index
    %c1_52 = arith.constant 1 : index
    %c0_53 = arith.constant 0 : index
    %28 = vector.load %arg2[%c0_49, %c3_50, %c0_51, %c1_52, %c0_53] : memref<1x4x8x9x128xbf16, #tpu.memory_space<vmem>>, vector<1x1x8x8x128xbf16>
    %29 = vector.shape_cast %28 : vector<1x1x8x8x128xbf16> to vector<8x8x128xbf16>
    %30 = arith.extf %29 : vector<8x8x128xbf16> to vector<8x8x128xf32>
    %c0_54 = arith.constant 0 : index
    %c0_55 = arith.constant 0 : index
    %c384_56 = arith.constant 384 : index
    %31 = vector.load %arg8[%c0_54, %c0_55, %c384_56] : memref<8x8x512xf32, #tpu.memory_space<vmem>>, vector<8x8x128xf32>
    tpu.vector_store %arg8[%c0_54, %c0_55, %c384_56], %30 {strides = array<i32>} : memref<8x8x512xf32, #tpu.memory_space<vmem>>, vector<8x8x128xf32>,
    %c0_57 = arith.constant 0 : index
    %c0_58 = arith.constant 0 : index
    %c0_59 = arith.constant 0 : index
    %32 = vector.load %arg7[%c0_57, %c0_58, %c0_59] : memref<8x8x512xf32, #tpu.memory_space<vmem>>, vector<8x8x512xf32>
    %33 = vector.shape_cast %32 : vector<8x8x512xf32> to vector<64x512xf32>
    %34 = arith.truncf %33 : vector<64x512xf32> to vector<64x512xbf16>
    %c0_60 = arith.constant 0 : index
    %c0_61 = arith.constant 0 : index
    %c0_62 = arith.constant 0 : index
    %35 = vector.load %arg4[%c0_60, %c0_61, %c0_62] : memref<4x512x128xbf16, #tpu.memory_space<vmem>>, vector<1x512x128xbf16>
    %36 = vector.shape_cast %35 : vector<1x512x128xbf16> to vector<512x128xbf16>
    %cst = arith.constant dense<0.000000e+00> : vector<64x128xf32>
    %37 = tpu.matmul %34, %36, %cst {dimension_numbers = #tpu.dot_dimension_numbers<[1], [0], [0], [1], [0, 0, 1, 1], [], []>} : vector<64x512xbf16>, vector<512x128xbf16>, vector<64x128xf32> -> vector<64x128xf32>
    %c0_63 = arith.constant 0 : index
    %c0_64 = arith.constant 0 : index
    %c1_65 = arith.constant 1 : index
    %c0_66 = arith.constant 0 : index
    %c0_67 = arith.constant 0 : index
    %38 = vector.load %arg2[%c0_63, %c0_64, %c1_65, %c0_66, %c0_67] : memref<1x4x8x9x128xbf16, #tpu.memory_space<vmem>>, vector<1x1x7x8x128xbf16>
    %39 = vector.shape_cast %38 : vector<1x1x7x8x128xbf16> to vector<7x8x128xbf16>
    %40 = arith.extf %39 : vector<7x8x128xbf16> to vector<7x8x128xf32>
    %c0_68 = arith.constant 0 : index
    %c0_69 = arith.constant 0 : index
    %c0_70 = arith.constant 0 : index
    %41 = vector.load %arg7[%c0_68, %c0_69, %c0_70] : memref<8x8x512xf32, #tpu.memory_space<vmem>>, vector<7x8x128xf32>
    tpu.vector_store %arg7[%c0_68, %c0_69, %c0_70], %40 {strides = array<i32>} : memref<8x8x512xf32, #tpu.memory_space<vmem>>, vector<7x8x128xf32>,
    %c0_71 = arith.constant 0 : index
    %c0_72 = arith.constant 0 : index
    %c0_73 = arith.constant 0 : index
    %c0_74 = arith.constant 0 : index
    %c0_75 = arith.constant 0 : index
    %42 = vector.load %arg3[%c0_71, %c0_72, %c0_73, %c0_74, %c0_75] : memref<1x4x1x9x128xbf16, #tpu.memory_space<vmem>>, vector<1x1x1x8x128xbf16>
    %43 = vector.shape_cast %42 : vector<1x1x1x8x128xbf16> to vector<8x128xbf16>
    %44 = arith.extf %43 : vector<8x128xbf16> to vector<8x128xf32>
    %c7 = arith.constant 7 : index
    %c0_76 = arith.constant 0 : index
    %c0_77 = arith.constant 0 : index
    %45 = vector.load %arg7[%c7, %c0_76, %c0_77] : memref<8x8x512xf32, #tpu.memory_space<vmem>>, vector<1x8x128xf32>
    %46 = vector.shape_cast %45 : vector<1x8x128xf32> to vector<8x128xf32>
    %47 = vector.shape_cast %44 : vector<8x128xf32> to vector<1x8x128xf32>
    tpu.vector_store %arg7[%c7, %c0_76, %c0_77], %47 {strides = array<i32>} : memref<8x8x512xf32, #tpu.memory_space<vmem>>, vector<1x8x128xf32>,
    %c0_78 = arith.constant 0 : index
    %c1_79 = arith.constant 1 : index
    %c1_80 = arith.constant 1 : index
    %c0_81 = arith.constant 0 : index
    %c0_82 = arith.constant 0 : index
    %48 = vector.load %arg2[%c0_78, %c1_79, %c1_80, %c0_81, %c0_82] : memref<1x4x8x9x128xbf16, #tpu.memory_space<vmem>>, vector<1x1x7x8x128xbf16>
    %49 = vector.shape_cast %48 : vector<1x1x7x8x128xbf16> to vector<7x8x128xbf16>
    %50 = arith.extf %49 : vector<7x8x128xbf16> to vector<7x8x128xf32>
    %c0_83 = arith.constant 0 : index
    %c0_84 = arith.constant 0 : index
    %c128_85 = arith.constant 128 : index
    %51 = vector.load %arg7[%c0_83, %c0_84, %c128_85] : memref<8x8x512xf32, #tpu.memory_space<vmem>>, vector<7x8x128xf32>
    tpu.vector_store %arg7[%c0_83, %c0_84, %c128_85], %50 {strides = array<i32>} : memref<8x8x512xf32, #tpu.memory_space<vmem>>, vector<7x8x128xf32>,
    %c0_86 = arith.constant 0 : index
    %c1_87 = arith.constant 1 : index
    %c0_88 = arith.constant 0 : index
    %c0_89 = arith.constant 0 : index
    %c0_90 = arith.constant 0 : index
    %52 = vector.load %arg3[%c0_86, %c1_87, %c0_88, %c0_89, %c0_90] : memref<1x4x1x9x128xbf16, #tpu.memory_space<vmem>>, vector<1x1x1x8x128xbf16>
    %53 = vector.shape_cast %52 : vector<1x1x1x8x128xbf16> to vector<8x128xbf16>
    %54 = arith.extf %53 : vector<8x128xbf16> to vector<8x128xf32>
    %c7_91 = arith.constant 7 : index
    %c0_92 = arith.constant 0 : index
    %c128_93 = arith.constant 128 : index
    %55 = vector.load %arg7[%c7_91, %c0_92, %c128_93] : memref<8x8x512xf32, #tpu.memory_space<vmem>>, vector<1x8x128xf32>
    %56 = vector.shape_cast %55 : vector<1x8x128xf32> to vector<8x128xf32>
    %57 = vector.shape_cast %54 : vector<8x128xf32> to vector<1x8x128xf32>
    tpu.vector_store %arg7[%c7_91, %c0_92, %c128_93], %57 {strides = array<i32>} : memref<8x8x512xf32, #tpu.memory_space<vmem>>, vector<1x8x128xf32>,
    %c0_94 = arith.constant 0 : index
    %c0_95 = arith.constant 0 : index
    %c1_96 = arith.constant 1 : index
    %c1_97 = arith.constant 1 : index
    %c0_98 = arith.constant 0 : index
    %58 = vector.load %arg2[%c0_94, %c0_95, %c1_96, %c1_97, %c0_98] : memref<1x4x8x9x128xbf16, #tpu.memory_space<vmem>>, vector<1x1x7x8x128xbf16>
    %59 = vector.shape_cast %58 : vector<1x1x7x8x128xbf16> to vector<7x8x128xbf16>
    %60 = arith.extf %59 : vector<7x8x128xbf16> to vector<7x8x128xf32>
    %c0_99 = arith.constant 0 : index
    %c0_100 = arith.constant 0 : index
    %c256_101 = arith.constant 256 : index
    %61 = vector.load %arg7[%c0_99, %c0_100, %c256_101] : memref<8x8x512xf32, #tpu.memory_space<vmem>>, vector<7x8x128xf32>
    tpu.vector_store %arg7[%c0_99, %c0_100, %c256_101], %60 {strides = array<i32>} : memref<8x8x512xf32, #tpu.memory_space<vmem>>, vector<7x8x128xf32>,
    %c0_102 = arith.constant 0 : index
    %c0_103 = arith.constant 0 : index
    %c0_104 = arith.constant 0 : index
    %c1_105 = arith.constant 1 : index
    %c0_106 = arith.constant 0 : index
    %62 = vector.load %arg3[%c0_102, %c0_103, %c0_104, %c1_105, %c0_106] : memref<1x4x1x9x128xbf16, #tpu.memory_space<vmem>>, vector<1x1x1x8x128xbf16>
    %63 = vector.shape_cast %62 : vector<1x1x1x8x128xbf16> to vector<8x128xbf16>
    %64 = arith.extf %63 : vector<8x128xbf16> to vector<8x128xf32>
    %c7_107 = arith.constant 7 : index
    %c0_108 = arith.constant 0 : index
    %c256_109 = arith.constant 256 : index
    %65 = vector.load %arg7[%c7_107, %c0_108, %c256_109] : memref<8x8x512xf32, #tpu.memory_space<vmem>>, vector<1x8x128xf32>
    %66 = vector.shape_cast %65 : vector<1x8x128xf32> to vector<8x128xf32>
    %67 = vector.shape_cast %64 : vector<8x128xf32> to vector<1x8x128xf32>
    tpu.vector_store %arg7[%c7_107, %c0_108, %c256_109], %67 {strides = array<i32>} : memref<8x8x512xf32, #tpu.memory_space<vmem>>, vector<1x8x128xf32>,
    %c0_110 = arith.constant 0 : index
    %c1_111 = arith.constant 1 : index
    %c1_112 = arith.constant 1 : index
    %c1_113 = arith.constant 1 : index
    %c0_114 = arith.constant 0 : index
    %68 = vector.load %arg2[%c0_110, %c1_111, %c1_112, %c1_113, %c0_114] : memref<1x4x8x9x128xbf16, #tpu.memory_space<vmem>>, vector<1x1x7x8x128xbf16>
    %69 = vector.shape_cast %68 : vector<1x1x7x8x128xbf16> to vector<7x8x128xbf16>
    %70 = arith.extf %69 : vector<7x8x128xbf16> to vector<7x8x128xf32>
    %c0_115 = arith.constant 0 : index
    %c0_116 = arith.constant 0 : index
    %c384_117 = arith.constant 384 : index
    %71 = vector.load %arg7[%c0_115, %c0_116, %c384_117] : memref<8x8x512xf32, #tpu.memory_space<vmem>>, vector<7x8x128xf32>
    tpu.vector_store %arg7[%c0_115, %c0_116, %c384_117], %70 {strides = array<i32>} : memref<8x8x512xf32, #tpu.memory_space<vmem>>, vector<7x8x128xf32>,
    %c0_118 = arith.constant 0 : index
    %c1_119 = arith.constant 1 : index
    %c0_120 = arith.constant 0 : index
    %c1_121 = arith.constant 1 : index
    %c0_122 = arith.constant 0 : index
    %72 = vector.load %arg3[%c0_118, %c1_119, %c0_120, %c1_121, %c0_122] : memref<1x4x1x9x128xbf16, #tpu.memory_space<vmem>>, vector<1x1x1x8x128xbf16>
    %73 = vector.shape_cast %72 : vector<1x1x1x8x128xbf16> to vector<8x128xbf16>
    %74 = arith.extf %73 : vector<8x128xbf16> to vector<8x128xf32>
    %c7_123 = arith.constant 7 : index
    %c0_124 = arith.constant 0 : index
    %c384_125 = arith.constant 384 : index
    %75 = vector.load %arg7[%c7_123, %c0_124, %c384_125] : memref<8x8x512xf32, #tpu.memory_space<vmem>>, vector<1x8x128xf32>
    %76 = vector.shape_cast %75 : vector<1x8x128xf32> to vector<8x128xf32>
    %77 = vector.shape_cast %74 : vector<8x128xf32> to vector<1x8x128xf32>
    tpu.vector_store %arg7[%c7_123, %c0_124, %c384_125], %77 {strides = array<i32>} : memref<8x8x512xf32, #tpu.memory_space<vmem>>, vector<1x8x128xf32>,
    %c0_126 = arith.constant 0 : index
    %c0_127 = arith.constant 0 : index
    %c0_128 = arith.constant 0 : index
    %78 = vector.load %arg8[%c0_126, %c0_127, %c0_128] : memref<8x8x512xf32, #tpu.memory_space<vmem>>, vector<8x8x512xf32>
    %79 = vector.shape_cast %78 : vector<8x8x512xf32> to vector<64x512xf32>
    %80 = arith.truncf %79 : vector<64x512xf32> to vector<64x512xbf16>
    %c1_129 = arith.constant 1 : index
    %c0_130 = arith.constant 0 : index
    %c0_131 = arith.constant 0 : index
    %81 = vector.load %arg4[%c1_129, %c0_130, %c0_131] : memref<4x512x128xbf16, #tpu.memory_space<vmem>>, vector<1x512x128xbf16>
    %82 = vector.shape_cast %81 : vector<1x512x128xbf16> to vector<512x128xbf16>
    %cst_132 = arith.constant dense<0.000000e+00> : vector<64x128xf32>
    %83 = tpu.matmul %80, %82, %cst_132 {dimension_numbers = #tpu.dot_dimension_numbers<[1], [0], [0], [1], [0, 0, 1, 1], [], []>} : vector<64x512xbf16>, vector<512x128xbf16>, vector<64x128xf32> -> vector<64x128xf32>
    %84 = arith.addf %37, %83 : vector<64x128xf32>
    %c0_133 = arith.constant 0 : index
    %c2_134 = arith.constant 2 : index
    %c1_135 = arith.constant 1 : index
    %c0_136 = arith.constant 0 : index
    %c0_137 = arith.constant 0 : index
    %85 = vector.load %arg2[%c0_133, %c2_134, %c1_135, %c0_136, %c0_137] : memref<1x4x8x9x128xbf16, #tpu.memory_space<vmem>>, vector<1x1x7x8x128xbf16>
    %86 = vector.shape_cast %85 : vector<1x1x7x8x128xbf16> to vector<7x8x128xbf16>
    %87 = arith.extf %86 : vector<7x8x128xbf16> to vector<7x8x128xf32>
    %c0_138 = arith.constant 0 : index
    %c0_139 = arith.constant 0 : index
    %c0_140 = arith.constant 0 : index
    %88 = vector.load %arg8[%c0_138, %c0_139, %c0_140] : memref<8x8x512xf32, #tpu.memory_space<vmem>>, vector<7x8x128xf32>
    tpu.vector_store %arg8[%c0_138, %c0_139, %c0_140], %87 {strides = array<i32>} : memref<8x8x512xf32, #tpu.memory_space<vmem>>, vector<7x8x128xf32>,
    %c0_141 = arith.constant 0 : index
    %c2_142 = arith.constant 2 : index
    %c0_143 = arith.constant 0 : index
    %c0_144 = arith.constant 0 : index
    %c0_145 = arith.constant 0 : index
    %89 = vector.load %arg3[%c0_141, %c2_142, %c0_143, %c0_144, %c0_145] : memref<1x4x1x9x128xbf16, #tpu.memory_space<vmem>>, vector<1x1x1x8x128xbf16>
    %90 = vector.shape_cast %89 : vector<1x1x1x8x128xbf16> to vector<8x128xbf16>
    %91 = arith.extf %90 : vector<8x128xbf16> to vector<8x128xf32>
    %c7_146 = arith.constant 7 : index
    %c0_147 = arith.constant 0 : index
    %c0_148 = arith.constant 0 : index
    %92 = vector.load %arg8[%c7_146, %c0_147, %c0_148] : memref<8x8x512xf32, #tpu.memory_space<vmem>>, vector<1x8x128xf32>
    %93 = vector.shape_cast %92 : vector<1x8x128xf32> to vector<8x128xf32>
    %94 = vector.shape_cast %91 : vector<8x128xf32> to vector<1x8x128xf32>
    tpu.vector_store %arg8[%c7_146, %c0_147, %c0_148], %94 {strides = array<i32>} : memref<8x8x512xf32, #tpu.memory_space<vmem>>, vector<1x8x128xf32>,
    %c0_149 = arith.constant 0 : index
    %c3_150 = arith.constant 3 : index
    %c1_151 = arith.constant 1 : index
    %c0_152 = arith.constant 0 : index
    %c0_153 = arith.constant 0 : index
    %95 = vector.load %arg2[%c0_149, %c3_150, %c1_151, %c0_152, %c0_153] : memref<1x4x8x9x128xbf16, #tpu.memory_space<vmem>>, vector<1x1x7x8x128xbf16>
    %96 = vector.shape_cast %95 : vector<1x1x7x8x128xbf16> to vector<7x8x128xbf16>
    %97 = arith.extf %96 : vector<7x8x128xbf16> to vector<7x8x128xf32>
    %c0_154 = arith.constant 0 : index
    %c0_155 = arith.constant 0 : index
    %c128_156 = arith.constant 128 : index
    %98 = vector.load %arg8[%c0_154, %c0_155, %c128_156] : memref<8x8x512xf32, #tpu.memory_space<vmem>>, vector<7x8x128xf32>
    tpu.vector_store %arg8[%c0_154, %c0_155, %c128_156], %97 {strides = array<i32>} : memref<8x8x512xf32, #tpu.memory_space<vmem>>, vector<7x8x128xf32>,
    %c0_157 = arith.constant 0 : index
    %c3_158 = arith.constant 3 : index
    %c0_159 = arith.constant 0 : index
    %c0_160 = arith.constant 0 : index
    %c0_161 = arith.constant 0 : index
    %99 = vector.load %arg3[%c0_157, %c3_158, %c0_159, %c0_160, %c0_161] : memref<1x4x1x9x128xbf16, #tpu.memory_space<vmem>>, vector<1x1x1x8x128xbf16>
    %100 = vector.shape_cast %99 : vector<1x1x1x8x128xbf16> to vector<8x128xbf16>
    %101 = arith.extf %100 : vector<8x128xbf16> to vector<8x128xf32>
    %c7_162 = arith.constant 7 : index
    %c0_163 = arith.constant 0 : index
    %c128_164 = arith.constant 128 : index
    %102 = vector.load %arg8[%c7_162, %c0_163, %c128_164] : memref<8x8x512xf32, #tpu.memory_space<vmem>>, vector<1x8x128xf32>
    %103 = vector.shape_cast %102 : vector<1x8x128xf32> to vector<8x128xf32>
    %104 = vector.shape_cast %101 : vector<8x128xf32> to vector<1x8x128xf32>
    tpu.vector_store %arg8[%c7_162, %c0_163, %c128_164], %104 {strides = array<i32>} : memref<8x8x512xf32, #tpu.memory_space<vmem>>, vector<1x8x128xf32>,
    %c0_165 = arith.constant 0 : index
    %c2_166 = arith.constant 2 : index
    %c1_167 = arith.constant 1 : index
    %c1_168 = arith.constant 1 : index
    %c0_169 = arith.constant 0 : index
    %105 = vector.load %arg2[%c0_165, %c2_166, %c1_167, %c1_168, %c0_169] : memref<1x4x8x9x128xbf16, #tpu.memory_space<vmem>>, vector<1x1x7x8x128xbf16>
    %106 = vector.shape_cast %105 : vector<1x1x7x8x128xbf16> to vector<7x8x128xbf16>
    %107 = arith.extf %106 : vector<7x8x128xbf16> to vector<7x8x128xf32>
    %c0_170 = arith.constant 0 : index
    %c0_171 = arith.constant 0 : index
    %c256_172 = arith.constant 256 : index
    %108 = vector.load %arg8[%c0_170, %c0_171, %c256_172] : memref<8x8x512xf32, #tpu.memory_space<vmem>>, vector<7x8x128xf32>
    tpu.vector_store %arg8[%c0_170, %c0_171, %c256_172], %107 {strides = array<i32>} : memref<8x8x512xf32, #tpu.memory_space<vmem>>, vector<7x8x128xf32>,
    %c0_173 = arith.constant 0 : index
    %c2_174 = arith.constant 2 : index
    %c0_175 = arith.constant 0 : index
    %c1_176 = arith.constant 1 : index
    %c0_177 = arith.constant 0 : index
    %109 = vector.load %arg3[%c0_173, %c2_174, %c0_175, %c1_176, %c0_177] : memref<1x4x1x9x128xbf16, #tpu.memory_space<vmem>>, vector<1x1x1x8x128xbf16>
    %110 = vector.shape_cast %109 : vector<1x1x1x8x128xbf16> to vector<8x128xbf16>
    %111 = arith.extf %110 : vector<8x128xbf16> to vector<8x128xf32>
    %c7_178 = arith.constant 7 : index
    %c0_179 = arith.constant 0 : index
    %c256_180 = arith.constant 256 : index
    %112 = vector.load %arg8[%c7_178, %c0_179, %c256_180] : memref<8x8x512xf32, #tpu.memory_space<vmem>>, vector<1x8x128xf32>
    %113 = vector.shape_cast %112 : vector<1x8x128xf32> to vector<8x128xf32>
    %114 = vector.shape_cast %111 : vector<8x128xf32> to vector<1x8x128xf32>
    tpu.vector_store %arg8[%c7_178, %c0_179, %c256_180], %114 {strides = array<i32>} : memref<8x8x512xf32, #tpu.memory_space<vmem>>, vector<1x8x128xf32>,
    %c0_181 = arith.constant 0 : index
    %c3_182 = arith.constant 3 : index
    %c1_183 = arith.constant 1 : index
    %c1_184 = arith.constant 1 : index
    %c0_185 = arith.constant 0 : index
    %115 = vector.load %arg2[%c0_181, %c3_182, %c1_183, %c1_184, %c0_185] : memref<1x4x8x9x128xbf16, #tpu.memory_space<vmem>>, vector<1x1x7x8x128xbf16>
    %116 = vector.shape_cast %115 : vector<1x1x7x8x128xbf16> to vector<7x8x128xbf16>
    %117 = arith.extf %116 : vector<7x8x128xbf16> to vector<7x8x128xf32>
    %c0_186 = arith.constant 0 : index
    %c0_187 = arith.constant 0 : index
    %c384_188 = arith.constant 384 : index
    %118 = vector.load %arg8[%c0_186, %c0_187, %c384_188] : memref<8x8x512xf32, #tpu.memory_space<vmem>>, vector<7x8x128xf32>
    tpu.vector_store %arg8[%c0_186, %c0_187, %c384_188], %117 {strides = array<i32>} : memref<8x8x512xf32, #tpu.memory_space<vmem>>, vector<7x8x128xf32>,
    %c0_189 = arith.constant 0 : index
    %c3_190 = arith.constant 3 : index
    %c0_191 = arith.constant 0 : index
    %c1_192 = arith.constant 1 : index
    %c0_193 = arith.constant 0 : index
    %119 = vector.load %arg3[%c0_189, %c3_190, %c0_191, %c1_192, %c0_193] : memref<1x4x1x9x128xbf16, #tpu.memory_space<vmem>>, vector<1x1x1x8x128xbf16>
    %120 = vector.shape_cast %119 : vector<1x1x1x8x128xbf16> to vector<8x128xbf16>
    %121 = arith.extf %120 : vector<8x128xbf16> to vector<8x128xf32>
    %c7_194 = arith.constant 7 : index
    %c0_195 = arith.constant 0 : index
    %c384_196 = arith.constant 384 : index
    %122 = vector.load %arg8[%c7_194, %c0_195, %c384_196] : memref<8x8x512xf32, #tpu.memory_space<vmem>>, vector<1x8x128xf32>
    %123 = vector.shape_cast %122 : vector<1x8x128xf32> to vector<8x128xf32>
    %124 = vector.shape_cast %121 : vector<8x128xf32> to vector<1x8x128xf32>
    tpu.vector_store %arg8[%c7_194, %c0_195, %c384_196], %124 {strides = array<i32>} : memref<8x8x512xf32, #tpu.memory_space<vmem>>, vector<1x8x128xf32>,
    %c0_197 = arith.constant 0 : index
    %c0_198 = arith.constant 0 : index
    %c0_199 = arith.constant 0 : index
    %125 = vector.load %arg7[%c0_197, %c0_198, %c0_199] : memref<8x8x512xf32, #tpu.memory_space<vmem>>, vector<8x8x512xf32>
    %126 = vector.shape_cast %125 : vector<8x8x512xf32> to vector<64x512xf32>
    %127 = arith.truncf %126 : vector<64x512xf32> to vector<64x512xbf16>
    %c2_200 = arith.constant 2 : index
    %c0_201 = arith.constant 0 : index
    %c0_202 = arith.constant 0 : index
    %128 = vector.load %arg4[%c2_200, %c0_201, %c0_202] : memref<4x512x128xbf16, #tpu.memory_space<vmem>>, vector<1x512x128xbf16>
    %129 = vector.shape_cast %128 : vector<1x512x128xbf16> to vector<512x128xbf16>
    %cst_203 = arith.constant dense<0.000000e+00> : vector<64x128xf32>
    %130 = tpu.matmul %127, %129, %cst_203 {dimension_numbers = #tpu.dot_dimension_numbers<[1], [0], [0], [1], [0, 0, 1, 1], [], []>} : vector<64x512xbf16>, vector<512x128xbf16>, vector<64x128xf32> -> vector<64x128xf32>
    %131 = arith.addf %84, %130 : vector<64x128xf32>
    %c0_204 = arith.constant 0 : index
    %c0_205 = arith.constant 0 : index
    %c0_206 = arith.constant 0 : index
    %132 = vector.load %arg8[%c0_204, %c0_205, %c0_206] : memref<8x8x512xf32, #tpu.memory_space<vmem>>, vector<8x8x512xf32>
    %133 = vector.shape_cast %132 : vector<8x8x512xf32> to vector<64x512xf32>
    %134 = arith.truncf %133 : vector<64x512xf32> to vector<64x512xbf16>
    %c3_207 = arith.constant 3 : index
    %c0_208 = arith.constant 0 : index
    %c0_209 = arith.constant 0 : index
    %135 = vector.load %arg4[%c3_207, %c0_208, %c0_209] : memref<4x512x128xbf16, #tpu.memory_space<vmem>>, vector<1x512x128xbf16>
    %136 = vector.shape_cast %135 : vector<1x512x128xbf16> to vector<512x128xbf16>
    %cst_210 = arith.constant dense<0.000000e+00> : vector<64x128xf32>
    %137 = tpu.matmul %134, %136, %cst_210 {dimension_numbers = #tpu.dot_dimension_numbers<[1], [0], [0], [1], [0, 0, 1, 1], [], []>} : vector<64x512xbf16>, vector<512x128xbf16>, vector<64x128xf32> -> vector<64x128xf32>
    %138 = arith.addf %131, %137 : vector<64x128xf32>
    %c0_211 = arith.constant 0 : index
    %c0_212 = arith.constant 0 : index
    %139 = vector.load %arg5[%c0_211, %c0_212] : memref<1x128xf32, #tpu.memory_space<vmem>>, vector<1x128xf32>
    %140 = vector.broadcast %139 : vector<1x128xf32> to vector<64x128xf32>
    %141 = arith.addf %138, %140 : vector<64x128xf32>
    %cst_213 = arith.constant 0.000000e+00 : f32
    %142 = vector.broadcast %cst_213 : f32 to vector<64x128xf32>
    %143 = arith.cmpf oge, %141, %142 : vector<64x128xf32>
    %cst_214 = arith.constant 2.000000e-01 : f32
    %144 = vector.broadcast %cst_214 : f32 to vector<64x128xf32>
    %145 = arith.mulf %144, %141 : vector<64x128xf32>
    %146 = arith.select %143, %141, %145 : vector<64x128xi1>, vector<64x128xf32>
    %c0_215 = arith.constant 0 : index
    %c0_216 = arith.constant 0 : index
    %c0_217 = arith.constant 0 : index
    %147 = vector.load %arg6[%c0_215, %c0_216, %c0_217] : memref<1x64x128xf32, #tpu.memory_space<vmem>>, vector<1x64x128xf32>
    %148 = vector.shape_cast %147 : vector<1x64x128xf32> to vector<64x128xf32>
    %149 = vector.shape_cast %146 : vector<64x128xf32> to vector<1x64x128xf32>
    tpu.vector_store %arg6[%c0_215, %c0_216, %c0_217], %149 {strides = array<i32>} : memref<1x64x128xf32, #tpu.memory_space<vmem>>, vector<1x64x128xf32>,
    return
  }
  func.func @transform_0(%arg0: i32, %arg1: i32) -> (i32, i32, i32, i32, i32) {
    %c0_i32 = arith.constant 0 : i32
    %c0_i32_0 = arith.constant 0 : i32
    %c0_i32_1 = arith.constant 0 : i32
    %c0_i32_2 = arith.constant 0 : i32
    return %arg0, %c0_i32, %arg1, %c0_i32_0, %c0_i32_1 : i32, i32, i32, i32, i32
  }
  func.func @transform_1(%arg0: i32, %arg1: i32) -> (i32, i32, i32, i32, i32) {
    %c0_i32 = arith.constant 0 : i32
    %c0_i32_0 = arith.constant 0 : i32
    %c0_i32_1 = arith.constant 0 : i32
    %c0_i32_2 = arith.constant 0 : i32
    return %arg0, %c0_i32, %arg1, %c0_i32_0, %c0_i32_1 : i32, i32, i32, i32, i32
  }
  func.func @transform_2(%arg0: i32, %arg1: i32) -> (i32, i32, i32) {
    %c0_i32 = arith.constant 0 : i32
    %c0_i32_0 = arith.constant 0 : i32
    %c0_i32_1 = arith.constant 0 : i32
    %c0_i32_2 = arith.constant 0 : i32
    return %c0_i32, %c0_i32_0, %c0_i32_1 : i32, i32, i32
  }
  func.func @transform_3(%arg0: i32, %arg1: i32) -> (i32, i32) {
    %c0_i32 = arith.constant 0 : i32
    %c0_i32_0 = arith.constant 0 : i32
    %c0_i32_1 = arith.constant 0 : i32
    return %c0_i32, %c0_i32_0 : i32, i32
  }
  func.func @transform_4(%arg0: i32, %arg1: i32) -> (i32, i32, i32) {
    %c0_i32 = arith.constant 0 : i32
    %c0_i32_0 = arith.constant 0 : i32
    return %arg0, %arg1, %c0_i32 : i32, i32, i32
  }
}

</mosaic_0001>

<llo_original>
// kernel: down_pallas.1
$region0: #{down_pallas.1}
  #allocation0 [shape = 'u32[]', space=smem, size = 0x4, offset = 0x4, fixed_abs, tag = 'smem constant byte address 0x4 - core index']
  #allocation1 [shape = 'u32[144,128]{1,0:T(1,128)}', space=vmem, size = 0x12000, scoped, tag = 'internal scratch']
  #allocation2 [shape = 'f32[8,8,512]{2,1,0:T(8,128)}', space=vmem, size = 0x20000, scoped, tag = 'scratch operand']
  #allocation3 [shape = 'f32[8,8,512]{2,1,0:T(8,128)}', space=vmem, size = 0x20000, scoped, tag = 'scratch operand']
  %s0 = inlined_call_operand.vmem [shape: bf16[2,4,8,9,128], index: 0, kind: input, shape index: {}]
  %s1 = inlined_call_operand.vmem [shape: bf16[2,4,1,9,128], index: 1, kind: input, shape index: {}]
  %s2 = inlined_call_operand.vmem [shape: bf16[4,512,128], index: 2, kind: input, shape index: {}]
  %s3 = inlined_call_operand.vmem [shape: f32[1,128], index: 3, kind: input, shape index: {}]
  %s4 = inlined_call_operand.vmem [shape: f32[2,64,128], index: 4, kind: output, shape index: {}]
  %s5 = sld [smem:[#allocation0]]
  $region49: #{down_pallas.1} parent=0
    _
  %s7 = ssub.s32 1, %s5
  %s8 = scalar_select 0, %s7, %s5
  loop: start=0, step=1, limit=4
  $region2: #{down_pallas.1} parent=0 // loop_pre_header
    _
  $region3: #{down_pallas.1} parent=0 // loop_header
    %s10 = sphi 0, %s14
    %p11 = scmp.ge.s32.totalorder %s10, 4
    %s17 = sphi 0, %s29
    %s18 = sphi 0, %s25
    %s19 = sphi 0, %s17
    %s20 = sphi 0, %s18
    %s21 = sphi 0, %s19
    %s22 = sphi 0, %s20
    %s34 = sphi 0, %s36
    %s37 = sphi 0, %s34
    %s38 = sphi 0, %s37
    %s54 = sphi 0, %s38
    %s62 = sphi 0, %s64
    %s65 = sphi 0, %s62
    %s66 = sphi 0, %s65
    %s82 = sphi 0, %s66
    %s86 = sphi 0, %s86
    %s88 = sphi 0, %s86
    %s89 = sphi 0, %s88
    %s103 = sphi 0, %s89
    %s107 = sphi 0, %s107
    %s109 = sphi 0, %s107
    %s110 = sphi 0, %s109
    %s124 = sphi 0, %s110
    %s132 = sphi 0, %s134
    %s135 = sphi 0, %s132
    %s136 = sphi 0, %s135
    %s152 = sphi 0, %s136
  $region4: #{down_pallas.1} parent=0 // loop_header_branch
    %13 = sbr.rel (%p11) target = $region8
  $region5: #{down_pallas.1} parent=0 // loop_body
    %s15 = ssub.s32 %s10, 1
    %s16 = ssub.s32 %s10, 2
    %s23 = sadd.s32 1, %s18
    %p24 = scmp.ge.s32.totalorder %s23, 1
    %s25 = scalar_select %p24, 0, %s23
    %s26 = sadd.s32 1, %s17
    %s27 = scalar_select %p24, %s26, %s17
    %p28 = scmp.ge.s32.totalorder %s27, 2
    %s29 = scalar_select %p28, 0, %s27
    %s30 = ssub.s32 %s17, %s29
    %s31 = ssub.s32 %s18, %s25
    %s32 = sor.u32 %s30, %s31
    %p33 = scmp.eq.s32.totalorder %s32, 0
    %s35 = sadd.s32 %s34, 1
    %s36 = scalar_select %p33, %s34, %s35
    %p39 = pneg %p33
    %p40 = scmp.eq.s32.totalorder %s10, 1
    %p41 = por %p39, %p40
    %p42 = scmp.ne.s32.totalorder %s34, %s37
    %p43 = scmp.eq.s32.totalorder %s10, 0
    %p44 = por %p42, %p43
    %p45 = scmp.ne.s32.totalorder %s34, %s37
    %p46 = scmp.eq.s32.totalorder %s15, 1
    %p47 = por %p45, %p46
    %p48 = scmp.ne.s32.totalorder %s37, %s38
    %p49 = scmp.eq.s32.totalorder %s15, 0
    %p50 = por %p48, %p49
    %p51 = scmp.ne.s32.totalorder %s37, %s38
    %p52 = scmp.eq.s32.totalorder %s16, 1
    %p53 = por %p51, %p52
    %p55 = scmp.ne.s32.totalorder %s38, %s54
    %p56 = scmp.eq.s32.totalorder %s16, 0
    %p57 = por %p55, %p56
    %s58 = ssub.s32 %s17, %s29
    %s59 = ssub.s32 %s18, %s25
    %s60 = sor.u32 %s58, %s59
    %p61 = scmp.eq.s32.totalorder %s60, 0
    %s63 = sadd.s32 %s62, 1
    %s64 = scalar_select %p61, %s62, %s63
    %p67 = pneg %p61
    %p68 = scmp.eq.s32.totalorder %s10, 1
    %p69 = por %p67, %p68
    %p70 = scmp.ne.s32.totalorder %s62, %s65
    %p71 = scmp.eq.s32.totalorder %s10, 0
    %p72 = por %p70, %p71
    %p73 = scmp.ne.s32.totalorder %s62, %s65
    %p74 = scmp.eq.s32.totalorder %s15, 1
    %p75 = por %p73, %p74
    %p76 = scmp.ne.s32.totalorder %s65, %s66
    %p77 = scmp.eq.s32.totalorder %s15, 0
    %p78 = por %p76, %p77
    %p79 = scmp.ne.s32.totalorder %s65, %s66
    %p80 = scmp.eq.s32.totalorder %s16, 1
    %p81 = por %p79, %p80
    %p83 = scmp.ne.s32.totalorder %s66, %s82
    %p84 = scmp.eq.s32.totalorder %s16, 0
    %p85 = por %p83, %p84
    %s87 = sadd.s32 %s86, 1
    %p90 = scmp.eq.s32.totalorder %s10, 1
    %p91 = scmp.ne.s32.totalorder %s86, %s88
    %p92 = scmp.eq.s32.totalorder %s10, 0
    %p93 = por %p91, %p92
    %p94 = scmp.ne.s32.totalorder %s86, %s88
    %p95 = scmp.eq.s32.totalorder %s15, 1
    %p96 = por %p94, %p95
    %p97 = scmp.ne.s32.totalorder %s88, %s89
    %p98 = scmp.eq.s32.totalorder %s15, 0
    %p99 = por %p97, %p98
    %p100 = scmp.ne.s32.totalorder %s88, %s89
    %p101 = scmp.eq.s32.totalorder %s16, 1
    %p102 = por %p100, %p101
    %p104 = scmp.ne.s32.totalorder %s89, %s103
    %p105 = scmp.eq.s32.totalorder %s16, 0
    %p106 = por %p104, %p105
    %s108 = sadd.s32 %s107, 1
    %p111 = scmp.eq.s32.totalorder %s10, 1
    %p112 = scmp.ne.s32.totalorder %s107, %s109
    %p113 = scmp.eq.s32.totalorder %s10, 0
    %p114 = por %p112, %p113
    %p115 = scmp.ne.s32.totalorder %s107, %s109
    %p116 = scmp.eq.s32.totalorder %s15, 1
    %p117 = por %p115, %p116
    %p118 = scmp.ne.s32.totalorder %s109, %s110
    %p119 = scmp.eq.s32.totalorder %s15, 0
    %p120 = por %p118, %p119
    %p121 = scmp.ne.s32.totalorder %s109, %s110
    %p122 = scmp.eq.s32.totalorder %s16, 1
    %p123 = por %p121, %p122
    %p125 = scmp.ne.s32.totalorder %s110, %s124
    %p126 = scmp.eq.s32.totalorder %s16, 0
    %p127 = por %p125, %p126
    %s128 = ssub.s32 %s17, %s29
    %s129 = ssub.s32 %s18, %s25
    %s130 = sor.u32 %s128, %s129
    %p131 = scmp.eq.s32.totalorder %s130, 0
    %s133 = sadd.s32 %s132, 1
    %s134 = scalar_select %p131, %s132, %s133
    %p137 = pneg %p131
    %p138 = scmp.eq.s32.totalorder %s10, 1
    %p139 = por %p137, %p138
    %p140 = scmp.ne.s32.totalorder %s132, %s135
    %p141 = scmp.eq.s32.totalorder %s10, 0
    %p142 = por %p140, %p141
    %p143 = scmp.ne.s32.totalorder %s132, %s135
    %p144 = scmp.eq.s32.totalorder %s15, 1
    %p145 = por %p143, %p144
    %p146 = scmp.ne.s32.totalorder %s135, %s136
    %p147 = scmp.eq.s32.totalorder %s15, 0
    %p148 = por %p146, %p147
    %p149 = scmp.ne.s32.totalorder %s135, %s136
    %p150 = scmp.eq.s32.totalorder %s16, 1
    %p151 = por %p149, %p150
    %p153 = scmp.ne.s32.totalorder %s136, %s152
    %p154 = scmp.eq.s32.totalorder %s16, 0
    %p155 = por %p153, %p154
    %p156 = scmp.le.s32.totalorder 1, %s10
    %p157 = scmp.lt.s32.totalorder %s10, 3
    %p158 = pnand %p156, %p157
    %p159 = pneg %p158
    // Predicated region
    $region9: #{down_pallas.1} parent=5 // pred_check
      _
    $region10: #{down_pallas.1} parent=5 // pred_check_branch
      %161 = sbr.rel (%p158) target = $region12
    $region11: #{down_pallas.1} parent=5 // pred_region
      %s162 = ssub.s32 %s10, 1
      // Predicated region
      $region13: #{down_pallas.1} parent=11 // pred_check
        %p163 = pneg %p99
      $region14: #{down_pallas.1} parent=11 // pred_check_branch
        %165 = sbr.rel (%p163) target = $region16
      $region15: #{down_pallas.1} parent=11 // pred_region
        _
      $region16: #{down_pallas.1} parent=11 // pred_fallthru
        _
      // Predicated region
      $region17: #{down_pallas.1} parent=11 // pred_check
        %p166 = pneg %p120
      $region18: #{down_pallas.1} parent=11 // pred_check_branch
        %168 = sbr.rel (%p166) target = $region20
      $region19: #{down_pallas.1} parent=11 // pred_region
        _
      $region20: #{down_pallas.1} parent=11 // pred_fallthru
        _
    $region12: #{down_pallas.1} parent=5 // pred_fallthru
      _
    %p169 = scmp.lt.s32.totalorder %s10, 2
    // Predicated region
    $region21: #{down_pallas.1} parent=5 // pred_check
      %p170 = pneg %p169
    $region22: #{down_pallas.1} parent=5 // pred_check_branch
      %172 = sbr.rel (%p170) target = $region24
    $region23: #{down_pallas.1} parent=5 // pred_region
      // Predicated region
      $region25: #{down_pallas.1} parent=23 // pred_check
        %p173 = pneg %p44
      $region26: #{down_pallas.1} parent=23 // pred_check_branch
        %175 = sbr.rel (%p173) target = $region28
      $region27: #{down_pallas.1} parent=23 // pred_region
        %s176 = smul.u32 8, %s18
        %p177 = scmp.lt.s32.totalorder %s17, 1
        %s178 = scalar_select %p177, %s17, 1
        %p179 = scmp.lt.s32.totalorder %s176, 7
        %s180 = scalar_select %p179, %s176, 7
        %s181 = smul.addr %s180, 2
        %s182 = smul.addr %s178, 64
        %s183 = sadd.s32 %s181, %s182
        %s184 = smul.addr %s183, 4
        %s185 = scalar_lea.vmem %s0, %s184
        %s186 = smul.u32 8, %s18
      $region28: #{down_pallas.1} parent=23 // pred_fallthru
        _
      // Predicated region
      $region29: #{down_pallas.1} parent=23 // pred_check
        %p187 = pneg %p72
      $region30: #{down_pallas.1} parent=23 // pred_check_branch
        %189 = sbr.rel (%p187) target = $region32
      $region31: #{down_pallas.1} parent=23 // pred_region
        %p190 = scmp.lt.s32.totalorder %s17, 1
        %s191 = scalar_select %p190, %s17, 1
        %p192 = scmp.lt.s32.totalorder %s18, 0
        %s193 = scalar_select %p192, %s18, 0
        %s194 = smul.addr %s193, 2
        %s195 = smul.addr %s191, 8
        %s196 = sadd.s32 %s194, %s195
        %s197 = smul.addr %s196, 4
        %s198 = scalar_lea.vmem %s1, %s197
      $region32: #{down_pallas.1} parent=23 // pred_fallthru
        _
    $region24: #{down_pallas.1} parent=5 // pred_fallthru
      _
    %p199 = scmp.le.s32.totalorder 1, %s10
    %p200 = scmp.lt.s32.totalorder %s10, 3
    %p201 = pnand %p199, %p200
    %p202 = pneg %p201
    // Predicated region
    $region33: #{down_pallas.1} parent=5 // pred_check
      _
    $region34: #{down_pallas.1} parent=5 // pred_check_branch
      %204 = sbr.rel (%p201) target = $region36
    $region35: #{down_pallas.1} parent=5 // pred_region
      %s205 = ssub.s32 %s10, 1
      %s206 = smul.u32 8, %s20
      %p207 = scmp.lt.s32.totalorder %s19, 1
      %s208 = scalar_select %p207, %s19, 1
      %p209 = scmp.lt.s32.totalorder %s206, 7
      %s210 = scalar_select %p209, %s206, 7
      %s211 = smul.addr %s210, 2
      %s212 = smul.addr %s208, 64
      %s213 = sadd.s32 %s211, %s212
      %s214 = smul.addr %s213, 4
      %s215 = scalar_lea.vmem %s0, %s214
      %p216 = pneg %p50
      %p217 = pneg %p47
      %p218 = scmp.lt.s32.totalorder %s19, 1
      %s219 = scalar_select %p218, %s19, 1
      %p220 = scmp.lt.s32.totalorder %s20, 0
      %s221 = scalar_select %p220, %s20, 0
      %s222 = smul.addr %s221, 2
      %s223 = smul.addr %s219, 8
      %s224 = sadd.s32 %s222, %s223
      %s225 = smul.addr %s224, 4
      %s226 = scalar_lea.vmem %s1, %s225
      %p227 = pneg %p78
      %p228 = pneg %p75
      %p229 = pneg %p99
      %p230 = pneg %p96
      %p231 = pneg %p120
      %p232 = pneg %p117
      %p233 = pneg %p148
      %p234 = pneg %p145
      %s235 = smul.u32 8, %s20
      %p236 = scmp.lt.s32.totalorder %s19, 1
      %s237 = scalar_select %p236, %s19, 1
      %p238 = scmp.lt.s32.totalorder %s235, 7
      %s239 = scalar_select %p238, %s235, 7
      %s240 = smul.addr %s237, 8
      %s241 = sadd.s32 %s239, %s240
      %s242 = smul.addr %s241, 8
      %s243 = scalar_lea.vmem %s4, %s242
      %s244 = smul.u32 8, %s20
      %p245 = scmp.lt.s32.totalorder %s19, 1
      %s246 = scalar_select %p245, %s19, 1
      %p247 = scmp.lt.s32.totalorder %s244, 7
      %s248 = scalar_select %p247, %s244, 7
      %s249 = smul.addr %s248, 2
      %s250 = smul.addr %s246, 64
      %s251 = sadd.s32 %s249, %s250
      %s252 = smul.addr %s251, 4
      %s253 = scalar_lea.vmem %s0, %s252
      %s254 = smul.u32 8, %s20
      %p255 = scmp.lt.s32.totalorder %s19, 1
      %s256 = scalar_select %p255, %s19, 1
      %p257 = scmp.lt.s32.totalorder %s20, 0
      %s258 = scalar_select %p257, %s20, 0
      %s259 = smul.addr %s258, 2
      %s260 = smul.addr %s256, 8
      %s261 = sadd.s32 %s259, %s260
      %s262 = smul.addr %s261, 4
      %s263 = scalar_lea.vmem %s1, %s262
      %s264 = smul.u32 8, %s20
      %p265 = scmp.lt.s32.totalorder %s19, 1
      %s266 = scalar_select %p265, %s19, 1
      %p267 = scmp.lt.s32.totalorder %s264, 7
      %s268 = scalar_select %p267, %s264, 7
      %s269 = smul.addr %s266, 8
      %s270 = sadd.s32 %s268, %s269
      %s271 = smul.addr %s270, 8
      %s272 = scalar_lea.vmem %s4, %s271
      %s273 = smul.u32 8, %s20
      %v275 = vld [vmem:[%s253] sm:$0xf]
      %v276 = vld [vmem:[%s253 + $0x8] sm:$0xf]
      %v277 = vld [vmem:[%s253 + $0x10] sm:$0xf]
      %v278 = vld [vmem:[%s253 + $0x18] sm:$0xf]
      %v279 = vld [vmem:[%s253 + $0x20] sm:$0xf]
      %v280 = vld [vmem:[%s253 + $0x28] sm:$0xf]
      %v281 = vld [vmem:[%s253 + $0x30] sm:$0xf]
      %v282 = vld [vmem:[%s253 + $0x38] sm:$0xf]
      %v283 = vunpack.c.l.bf16 %v275
      %v284 = vunpack.c.l.bf16 %v276
      %v285 = vunpack.c.l.bf16 %v277
      %v286 = vunpack.c.l.bf16 %v278
      %v287 = vunpack.c.l.bf16 %v279
      %v288 = vunpack.c.l.bf16 %v280
      %v289 = vunpack.c.l.bf16 %v281
      %v290 = vunpack.c.l.bf16 %v282
      %291 = vst [vmem:[#allocation2] sm:$0xff] %v283
      %292 = vst [vmem:[#allocation2 + $0x20] sm:$0xff] %v284
      %293 = vst [vmem:[#allocation2 + $0x40] sm:$0xff] %v285
      %294 = vst [vmem:[#allocation2 + $0x60] sm:$0xff] %v286
      %295 = vst [vmem:[#allocation2 + $0x80] sm:$0xff] %v287
      %296 = vst [vmem:[#allocation2 + $0xa0] sm:$0xff] %v288
      %297 = vst [vmem:[#allocation2 + $0xc0] sm:$0xff] %v289
      %298 = vst [vmem:[#allocation2 + $0xe0] sm:$0xff] %v290
      %s299 = scalar_lea.vmem %s253, 64
      %v300 = vld [vmem:[%s299] sm:$0xf]
      %v301 = vld [vmem:[%s299 + $0x8] sm:$0xf]
      %v302 = vld [vmem:[%s299 + $0x10] sm:$0xf]
      %v303 = vld [vmem:[%s299 + $0x18] sm:$0xf]
      %v304 = vld [vmem:[%s299 + $0x20] sm:$0xf]
      %v305 = vld [vmem:[%s299 + $0x28] sm:$0xf]
      %v306 = vld [vmem:[%s299 + $0x30] sm:$0xf]
      %v307 = vld [vmem:[%s299 + $0x38] sm:$0xf]
      %v308 = vunpack.c.l.bf16 %v300
      %v309 = vunpack.c.l.bf16 %v301
      %v310 = vunpack.c.l.bf16 %v302
      %v311 = vunpack.c.l.bf16 %v303
      %v312 = vunpack.c.l.bf16 %v304
      %v313 = vunpack.c.l.bf16 %v305
      %v314 = vunpack.c.l.bf16 %v306
      %v315 = vunpack.c.l.bf16 %v307
      %316 = vst [vmem:[#allocation2 + $0x8] sm:$0xff] %v308
      %317 = vst [vmem:[#allocation2 + $0x28] sm:$0xff] %v309
      %318 = vst [vmem:[#allocation2 + $0x48] sm:$0xff] %v310
      %319 = vst [vmem:[#allocation2 + $0x68] sm:$0xff] %v311
      %320 = vst [vmem:[#allocation2 + $0x88] sm:$0xff] %v312
      %321 = vst [vmem:[#allocation2 + $0xa8] sm:$0xff] %v313
      %322 = vst [vmem:[#allocation2 + $0xc8] sm:$0xff] %v314
      %323 = vst [vmem:[#allocation2 + $0xe8] sm:$0xff] %v315
      %v324 = vld [vmem:[%s253] sm:$0xf]
      %v325 = vld [vmem:[%s253 + $0x4] sm:$0x1]
      %v326 = vld [vmem:[%s253 + $0x8] sm:$0xf]
      %v327 = vld [vmem:[%s253 + $0xc] sm:$0x1]
      %v328 = vld [vmem:[%s253 + $0x10] sm:$0xf]
      %v329 = vld [vmem:[%s253 + $0x14] sm:$0x1]
      %v330 = vld [vmem:[%s253 + $0x18] sm:$0xf]
      %v331 = vld [vmem:[%s253 + $0x1c] sm:$0x1]
      %v332 = vld [vmem:[%s253 + $0x20] sm:$0xf]
      %v333 = vld [vmem:[%s253 + $0x24] sm:$0x1]
      %v334 = vld [vmem:[%s253 + $0x28] sm:$0xf]
      %v335 = vld [vmem:[%s253 + $0x2c] sm:$0x1]
      %v336 = vld [vmem:[%s253 + $0x30] sm:$0xf]
      %v337 = vld [vmem:[%s253 + $0x34] sm:$0x1]
      %v338 = vld [vmem:[%s253 + $0x38] sm:$0xf]
      %v339 = vld [vmem:[%s253 + $0x3c] sm:$0x1]
      %v340 = vunpack.c.l.bf16 %v324
      %v341 = vunpack.c.l.bf16 %v325
      %v342 = vunpack.c.l.bf16 %v326
      %v343 = vunpack.c.l.bf16 %v327
      %v344 = vunpack.c.l.bf16 %v328
      %v345 = vunpack.c.l.bf16 %v329
      %v346 = vunpack.c.l.bf16 %v330
      %v347 = vunpack.c.l.bf16 %v331
      %v348 = vunpack.c.l.bf16 %v332
      %v349 = vunpack.c.l.bf16 %v333
      %v350 = vunpack.c.l.bf16 %v334
      %v351 = vunpack.c.l.bf16 %v335
      %v352 = vunpack.c.l.bf16 %v336
      %v353 = vunpack.c.l.bf16 %v337
      %v354 = vunpack.c.l.bf16 %v338
      %v355 = vunpack.c.l.bf16 %v339
      %vm372 = vcmask 1046528
      %v373 = vrot.slane %v340, 1
      %v374 = vrot.slane %v341, 1
      %v375 = vsel %vm372, %v373, %v374
      %v376 = vrot.slane %v342, 1
      %v377 = vrot.slane %v343, 1
      %v378 = vsel %vm372, %v376, %v377
      %v379 = vrot.slane %v344, 1
      %v380 = vrot.slane %v345, 1
      %v381 = vsel %vm372, %v379, %v380
      %v382 = vrot.slane %v346, 1
      %v383 = vrot.slane %v347, 1
      %v384 = vsel %vm372, %v382, %v383
      %v385 = vrot.slane %v348, 1
      %v386 = vrot.slane %v349, 1
      %v387 = vsel %vm372, %v385, %v386
      %v388 = vrot.slane %v350, 1
      %v389 = vrot.slane %v351, 1
      %v390 = vsel %vm372, %v388, %v389
      %v391 = vrot.slane %v352, 1
      %v392 = vrot.slane %v353, 1
      %v393 = vsel %vm372, %v391, %v392
      %v394 = vrot.slane %v354, 1
      %v395 = vrot.slane %v355, 1
      %v396 = vsel %vm372, %v394, %v395
      %405 = vst [vmem:[#allocation2 + $0x10] sm:$0xff] %v375
      %406 = vst [vmem:[#allocation2 + $0x30] sm:$0xff] %v378
      %407 = vst [vmem:[#allocation2 + $0x50] sm:$0xff] %v381
      %408 = vst [vmem:[#allocation2 + $0x70] sm:$0xff] %v384
      %409 = vst [vmem:[#allocation2 + $0x90] sm:$0xff] %v387
      %410 = vst [vmem:[#allocation2 + $0xb0] sm:$0xff] %v390
      %411 = vst [vmem:[#allocation2 + $0xd0] sm:$0xff] %v393
      %412 = vst [vmem:[#allocation2 + $0xf0] sm:$0xff] %v396
      %v413 = vld [vmem:[%s299] sm:$0xf]
      %v414 = vld [vmem:[%s299 + $0x4] sm:$0x1]
      %v415 = vld [vmem:[%s299 + $0x8] sm:$0xf]
      %v416 = vld [vmem:[%s299 + $0xc] sm:$0x1]
      %v417 = vld [vmem:[%s299 + $0x10] sm:$0xf]
      %v418 = vld [vmem:[%s299 + $0x14] sm:$0x1]
      %v419 = vld [vmem:[%s299 + $0x18] sm:$0xf]
      %v420 = vld [vmem:[%s299 + $0x1c] sm:$0x1]
      %v421 = vld [vmem:[%s299 + $0x20] sm:$0xf]
      %v422 = vld [vmem:[%s299 + $0x24] sm:$0x1]
      %v423 = vld [vmem:[%s299 + $0x28] sm:$0xf]
      %v424 = vld [vmem:[%s299 + $0x2c] sm:$0x1]
      %v425 = vld [vmem:[%s299 + $0x30] sm:$0xf]
      %v426 = vld [vmem:[%s299 + $0x34] sm:$0x1]
      %v427 = vld [vmem:[%s299 + $0x38] sm:$0xf]
      %v428 = vld [vmem:[%s299 + $0x3c] sm:$0x1]
      %v429 = vunpack.c.l.bf16 %v413
      %v430 = vunpack.c.l.bf16 %v414
      %v431 = vunpack.c.l.bf16 %v415
      %v432 = vunpack.c.l.bf16 %v416
      %v433 = vunpack.c.l.bf16 %v417
      %v434 = vunpack.c.l.bf16 %v418
      %v435 = vunpack.c.l.bf16 %v419
      %v436 = vunpack.c.l.bf16 %v420
      %v437 = vunpack.c.l.bf16 %v421
      %v438 = vunpack.c.l.bf16 %v422
      %v439 = vunpack.c.l.bf16 %v423
      %v440 = vunpack.c.l.bf16 %v424
      %v441 = vunpack.c.l.bf16 %v425
      %v442 = vunpack.c.l.bf16 %v426
      %v443 = vunpack.c.l.bf16 %v427
      %v444 = vunpack.c.l.bf16 %v428
      %v461 = vrot.slane %v429, 1
      %v462 = vrot.slane %v430, 1
      %v463 = vsel %vm372, %v461, %v462
      %v464 = vrot.slane %v431, 1
      %v465 = vrot.slane %v432, 1
      %v466 = vsel %vm372, %v464, %v465
      %v467 = vrot.slane %v433, 1
      %v468 = vrot.slane %v434, 1
      %v469 = vsel %vm372, %v467, %v468
      %v470 = vrot.slane %v435, 1
      %v471 = vrot.slane %v436, 1
      %v472 = vsel %vm372, %v470, %v471
      %v473 = vrot.slane %v437, 1
      %v474 = vrot.slane %v438, 1
      %v475 = vsel %vm372, %v473, %v474
      %v476 = vrot.slane %v439, 1
      %v477 = vrot.slane %v440, 1
      %v478 = vsel %vm372, %v476, %v477
      %v479 = vrot.slane %v441, 1
      %v480 = vrot.slane %v442, 1
      %v481 = vsel %vm372, %v479, %v480
      %v482 = vrot.slane %v443, 1
      %v483 = vrot.slane %v444, 1
      %v484 = vsel %vm372, %v482, %v483
      %493 = vst [vmem:[#allocation2 + $0x18] sm:$0xff] %v463
      %494 = vst [vmem:[#allocation2 + $0x38] sm:$0xff] %v466
      %495 = vst [vmem:[#allocation2 + $0x58] sm:$0xff] %v469
      %496 = vst [vmem:[#allocation2 + $0x78] sm:$0xff] %v472
      %497 = vst [vmem:[#allocation2 + $0x98] sm:$0xff] %v475
      %498 = vst [vmem:[#allocation2 + $0xb8] sm:$0xff] %v478
      %499 = vst [vmem:[#allocation2 + $0xd8] sm:$0xff] %v481
      %500 = vst [vmem:[#allocation2 + $0xf8] sm:$0xff] %v484
      %s501 = scalar_lea.vmem %s253, 128
      %v502 = vld [vmem:[%s501] sm:$0xf]
      %v503 = vld [vmem:[%s501 + $0x8] sm:$0xf]
      %v504 = vld [vmem:[%s501 + $0x10] sm:$0xf]
      %v505 = vld [vmem:[%s501 + $0x18] sm:$0xf]
      %v506 = vld [vmem:[%s501 + $0x20] sm:$0xf]
      %v507 = vld [vmem:[%s501 + $0x28] sm:$0xf]
      %v508 = vld [vmem:[%s501 + $0x30] sm:$0xf]
      %v509 = vld [vmem:[%s501 + $0x38] sm:$0xf]
      %v510 = vunpack.c.l.bf16 %v502
      %v511 = vunpack.c.l.bf16 %v503
      %v512 = vunpack.c.l.bf16 %v504
      %v513 = vunpack.c.l.bf16 %v505
      %v514 = vunpack.c.l.bf16 %v506
      %v515 = vunpack.c.l.bf16 %v507
      %v516 = vunpack.c.l.bf16 %v508
      %v517 = vunpack.c.l.bf16 %v509
      %518 = vst [vmem:[#allocation3] sm:$0xff] %v510
      %519 = vst [vmem:[#allocation3 + $0x20] sm:$0xff] %v511
      %520 = vst [vmem:[#allocation3 + $0x40] sm:$0xff] %v512
      %521 = vst [vmem:[#allocation3 + $0x60] sm:$0xff] %v513
      %522 = vst [vmem:[#allocation3 + $0x80] sm:$0xff] %v514
      %523 = vst [vmem:[#allocation3 + $0xa0] sm:$0xff] %v515
      %524 = vst [vmem:[#allocation3 + $0xc0] sm:$0xff] %v516
      %525 = vst [vmem:[#allocation3 + $0xe0] sm:$0xff] %v517
      %s526 = scalar_lea.vmem %s253, 192
      %v527 = vld [vmem:[%s526] sm:$0xf]
      %v528 = vld [vmem:[%s526 + $0x8] sm:$0xf]
      %v529 = vld [vmem:[%s526 + $0x10] sm:$0xf]
      %v530 = vld [vmem:[%s526 + $0x18] sm:$0xf]
      %v531 = vld [vmem:[%s526 + $0x20] sm:$0xf]
      %v532 = vld [vmem:[%s526 + $0x28] sm:$0xf]
      %v533 = vld [vmem:[%s526 + $0x30] sm:$0xf]
      %v534 = vld [vmem:[%s526 + $0x38] sm:$0xf]
      %v535 = vunpack.c.l.bf16 %v527
      %v536 = vunpack.c.l.bf16 %v528
      %v537 = vunpack.c.l.bf16 %v529
      %v538 = vunpack.c.l.bf16 %v530
      %v539 = vunpack.c.l.bf16 %v531
      %v540 = vunpack.c.l.bf16 %v532
      %v541 = vunpack.c.l.bf16 %v533
      %v542 = vunpack.c.l.bf16 %v534
      %543 = vst [vmem:[#allocation3 + $0x8] sm:$0xff] %v535
      %544 = vst [vmem:[#allocation3 + $0x28] sm:$0xff] %v536
      %545 = vst [vmem:[#allocation3 + $0x48] sm:$0xff] %v537
      %546 = vst [vmem:[#allocation3 + $0x68] sm:$0xff] %v538
      %547 = vst [vmem:[#allocation3 + $0x88] sm:$0xff] %v539
      %548 = vst [vmem:[#allocation3 + $0xa8] sm:$0xff] %v540
      %549 = vst [vmem:[#allocation3 + $0xc8] sm:$0xff] %v541
      %550 = vst [vmem:[#allocation3 + $0xe8] sm:$0xff] %v542
      %v551 = vld [vmem:[%s501] sm:$0xf]
      %v552 = vld [vmem:[%s501 + $0x4] sm:$0x1]
      %v553 = vld [vmem:[%s501 + $0x8] sm:$0xf]
      %v554 = vld [vmem:[%s501 + $0xc] sm:$0x1]
      %v555 = vld [vmem:[%s501 + $0x10] sm:$0xf]
      %v556 = vld [vmem:[%s501 + $0x14] sm:$0x1]
      %v557 = vld [vmem:[%s501 + $0x18] sm:$0xf]
      %v558 = vld [vmem:[%s501 + $0x1c] sm:$0x1]
      %v559 = vld [vmem:[%s501 + $0x20] sm:$0xf]
      %v560 = vld [vmem:[%s501 + $0x24] sm:$0x1]
      %v561 = vld [vmem:[%s501 + $0x28] sm:$0xf]
      %v562 = vld [vmem:[%s501 + $0x2c] sm:$0x1]
      %v563 = vld [vmem:[%s501 + $0x30] sm:$0xf]
      %v564 = vld [vmem:[%s501 + $0x34] sm:$0x1]
      %v565 = vld [vmem:[%s501 + $0x38] sm:$0xf]
      %v566 = vld [vmem:[%s501 + $0x3c] sm:$0x1]
      %v567 = vunpack.c.l.bf16 %v551
      %v568 = vunpack.c.l.bf16 %v552
      %v569 = vunpack.c.l.bf16 %v553
      %v570 = vunpack.c.l.bf16 %v554
      %v571 = vunpack.c.l.bf16 %v555
      %v572 = vunpack.c.l.bf16 %v556
      %v573 = vunpack.c.l.bf16 %v557
      %v574 = vunpack.c.l.bf16 %v558
      %v575 = vunpack.c.l.bf16 %v559
      %v576 = vunpack.c.l.bf16 %v560
      %v577 = vunpack.c.l.bf16 %v561
      %v578 = vunpack.c.l.bf16 %v562
      %v579 = vunpack.c.l.bf16 %v563
      %v580 = vunpack.c.l.bf16 %v564
      %v581 = vunpack.c.l.bf16 %v565
      %v582 = vunpack.c.l.bf16 %v566
      %v599 = vrot.slane %v567, 1
      %v600 = vrot.slane %v568, 1
      %v601 = vsel %vm372, %v599, %v600
      %v602 = vrot.slane %v569, 1
      %v603 = vrot.slane %v570, 1
      %v604 = vsel %vm372, %v602, %v603
      %v605 = vrot.slane %v571, 1
      %v606 = vrot.slane %v572, 1
      %v607 = vsel %vm372, %v605, %v606
      %v608 = vrot.slane %v573, 1
      %v609 = vrot.slane %v574, 1
      %v610 = vsel %vm372, %v608, %v609
      %v611 = vrot.slane %v575, 1
      %v612 = vrot.slane %v576, 1
      %v613 = vsel %vm372, %v611, %v612
      %v614 = vrot.slane %v577, 1
      %v615 = vrot.slane %v578, 1
      %v616 = vsel %vm372, %v614, %v615
      %v617 = vrot.slane %v579, 1
      %v618 = vrot.slane %v580, 1
      %v619 = vsel %vm372, %v617, %v618
      %v620 = vrot.slane %v581, 1
      %v621 = vrot.slane %v582, 1
      %v622 = vsel %vm372, %v620, %v621
      %631 = vst [vmem:[#allocation3 + $0x10] sm:$0xff] %v601
      %632 = vst [vmem:[#allocation3 + $0x30] sm:$0xff] %v604
      %633 = vst [vmem:[#allocation3 + $0x50] sm:$0xff] %v607
      %634 = vst [vmem:[#allocation3 + $0x70] sm:$0xff] %v610
      %635 = vst [vmem:[#allocation3 + $0x90] sm:$0xff] %v613
      %636 = vst [vmem:[#allocation3 + $0xb0] sm:$0xff] %v616
      %637 = vst [vmem:[#allocation3 + $0xd0] sm:$0xff] %v619
      %638 = vst [vmem:[#allocation3 + $0xf0] sm:$0xff] %v622
      %v639 = vld [vmem:[%s526] sm:$0xf]
      %v640 = vld [vmem:[%s526 + $0x4] sm:$0x1]
      %v641 = vld [vmem:[%s526 + $0x8] sm:$0xf]
      %v642 = vld [vmem:[%s526 + $0xc] sm:$0x1]
      %v643 = vld [vmem:[%s526 + $0x10] sm:$0xf]
      %v644 = vld [vmem:[%s526 + $0x14] sm:$0x1]
      %v645 = vld [vmem:[%s526 + $0x18] sm:$0xf]
      %v646 = vld [vmem:[%s526 + $0x1c] sm:$0x1]
      %v647 = vld [vmem:[%s526 + $0x20] sm:$0xf]
      %v648 = vld [vmem:[%s526 + $0x24] sm:$0x1]
      %v649 = vld [vmem:[%s526 + $0x28] sm:$0xf]
      %v650 = vld [vmem:[%s526 + $0x2c] sm:$0x1]
      %v651 = vld [vmem:[%s526 + $0x30] sm:$0xf]
      %v652 = vld [vmem:[%s526 + $0x34] sm:$0x1]
      %v653 = vld [vmem:[%s526 + $0x38] sm:$0xf]
      %v654 = vld [vmem:[%s526 + $0x3c] sm:$0x1]
      %v655 = vunpack.c.l.bf16 %v639
      %v656 = vunpack.c.l.bf16 %v640
      %v657 = vunpack.c.l.bf16 %v641
      %v658 = vunpack.c.l.bf16 %v642
      %v659 = vunpack.c.l.bf16 %v643
      %v660 = vunpack.c.l.bf16 %v644
      %v661 = vunpack.c.l.bf16 %v645
      %v662 = vunpack.c.l.bf16 %v646
      %v663 = vunpack.c.l.bf16 %v647
      %v664 = vunpack.c.l.bf16 %v648
      %v665 = vunpack.c.l.bf16 %v649
      %v666 = vunpack.c.l.bf16 %v650
      %v667 = vunpack.c.l.bf16 %v651
      %v668 = vunpack.c.l.bf16 %v652
      %v669 = vunpack.c.l.bf16 %v653
      %v670 = vunpack.c.l.bf16 %v654
      %v687 = vrot.slane %v655, 1
      %v688 = vrot.slane %v656, 1
      %v689 = vsel %vm372, %v687, %v688
      %v690 = vrot.slane %v657, 1
      %v691 = vrot.slane %v658, 1
      %v692 = vsel %vm372, %v690, %v691
      %v693 = vrot.slane %v659, 1
      %v694 = vrot.slane %v660, 1
      %v695 = vsel %vm372, %v693, %v694
      %v696 = vrot.slane %v661, 1
      %v697 = vrot.slane %v662, 1
      %v698 = vsel %vm372, %v696, %v697
      %v699 = vrot.slane %v663, 1
      %v700 = vrot.slane %v664, 1
      %v701 = vsel %vm372, %v699, %v700
      %v702 = vrot.slane %v665, 1
      %v703 = vrot.slane %v666, 1
      %v704 = vsel %vm372, %v702, %v703
      %v705 = vrot.slane %v667, 1
      %v706 = vrot.slane %v668, 1
      %v707 = vsel %vm372, %v705, %v706
      %v708 = vrot.slane %v669, 1
      %v709 = vrot.slane %v670, 1
      %v710 = vsel %vm372, %v708, %v709
      %719 = vst [vmem:[#allocation3 + $0x18] sm:$0xff] %v689
      %720 = vst [vmem:[#allocation3 + $0x38] sm:$0xff] %v692
      %721 = vst [vmem:[#allocation3 + $0x58] sm:$0xff] %v695
      %722 = vst [vmem:[#allocation3 + $0x78] sm:$0xff] %v698
      %723 = vst [vmem:[#allocation3 + $0x98] sm:$0xff] %v701
      %724 = vst [vmem:[#allocation3 + $0xb8] sm:$0xff] %v704
      %725 = vst [vmem:[#allocation3 + $0xd8] sm:$0xff] %v707
      %726 = vst [vmem:[#allocation3 + $0xf8] sm:$0xff] %v710
      %v727 = vld [vmem:[#allocation2] sm:$0xff]
      %v728 = vld [vmem:[#allocation2 + $0x8] sm:$0xff]
      %v729 = vld [vmem:[#allocation2 + $0x10] sm:$0xff]
      %v730 = vld [vmem:[#allocation2 + $0x18] sm:$0xff]
      %v731 = vld [vmem:[#allocation2 + $0x20] sm:$0xff]
      %v732 = vld [vmem:[#allocation2 + $0x28] sm:$0xff]
      %v733 = vld [vmem:[#allocation2 + $0x30] sm:$0xff]
      %v734 = vld [vmem:[#allocation2 + $0x38] sm:$0xff]
      %v735 = vld [vmem:[#allocation2 + $0x40] sm:$0xff]
      %v736 = vld [vmem:[#allocation2 + $0x48] sm:$0xff]
      %v737 = vld [vmem:[#allocation2 + $0x50] sm:$0xff]
      %v738 = vld [vmem:[#allocation2 + $0x58] sm:$0xff]
      %v739 = vld [vmem:[#allocation2 + $0x60] sm:$0xff]
      %v740 = vld [vmem:[#allocation2 + $0x68] sm:$0xff]
      %v741 = vld [vmem:[#allocation2 + $0x70] sm:$0xff]
      %v742 = vld [vmem:[#allocation2 + $0x78] sm:$0xff]
      %v743 = vld [vmem:[#allocation2 + $0x80] sm:$0xff]
      %v744 = vld [vmem:[#allocation2 + $0x88] sm:$0xff]
      %v745 = vld [vmem:[#allocation2 + $0x90] sm:$0xff]
      %v746 = vld [vmem:[#allocation2 + $0x98] sm:$0xff]
      %v747 = vld [vmem:[#allocation2 + $0xa0] sm:$0xff]
      %v748 = vld [vmem:[#allocation2 + $0xa8] sm:$0xff]
      %v749 = vld [vmem:[#allocation2 + $0xb0] sm:$0xff]
      %v750 = vld [vmem:[#allocation2 + $0xb8] sm:$0xff]
      %v751 = vld [vmem:[#allocation2 + $0xc0] sm:$0xff]
      %v752 = vld [vmem:[#allocation2 + $0xc8] sm:$0xff]
      %v753 = vld [vmem:[#allocation2 + $0xd0] sm:$0xff]
      %v754 = vld [vmem:[#allocation2 + $0xd8] sm:$0xff]
      %v755 = vld [vmem:[#allocation2 + $0xe0] sm:$0xff]
      %v756 = vld [vmem:[#allocation2 + $0xe8] sm:$0xff]
      %v757 = vld [vmem:[#allocation2 + $0xf0] sm:$0xff]
      %v758 = vld [vmem:[#allocation2 + $0xf8] sm:$0xff]
      %v759 = vpack.c.bf16 %v731, %v727
      %v760 = vpack.c.bf16 %v732, %v728
      %v761 = vpack.c.bf16 %v733, %v729
      %v762 = vpack.c.bf16 %v734, %v730
      %v763 = vpack.c.bf16 %v739, %v735
      %v764 = vpack.c.bf16 %v740, %v736
      %v765 = vpack.c.bf16 %v741, %v737
      %v766 = vpack.c.bf16 %v742, %v738
      %v767 = vpack.c.bf16 %v747, %v743
      %v768 = vpack.c.bf16 %v748, %v744
      %v769 = vpack.c.bf16 %v749, %v745
      %v770 = vpack.c.bf16 %v750, %v746
      %v771 = vpack.c.bf16 %v755, %v751
      %v772 = vpack.c.bf16 %v756, %v752
      %v773 = vpack.c.bf16 %v757, %v753
      %v774 = vpack.c.bf16 %v758, %v754
      %v775 = vld [vmem:[%s2] sm:$0xf]
      %v776 = vld [vmem:[%s2 + $0x4] sm:$0xf]
      %v777 = vld [vmem:[%s2 + $0x8] sm:$0xf]
      %v778 = vld [vmem:[%s2 + $0xc] sm:$0xf]
      %v779 = vld [vmem:[%s2 + $0x10] sm:$0xf]
      %v780 = vld [vmem:[%s2 + $0x14] sm:$0xf]
      %v781 = vld [vmem:[%s2 + $0x18] sm:$0xf]
      %v782 = vld [vmem:[%s2 + $0x1c] sm:$0xf]
      %v783 = vld [vmem:[%s2 + $0x20] sm:$0xf]
      %v784 = vld [vmem:[%s2 + $0x24] sm:$0xf]
      %v785 = vld [vmem:[%s2 + $0x28] sm:$0xf]
      %v786 = vld [vmem:[%s2 + $0x2c] sm:$0xf]
      %v787 = vld [vmem:[%s2 + $0x30] sm:$0xf]
      %v788 = vld [vmem:[%s2 + $0x34] sm:$0xf]
      %v789 = vld [vmem:[%s2 + $0x38] sm:$0xf]
      %v790 = vld [vmem:[%s2 + $0x3c] sm:$0xf]
      %v791 = vld [vmem:[%s2 + $0x40] sm:$0xf]
      %v792 = vld [vmem:[%s2 + $0x44] sm:$0xf]
      %v793 = vld [vmem:[%s2 + $0x48] sm:$0xf]
      %v794 = vld [vmem:[%s2 + $0x4c] sm:$0xf]
      %v795 = vld [vmem:[%s2 + $0x50] sm:$0xf]
      %v796 = vld [vmem:[%s2 + $0x54] sm:$0xf]
      %v797 = vld [vmem:[%s2 + $0x58] sm:$0xf]
      %v798 = vld [vmem:[%s2 + $0x5c] sm:$0xf]
      %v799 = vld [vmem:[%s2 + $0x60] sm:$0xf]
      %v800 = vld [vmem:[%s2 + $0x64] sm:$0xf]
      %v801 = vld [vmem:[%s2 + $0x68] sm:$0xf]
      %v802 = vld [vmem:[%s2 + $0x6c] sm:$0xf]
      %v803 = vld [vmem:[%s2 + $0x70] sm:$0xf]
      %v804 = vld [vmem:[%s2 + $0x74] sm:$0xf]
      %v805 = vld [vmem:[%s2 + $0x78] sm:$0xf]
      %v806 = vld [vmem:[%s2 + $0x7c] sm:$0xf]
      %v807 = vld [vmem:[%s2 + $0x80] sm:$0xf]
      %v808 = vld [vmem:[%s2 + $0x84] sm:$0xf]
      %v809 = vld [vmem:[%s2 + $0x88] sm:$0xf]
      %v810 = vld [vmem:[%s2 + $0x8c] sm:$0xf]
      %v811 = vld [vmem:[%s2 + $0x90] sm:$0xf]
      %v812 = vld [vmem:[%s2 + $0x94] sm:$0xf]
      %v813 = vld [vmem:[%s2 + $0x98] sm:$0xf]
      %v814 = vld [vmem:[%s2 + $0x9c] sm:$0xf]
      %v815 = vld [vmem:[%s2 + $0xa0] sm:$0xf]
      %v816 = vld [vmem:[%s2 + $0xa4] sm:$0xf]
      %v817 = vld [vmem:[%s2 + $0xa8] sm:$0xf]
      %v818 = vld [vmem:[%s2 + $0xac] sm:$0xf]
      %v819 = vld [vmem:[%s2 + $0xb0] sm:$0xf]
      %v820 = vld [vmem:[%s2 + $0xb4] sm:$0xf]
      %v821 = vld [vmem:[%s2 + $0xb8] sm:$0xf]
      %v822 = vld [vmem:[%s2 + $0xbc] sm:$0xf]
      %v823 = vld [vmem:[%s2 + $0xc0] sm:$0xf]
      %v824 = vld [vmem:[%s2 + $0xc4] sm:$0xf]
      %v825 = vld [vmem:[%s2 + $0xc8] sm:$0xf]
      %v826 = vld [vmem:[%s2 + $0xcc] sm:$0xf]
      %v827 = vld [vmem:[%s2 + $0xd0] sm:$0xf]
      %v828 = vld [vmem:[%s2 + $0xd4] sm:$0xf]
      %v829 = vld [vmem:[%s2 + $0xd8] sm:$0xf]
      %v830 = vld [vmem:[%s2 + $0xdc] sm:$0xf]
      %v831 = vld [vmem:[%s2 + $0xe0] sm:$0xf]
      %v832 = vld [vmem:[%s2 + $0xe4] sm:$0xf]
      %v833 = vld [vmem:[%s2 + $0xe8] sm:$0xf]
      %v834 = vld [vmem:[%s2 + $0xec] sm:$0xf]
      %v835 = vld [vmem:[%s2 + $0xf0] sm:$0xf]
      %v836 = vld [vmem:[%s2 + $0xf4] sm:$0xf]
      %v837 = vld [vmem:[%s2 + $0xf8] sm:$0xf]
      %v838 = vld [vmem:[%s2 + $0xfc] sm:$0xf]
      %s839 = scalar_lea.vmem %s253, 8
      %v840 = vld [vmem:[%s839] sm:$0xf]
      %v841 = vld [vmem:[%s839 + $0x8] sm:$0xf]
      %v842 = vld [vmem:[%s839 + $0x10] sm:$0xf]
      %v843 = vld [vmem:[%s839 + $0x18] sm:$0xf]
      %v844 = vld [vmem:[%s839 + $0x20] sm:$0xf]
      %v845 = vld [vmem:[%s839 + $0x28] sm:$0xf]
      %v846 = vld [vmem:[%s839 + $0x30] sm:$0xf]
      %v847 = vunpack.c.l.bf16 %v840
      %v848 = vunpack.c.l.bf16 %v841
      %v849 = vunpack.c.l.bf16 %v842
      %v850 = vunpack.c.l.bf16 %v843
      %v851 = vunpack.c.l.bf16 %v844
      %v852 = vunpack.c.l.bf16 %v845
      %v853 = vunpack.c.l.bf16 %v846
      %854 = vst [vmem:[#allocation2] sm:$0xff] %v847
      %855 = vst [vmem:[#allocation2 + $0x20] sm:$0xff] %v848
      %856 = vst [vmem:[#allocation2 + $0x40] sm:$0xff] %v849
      %857 = vst [vmem:[#allocation2 + $0x60] sm:$0xff] %v850
      %858 = vst [vmem:[#allocation2 + $0x80] sm:$0xff] %v851
      %859 = vst [vmem:[#allocation2 + $0xa0] sm:$0xff] %v852
      %860 = vst [vmem:[#allocation2 + $0xc0] sm:$0xff] %v853
      %v861 = vld [vmem:[%s263] sm:$0xf]
      %v862 = vunpack.c.l.bf16 %v861
      %s863 = scalar_lea.vmem [#allocation2], 224
      %864 = vst [vmem:[%s863] sm:$0xff] %v862
      %s865 = scalar_lea.vmem %s253, 72
      %v866 = vld [vmem:[%s865] sm:$0xf]
      %v867 = vld [vmem:[%s865 + $0x8] sm:$0xf]
      %v868 = vld [vmem:[%s865 + $0x10] sm:$0xf]
      %v869 = vld [vmem:[%s865 + $0x18] sm:$0xf]
      %v870 = vld [vmem:[%s865 + $0x20] sm:$0xf]
      %v871 = vld [vmem:[%s865 + $0x28] sm:$0xf]
      %v872 = vld [vmem:[%s865 + $0x30] sm:$0xf]
      %v873 = vunpack.c.l.bf16 %v866
      %v874 = vunpack.c.l.bf16 %v867
      %v875 = vunpack.c.l.bf16 %v868
      %v876 = vunpack.c.l.bf16 %v869
      %v877 = vunpack.c.l.bf16 %v870
      %v878 = vunpack.c.l.bf16 %v871
      %v879 = vunpack.c.l.bf16 %v872
      %880 = vst [vmem:[#allocation2 + $0x8] sm:$0xff] %v873
      %881 = vst [vmem:[#allocation2 + $0x28] sm:$0xff] %v874
      %882 = vst [vmem:[#allocation2 + $0x48] sm:$0xff] %v875
      %883 = vst [vmem:[#allocation2 + $0x68] sm:$0xff] %v876
      %884 = vst [vmem:[#allocation2 + $0x88] sm:$0xff] %v877
      %885 = vst [vmem:[#allocation2 + $0xa8] sm:$0xff] %v878
      %886 = vst [vmem:[#allocation2 + $0xc8] sm:$0xff] %v879
      %s887 = scalar_lea.vmem %s263, 8
      %v888 = vld [vmem:[%s887] sm:$0xf]
      %v889 = vunpack.c.l.bf16 %v888
      %890 = vst [vmem:[%s863 + $0x8] sm:$0xff] %v889
      %v891 = vld [vmem:[%s839] sm:$0xf]
      %v892 = vld [vmem:[%s839 + $0x4] sm:$0x1]
      %v893 = vld [vmem:[%s839 + $0x8] sm:$0xf]
      %v894 = vld [vmem:[%s839 + $0xc] sm:$0x1]
      %v895 = vld [vmem:[%s839 + $0x10] sm:$0xf]
      %v896 = vld [vmem:[%s839 + $0x14] sm:$0x1]
      %v897 = vld [vmem:[%s839 + $0x18] sm:$0xf]
      %v898 = vld [vmem:[%s839 + $0x1c] sm:$0x1]
      %v899 = vld [vmem:[%s839 + $0x20] sm:$0xf]
      %v900 = vld [vmem:[%s839 + $0x24] sm:$0x1]
      %v901 = vld [vmem:[%s839 + $0x28] sm:$0xf]
      %v902 = vld [vmem:[%s839 + $0x2c] sm:$0x1]
      %v903 = vld [vmem:[%s839 + $0x30] sm:$0xf]
      %v904 = vld [vmem:[%s839 + $0x34] sm:$0x1]
      %v905 = vunpack.c.l.bf16 %v891
      %v906 = vunpack.c.l.bf16 %v892
      %v907 = vunpack.c.l.bf16 %v893
      %v908 = vunpack.c.l.bf16 %v894
      %v909 = vunpack.c.l.bf16 %v895
      %v910 = vunpack.c.l.bf16 %v896
      %v911 = vunpack.c.l.bf16 %v897
      %v912 = vunpack.c.l.bf16 %v898
      %v913 = vunpack.c.l.bf16 %v899
      %v914 = vunpack.c.l.bf16 %v900
      %v915 = vunpack.c.l.bf16 %v901
      %v916 = vunpack.c.l.bf16 %v902
      %v917 = vunpack.c.l.bf16 %v903
      %v918 = vunpack.c.l.bf16 %v904
      %v933 = vrot.slane %v905, 1
      %v934 = vrot.slane %v906, 1
      %v935 = vsel %vm372, %v933, %v934
      %v936 = vrot.slane %v907, 1
      %v937 = vrot.slane %v908, 1
      %v938 = vsel %vm372, %v936, %v937
      %v939 = vrot.slane %v909, 1
      %v940 = vrot.slane %v910, 1
      %v941 = vsel %vm372, %v939, %v940
      %v942 = vrot.slane %v911, 1
      %v943 = vrot.slane %v912, 1
      %v944 = vsel %vm372, %v942, %v943
      %v945 = vrot.slane %v913, 1
      %v946 = vrot.slane %v914, 1
      %v947 = vsel %vm372, %v945, %v946
      %v948 = vrot.slane %v915, 1
      %v949 = vrot.slane %v916, 1
      %v950 = vsel %vm372, %v948, %v949
      %v951 = vrot.slane %v917, 1
      %v952 = vrot.slane %v918, 1
      %v953 = vsel %vm372, %v951, %v952
      %961 = vst [vmem:[#allocation2 + $0x10] sm:$0xff] %v935
      %962 = vst [vmem:[#allocation2 + $0x30] sm:$0xff] %v938
      %963 = vst [vmem:[#allocation2 + $0x50] sm:$0xff] %v941
      %964 = vst [vmem:[#allocation2 + $0x70] sm:$0xff] %v944
      %965 = vst [vmem:[#allocation2 + $0x90] sm:$0xff] %v947
      %966 = vst [vmem:[#allocation2 + $0xb0] sm:$0xff] %v950
      %967 = vst [vmem:[#allocation2 + $0xd0] sm:$0xff] %v953
      %v968 = vld [vmem:[%s263] sm:$0xf]
      %v969 = vld [vmem:[%s263 + $0x4] sm:$0x1]
      %v970 = vunpack.c.l.bf16 %v968
      %v971 = vunpack.c.l.bf16 %v969
      %v974 = vrot.slane %v970, 1
      %v975 = vrot.slane %v971, 1
      %v976 = vsel %vm372, %v974, %v975
      %978 = vst [vmem:[%s863 + $0x10] sm:$0xff] %v976
      %v979 = vld [vmem:[%s865] sm:$0xf]
      %v980 = vld [vmem:[%s865 + $0x4] sm:$0x1]
      %v981 = vld [vmem:[%s865 + $0x8] sm:$0xf]
      %v982 = vld [vmem:[%s865 + $0xc] sm:$0x1]
      %v983 = vld [vmem:[%s865 + $0x10] sm:$0xf]
      %v984 = vld [vmem:[%s865 + $0x14] sm:$0x1]
      %v985 = vld [vmem:[%s865 + $0x18] sm:$0xf]
      %v986 = vld [vmem:[%s865 + $0x1c] sm:$0x1]
      %v987 = vld [vmem:[%s865 + $0x20] sm:$0xf]
      %v988 = vld [vmem:[%s865 + $0x24] sm:$0x1]
      %v989 = vld [vmem:[%s865 + $0x28] sm:$0xf]
      %v990 = vld [vmem:[%s865 + $0x2c] sm:$0x1]
      %v991 = vld [vmem:[%s865 + $0x30] sm:$0xf]
      %v992 = vld [vmem:[%s865 + $0x34] sm:$0x1]
      %v993 = vunpack.c.l.bf16 %v979
      %v994 = vunpack.c.l.bf16 %v980
      %v995 = vunpack.c.l.bf16 %v981
      %v996 = vunpack.c.l.bf16 %v982
      %v997 = vunpack.c.l.bf16 %v983
      %v998 = vunpack.c.l.bf16 %v984
      %v999 = vunpack.c.l.bf16 %v985
      %v1000 = vunpack.c.l.bf16 %v986
      %v1001 = vunpack.c.l.bf16 %v987
      %v1002 = vunpack.c.l.bf16 %v988
      %v1003 = vunpack.c.l.bf16 %v989
      %v1004 = vunpack.c.l.bf16 %v990
      %v1005 = vunpack.c.l.bf16 %v991
      %v1006 = vunpack.c.l.bf16 %v992
      %v1021 = vrot.slane %v993, 1
      %v1022 = vrot.slane %v994, 1
      %v1023 = vsel %vm372, %v1021, %v1022
      %v1024 = vrot.slane %v995, 1
      %v1025 = vrot.slane %v996, 1
      %v1026 = vsel %vm372, %v1024, %v1025
      %v1027 = vrot.slane %v997, 1
      %v1028 = vrot.slane %v998, 1
      %v1029 = vsel %vm372, %v1027, %v1028
      %v1030 = vrot.slane %v999, 1
      %v1031 = vrot.slane %v1000, 1
      %v1032 = vsel %vm372, %v1030, %v1031
      %v1033 = vrot.slane %v1001, 1
      %v1034 = vrot.slane %v1002, 1
      %v1035 = vsel %vm372, %v1033, %v1034
      %v1036 = vrot.slane %v1003, 1
      %v1037 = vrot.slane %v1004, 1
      %v1038 = vsel %vm372, %v1036, %v1037
      %v1039 = vrot.slane %v1005, 1
      %v1040 = vrot.slane %v1006, 1
      %v1041 = vsel %vm372, %v1039, %v1040
      %1049 = vst [vmem:[#allocation2 + $0x18] sm:$0xff] %v1023
      %1050 = vst [vmem:[#allocation2 + $0x38] sm:$0xff] %v1026
      %1051 = vst [vmem:[#allocation2 + $0x58] sm:$0xff] %v1029
      %1052 = vst [vmem:[#allocation2 + $0x78] sm:$0xff] %v1032
      %1053 = vst [vmem:[#allocation2 + $0x98] sm:$0xff] %v1035
      %1054 = vst [vmem:[#allocation2 + $0xb8] sm:$0xff] %v1038
      %1055 = vst [vmem:[#allocation2 + $0xd8] sm:$0xff] %v1041
      %v1056 = vld [vmem:[%s887] sm:$0xf]
      %v1057 = vld [vmem:[%s887 + $0x4] sm:$0x1]
      %v1058 = vunpack.c.l.bf16 %v1056
      %v1059 = vunpack.c.l.bf16 %v1057
      %v1062 = vrot.slane %v1058, 1
      %v1063 = vrot.slane %v1059, 1
      %v1064 = vsel %vm372, %v1062, %v1063
      %1066 = vst [vmem:[%s863 + $0x18] sm:$0xff] %v1064
      %v1067 = vld [vmem:[#allocation3] sm:$0xff]
      %v1068 = vld [vmem:[#allocation3 + $0x8] sm:$0xff]
      %v1069 = vld [vmem:[#allocation3 + $0x10] sm:$0xff]
      %v1070 = vld [vmem:[#allocation3 + $0x18] sm:$0xff]
      %v1071 = vld [vmem:[#allocation3 + $0x20] sm:$0xff]
      %v1072 = vld [vmem:[#allocation3 + $0x28] sm:$0xff]
      %v1073 = vld [vmem:[#allocation3 + $0x30] sm:$0xff]
      %v1074 = vld [vmem:[#allocation3 + $0x38] sm:$0xff]
      %v1075 = vld [vmem:[#allocation3 + $0x40] sm:$0xff]
      %v1076 = vld [vmem:[#allocation3 + $0x48] sm:$0xff]
      %v1077 = vld [vmem:[#allocation3 + $0x50] sm:$0xff]
      %v1078 = vld [vmem:[#allocation3 + $0x58] sm:$0xff]
      %v1079 = vld [vmem:[#allocation3 + $0x60] sm:$0xff]
      %v1080 = vld [vmem:[#allocation3 + $0x68] sm:$0xff]
      %v1081 = vld [vmem:[#allocation3 + $0x70] sm:$0xff]
      %v1082 = vld [vmem:[#allocation3 + $0x78] sm:$0xff]
      %v1083 = vld [vmem:[#allocation3 + $0x80] sm:$0xff]
      %v1084 = vld [vmem:[#allocation3 + $0x88] sm:$0xff]
      %v1085 = vld [vmem:[#allocation3 + $0x90] sm:$0xff]
      %v1086 = vld [vmem:[#allocation3 + $0x98] sm:$0xff]
      %v1087 = vld [vmem:[#allocation3 + $0xa0] sm:$0xff]
      %v1088 = vld [vmem:[#allocation3 + $0xa8] sm:$0xff]
      %v1089 = vld [vmem:[#allocation3 + $0xb0] sm:$0xff]
      %v1090 = vld [vmem:[#allocation3 + $0xb8] sm:$0xff]
      %v1091 = vld [vmem:[#allocation3 + $0xc0] sm:$0xff]
      %v1092 = vld [vmem:[#allocation3 + $0xc8] sm:$0xff]
      %v1093 = vld [vmem:[#allocation3 + $0xd0] sm:$0xff]
      %v1094 = vld [vmem:[#allocation3 + $0xd8] sm:$0xff]
      %v1095 = vld [vmem:[#allocation3 + $0xe0] sm:$0xff]
      %v1096 = vld [vmem:[#allocation3 + $0xe8] sm:$0xff]
      %v1097 = vld [vmem:[#allocation3 + $0xf0] sm:$0xff]
      %v1098 = vld [vmem:[#allocation3 + $0xf8] sm:$0xff]
      %v1099 = vpack.c.bf16 %v1071, %v1067
      %v1100 = vpack.c.bf16 %v1072, %v1068
      %v1101 = vpack.c.bf16 %v1073, %v1069
      %v1102 = vpack.c.bf16 %v1074, %v1070
      %v1103 = vpack.c.bf16 %v1079, %v1075
      %v1104 = vpack.c.bf16 %v1080, %v1076
      %v1105 = vpack.c.bf16 %v1081, %v1077
      %v1106 = vpack.c.bf16 %v1082, %v1078
      %v1107 = vpack.c.bf16 %v1087, %v1083
      %v1108 = vpack.c.bf16 %v1088, %v1084
      %v1109 = vpack.c.bf16 %v1089, %v1085
      %v1110 = vpack.c.bf16 %v1090, %v1086
      %v1111 = vpack.c.bf16 %v1095, %v1091
      %v1112 = vpack.c.bf16 %v1096, %v1092
      %v1113 = vpack.c.bf16 %v1097, %v1093
      %v1114 = vpack.c.bf16 %v1098, %v1094
      %s1115 = scalar_lea.vmem %s2, 256
      %v1116 = vld [vmem:[%s1115] sm:$0xf]
      %v1117 = vld [vmem:[%s1115 + $0x4] sm:$0xf]
      %v1118 = vld [vmem:[%s1115 + $0x8] sm:$0xf]
      %v1119 = vld [vmem:[%s1115 + $0xc] sm:$0xf]
      %v1120 = vld [vmem:[%s1115 + $0x10] sm:$0xf]
      %v1121 = vld [vmem:[%s1115 + $0x14] sm:$0xf]
      %v1122 = vld [vmem:[%s1115 + $0x18] sm:$0xf]
      %v1123 = vld [vmem:[%s1115 + $0x1c] sm:$0xf]
      %v1124 = vld [vmem:[%s1115 + $0x20] sm:$0xf]
      %v1125 = vld [vmem:[%s1115 + $0x24] sm:$0xf]
      %v1126 = vld [vmem:[%s1115 + $0x28] sm:$0xf]
      %v1127 = vld [vmem:[%s1115 + $0x2c] sm:$0xf]
      %v1128 = vld [vmem:[%s1115 + $0x30] sm:$0xf]
      %v1129 = vld [vmem:[%s1115 + $0x34] sm:$0xf]
      %v1130 = vld [vmem:[%s1115 + $0x38] sm:$0xf]
      %v1131 = vld [vmem:[%s1115 + $0x3c] sm:$0xf]
      %v1132 = vld [vmem:[%s1115 + $0x40] sm:$0xf]
      %v1133 = vld [vmem:[%s1115 + $0x44] sm:$0xf]
      %v1134 = vld [vmem:[%s1115 + $0x48] sm:$0xf]
      %v1135 = vld [vmem:[%s1115 + $0x4c] sm:$0xf]
      %v1136 = vld [vmem:[%s1115 + $0x50] sm:$0xf]
      %v1137 = vld [vmem:[%s1115 + $0x54] sm:$0xf]
      %v1138 = vld [vmem:[%s1115 + $0x58] sm:$0xf]
      %v1139 = vld [vmem:[%s1115 + $0x5c] sm:$0xf]
      %v1140 = vld [vmem:[%s1115 + $0x60] sm:$0xf]
      %v1141 = vld [vmem:[%s1115 + $0x64] sm:$0xf]
      %v1142 = vld [vmem:[%s1115 + $0x68] sm:$0xf]
      %v1143 = vld [vmem:[%s1115 + $0x6c] sm:$0xf]
      %v1144 = vld [vmem:[%s1115 + $0x70] sm:$0xf]
      %v1145 = vld [vmem:[%s1115 + $0x74] sm:$0xf]
      %v1146 = vld [vmem:[%s1115 + $0x78] sm:$0xf]
      %v1147 = vld [vmem:[%s1115 + $0x7c] sm:$0xf]
      %v1148 = vld [vmem:[%s1115 + $0x80] sm:$0xf]
      %v1149 = vld [vmem:[%s1115 + $0x84] sm:$0xf]
      %v1150 = vld [vmem:[%s1115 + $0x88] sm:$0xf]
      %v1151 = vld [vmem:[%s1115 + $0x8c] sm:$0xf]
      %v1152 = vld [vmem:[%s1115 + $0x90] sm:$0xf]
      %v1153 = vld [vmem:[%s1115 + $0x94] sm:$0xf]
      %v1154 = vld [vmem:[%s1115 + $0x98] sm:$0xf]
      %v1155 = vld [vmem:[%s1115 + $0x9c] sm:$0xf]
      %v1156 = vld [vmem:[%s1115 + $0xa0] sm:$0xf]
      %v1157 = vld [vmem:[%s1115 + $0xa4] sm:$0xf]
      %v1158 = vld [vmem:[%s1115 + $0xa8] sm:$0xf]
      %v1159 = vld [vmem:[%s1115 + $0xac] sm:$0xf]
      %v1160 = vld [vmem:[%s1115 + $0xb0] sm:$0xf]
      %v1161 = vld [vmem:[%s1115 + $0xb4] sm:$0xf]
      %v1162 = vld [vmem:[%s1115 + $0xb8] sm:$0xf]
      %v1163 = vld [vmem:[%s1115 + $0xbc] sm:$0xf]
      %v1164 = vld [vmem:[%s1115 + $0xc0] sm:$0xf]
      %v1165 = vld [vmem:[%s1115 + $0xc4] sm:$0xf]
      %v1166 = vld [vmem:[%s1115 + $0xc8] sm:$0xf]
      %v1167 = vld [vmem:[%s1115 + $0xcc] sm:$0xf]
      %v1168 = vld [vmem:[%s1115 + $0xd0] sm:$0xf]
      %v1169 = vld [vmem:[%s1115 + $0xd4] sm:$0xf]
      %v1170 = vld [vmem:[%s1115 + $0xd8] sm:$0xf]
      %v1171 = vld [vmem:[%s1115 + $0xdc] sm:$0xf]
      %v1172 = vld [vmem:[%s1115 + $0xe0] sm:$0xf]
      %v1173 = vld [vmem:[%s1115 + $0xe4] sm:$0xf]
      %v1174 = vld [vmem:[%s1115 + $0xe8] sm:$0xf]
      %v1175 = vld [vmem:[%s1115 + $0xec] sm:$0xf]
      %v1176 = vld [vmem:[%s1115 + $0xf0] sm:$0xf]
      %v1177 = vld [vmem:[%s1115 + $0xf4] sm:$0xf]
      %v1178 = vld [vmem:[%s1115 + $0xf8] sm:$0xf]
      %v1179 = vld [vmem:[%s1115 + $0xfc] sm:$0xf]
      %v1244 = vunpack.c.l.b16 %v1116
      %v1245 = vunpack.c.l.b16 %v1117
      %v1246 = vunpack.c.l.b16 %v1118
      %v1247 = vunpack.c.l.b16 %v1119
      %v1248 = vunpack.c.l.b16 %v1120
      %v1249 = vunpack.c.l.b16 %v1121
      %v1250 = vunpack.c.l.b16 %v1122
      %v1251 = vunpack.c.l.b16 %v1123
      %v1252 = vunpack.c.l.b16 %v1124
      %v1253 = vunpack.c.l.b16 %v1125
      %v1254 = vunpack.c.l.b16 %v1126
      %v1255 = vunpack.c.l.b16 %v1127
      %v1256 = vunpack.c.l.b16 %v1128
      %v1257 = vunpack.c.l.b16 %v1129
      %v1258 = vunpack.c.l.b16 %v1130
      %v1259 = vunpack.c.l.b16 %v1131
      %v1260 = vunpack.c.l.b16 %v1132
      %v1261 = vunpack.c.l.b16 %v1133
      %v1262 = vunpack.c.l.b16 %v1134
      %v1263 = vunpack.c.l.b16 %v1135
      %v1264 = vunpack.c.l.b16 %v1136
      %v1265 = vunpack.c.l.b16 %v1137
      %v1266 = vunpack.c.l.b16 %v1138
      %v1267 = vunpack.c.l.b16 %v1139
      %v1268 = vunpack.c.l.b16 %v1140
      %v1269 = vunpack.c.l.b16 %v1141
      %v1270 = vunpack.c.l.b16 %v1142
      %v1271 = vunpack.c.l.b16 %v1143
      %v1272 = vunpack.c.l.b16 %v1144
      %v1273 = vunpack.c.l.b16 %v1145
      %v1274 = vunpack.c.l.b16 %v1146
      %v1275 = vunpack.c.l.b16 %v1147
      %v1276 = vunpack.c.l.b16 %v1148
      %v1277 = vunpack.c.l.b16 %v1149
      %v1278 = vunpack.c.l.b16 %v1150
      %v1279 = vunpack.c.l.b16 %v1151
      %v1280 = vunpack.c.l.b16 %v1152
      %v1281 = vunpack.c.l.b16 %v1153
      %v1282 = vunpack.c.l.b16 %v1154
      %v1283 = vunpack.c.l.b16 %v1155
      %v1284 = vunpack.c.l.b16 %v1156
      %v1285 = vunpack.c.l.b16 %v1157
      %v1286 = vunpack.c.l.b16 %v1158
      %v1287 = vunpack.c.l.b16 %v1159
      %v1288 = vunpack.c.l.b16 %v1160
      %v1289 = vunpack.c.l.b16 %v1161
      %v1290 = vunpack.c.l.b16 %v1162
      %v1291 = vunpack.c.l.b16 %v1163
      %v1292 = vunpack.c.l.b16 %v1164
      %v1293 = vunpack.c.l.b16 %v1165
      %v1294 = vunpack.c.l.b16 %v1166
      %v1295 = vunpack.c.l.b16 %v1167
      %v1296 = vunpack.c.l.b16 %v1168
      %v1297 = vunpack.c.l.b16 %v1169
      %v1298 = vunpack.c.l.b16 %v1170
      %v1299 = vunpack.c.l.b16 %v1171
      %v1300 = vunpack.c.l.b16 %v1172
      %v1301 = vunpack.c.l.b16 %v1173
      %v1302 = vunpack.c.l.b16 %v1174
      %v1303 = vunpack.c.l.b16 %v1175
      %v1304 = vunpack.c.l.b16 %v1176
      %v1305 = vunpack.c.l.b16 %v1177
      %v1306 = vunpack.c.l.b16 %v1178
      %v1307 = vunpack.c.l.b16 %v1179
      %v1308 = vpack.c.b16 %v1245, %v1244
      %v1309 = vpack.c.b16 %v1247, %v1246
      %v1310 = vpack.c.b16 %v1249, %v1248
      %v1311 = vpack.c.b16 %v1251, %v1250
      %v1312 = vpack.c.b16 %v1253, %v1252
      %v1313 = vpack.c.b16 %v1255, %v1254
      %v1314 = vpack.c.b16 %v1257, %v1256
      %v1315 = vpack.c.b16 %v1259, %v1258
      %v1316 = vpack.c.b16 %v1261, %v1260
      %v1317 = vpack.c.b16 %v1263, %v1262
      %v1318 = vpack.c.b16 %v1265, %v1264
      %v1319 = vpack.c.b16 %v1267, %v1266
      %v1320 = vpack.c.b16 %v1269, %v1268
      %v1321 = vpack.c.b16 %v1271, %v1270
      %v1322 = vpack.c.b16 %v1273, %v1272
      %v1323 = vpack.c.b16 %v1275, %v1274
      %v1324 = vpack.c.b16 %v1277, %v1276
      %v1325 = vpack.c.b16 %v1279, %v1278
      %v1326 = vpack.c.b16 %v1281, %v1280
      %v1327 = vpack.c.b16 %v1283, %v1282
      %v1328 = vpack.c.b16 %v1285, %v1284
      %v1329 = vpack.c.b16 %v1287, %v1286
      %v1330 = vpack.c.b16 %v1289, %v1288
      %v1331 = vpack.c.b16 %v1291, %v1290
      %v1332 = vpack.c.b16 %v1293, %v1292
      %v1333 = vpack.c.b16 %v1295, %v1294
      %v1334 = vpack.c.b16 %v1297, %v1296
      %v1335 = vpack.c.b16 %v1299, %v1298
      %v1336 = vpack.c.b16 %v1301, %v1300
      %v1337 = vpack.c.b16 %v1303, %v1302
      %v1338 = vpack.c.b16 %v1305, %v1304
      %v1339 = vpack.c.b16 %v1307, %v1306
      %1372 = vmatprep.subr.bf16.mxu0 0
      %1373 = vmatpush1.bf16.msra.mxu0 %v1315
      %1374 = vmatprep.subr.bf16.mxu0 0
      %1375 = vmatpush1.bf16.msra.mxu0 %v1314
      %1376 = vmatprep.subr.bf16.mxu0 0
      %1377 = vmatpush1.bf16.msra.mxu0 %v1313
      %1378 = vmatprep.subr.bf16.mxu0 0
      %1379 = vmatpush1.bf16.msra.mxu0 %v1312
      %1380 = vmatprep.subr.bf16.mxu0 0
      %1381 = vmatpush1.bf16.msra.mxu0 %v1311
      %1382 = vmatprep.subr.bf16.mxu0 0
      %1383 = vmatpush1.bf16.msra.mxu0 %v1310
      %1384 = vmatprep.subr.bf16.mxu0 0
      %1385 = vmatpush1.bf16.msra.mxu0 %v1309
      %1386 = vmatprep.subr.bf16.mxu0 0
      %1387 = vmatpush1.bf16.msra.mxu0 %v1308
      %1388 = vmatprep.subr.bf16.mxu0 0
      %1389 = vmatpush2.bf16.msra.mxu0 %v1323
      %1390 = vmatprep.subr.bf16.mxu0 0
      %1391 = vmatpush2.bf16.msra.mxu0 %v1322
      %1392 = vmatprep.subr.bf16.mxu0 0
      %1393 = vmatpush2.bf16.msra.mxu0 %v1321
      %1394 = vmatprep.subr.bf16.mxu0 0
      %1395 = vmatpush2.bf16.msra.mxu0 %v1320
      %1396 = vmatprep.subr.bf16.mxu0 0
      %1397 = vmatpush2.bf16.msra.mxu0 %v1319
      %1398 = vmatprep.subr.bf16.mxu0 0
      %1399 = vmatpush2.bf16.msra.mxu0 %v1318
      %1400 = vmatprep.subr.bf16.mxu0 0
      %1401 = vmatpush2.bf16.msra.mxu0 %v1317
      %1402 = vmatprep.subr.bf16.mxu0 0
      %1403 = vmatpush2.bf16.msra.mxu0 %v1316
      %1404 = vmatprep.mubr.bf16.mxu0 %v1100
      %1405 = vmatmul.mubr.bf16.gmra.mxu0 %v1099
      %v1406 = vpop.f32.mrf.mxu0
      %v1407 = vadd.f32 0.0, %v1406
      %v1408 = vpop.f32.mrf.mxu0
      %v1409 = vpop.f32.mrf.mxu0
      %v1410 = vadd.f32 0.0, %v1409
      %v1411 = vpop.f32.mrf.mxu0
      %1412 = vmatprep.mubr.bf16.mxu0 %v1104
      %1413 = vmatmul.mubr.bf16.gmra.mxu0 %v1103
      %v1414 = vpop.f32.mrf.mxu0
      %v1415 = vadd.f32 0.0, %v1414
      %v1416 = vpop.f32.mrf.mxu0
      %v1417 = vpop.f32.mrf.mxu0
      %v1418 = vadd.f32 0.0, %v1417
      %v1419 = vpop.f32.mrf.mxu0
      %1420 = vmatprep.mubr.bf16.mxu0 %v1108
      %1421 = vmatmul.mubr.bf16.gmra.mxu0 %v1107
      %v1422 = vpop.f32.mrf.mxu0
      %v1423 = vadd.f32 0.0, %v1422
      %v1424 = vpop.f32.mrf.mxu0
      %v1425 = vpop.f32.mrf.mxu0
      %v1426 = vadd.f32 0.0, %v1425
      %v1427 = vpop.f32.mrf.mxu0
      %1428 = vmatprep.mubr.bf16.mxu0 %v1112
      %1429 = vmatmul.mubr.bf16.gmra.mxu0 %v1111
      %v1430 = vpop.f32.mrf.mxu0
      %v1431 = vadd.f32 0.0, %v1430
      %v1432 = vpop.f32.mrf.mxu0
      %v1433 = vpop.f32.mrf.mxu0
      %v1434 = vadd.f32 0.0, %v1433
      %v1435 = vpop.f32.mrf.mxu0
      %1436 = vdwg.mxu0
      %1437 = vmatprep.subr.bf16.mxu0 0
      %1438 = vmatpush1.bf16.msra.mxu0 %v1331
      %1439 = vmatprep.subr.bf16.mxu0 0
      %1440 = vmatpush1.bf16.msra.mxu0 %v1330
      %1441 = vmatprep.subr.bf16.mxu0 0
      %1442 = vmatpush1.bf16.msra.mxu0 %v1329
      %1443 = vmatprep.subr.bf16.mxu0 0
      %1444 = vmatpush1.bf16.msra.mxu0 %v1328
      %1445 = vmatprep.subr.bf16.mxu0 0
      %1446 = vmatpush1.bf16.msra.mxu0 %v1327
      %1447 = vmatprep.subr.bf16.mxu0 0
      %1448 = vmatpush1.bf16.msra.mxu0 %v1326
      %1449 = vmatprep.subr.bf16.mxu0 0
      %1450 = vmatpush1.bf16.msra.mxu0 %v1325
      %1451 = vmatprep.subr.bf16.mxu0 0
      %1452 = vmatpush1.bf16.msra.mxu0 %v1324
      %1453 = vmatprep.subr.bf16.mxu0 0
      %1454 = vmatpush2.bf16.msra.mxu0 %v1339
      %1455 = vmatprep.subr.bf16.mxu0 0
      %1456 = vmatpush2.bf16.msra.mxu0 %v1338
      %1457 = vmatprep.subr.bf16.mxu0 0
      %1458 = vmatpush2.bf16.msra.mxu0 %v1337
      %1459 = vmatprep.subr.bf16.mxu0 0
      %1460 = vmatpush2.bf16.msra.mxu0 %v1336
      %1461 = vmatprep.subr.bf16.mxu0 0
      %1462 = vmatpush2.bf16.msra.mxu0 %v1335
      %1463 = vmatprep.subr.bf16.mxu0 0
      %1464 = vmatpush2.bf16.msra.mxu0 %v1334
      %1465 = vmatprep.subr.bf16.mxu0 0
      %1466 = vmatpush2.bf16.msra.mxu0 %v1333
      %1467 = vmatprep.subr.bf16.mxu0 0
      %1468 = vmatpush2.bf16.msra.mxu0 %v1332
      %1469 = vmatprep.mubr.bf16.mxu0 %v1102
      %1470 = vmatmul.mubr.bf16.gmra.mxu0 %v1101
      %v1471 = vpop.f32.mrf.mxu0
      %v1472 = vadd.f32 %v1407, %v1471
      %v1473 = vpop.f32.mrf.mxu0
      %v1474 = vpop.f32.mrf.mxu0
      %v1475 = vadd.f32 %v1410, %v1474
      %v1476 = vpop.f32.mrf.mxu0
      %1477 = vmatprep.mubr.bf16.mxu0 %v1106
      %1478 = vmatmul.mubr.bf16.gmra.mxu0 %v1105
      %v1479 = vpop.f32.mrf.mxu0
      %v1480 = vadd.f32 %v1415, %v1479
      %v1481 = vpop.f32.mrf.mxu0
      %v1482 = vpop.f32.mrf.mxu0
      %v1483 = vadd.f32 %v1418, %v1482
      %v1484 = vpop.f32.mrf.mxu0
      %1485 = vmatprep.mubr.bf16.mxu0 %v1110
      %1486 = vmatmul.mubr.bf16.gmra.mxu0 %v1109
      %v1487 = vpop.f32.mrf.mxu0
      %v1488 = vadd.f32 %v1423, %v1487
      %v1489 = vpop.f32.mrf.mxu0
      %v1490 = vpop.f32.mrf.mxu0
      %v1491 = vadd.f32 %v1426, %v1490
      %v1492 = vpop.f32.mrf.mxu0
      %1493 = vmatprep.mubr.bf16.mxu0 %v1114
      %1494 = vmatmul.mubr.bf16.gmra.mxu0 %v1113
      %v1495 = vpop.f32.mrf.mxu0
      %v1496 = vadd.f32 %v1431, %v1495
      %v1497 = vpop.f32.mrf.mxu0
      %v1498 = vpop.f32.mrf.mxu0
      %v1499 = vadd.f32 %v1434, %v1498
      %v1500 = vpop.f32.mrf.mxu0
      %1501 = vdwg.mxu0
      %v1566 = vunpack.c.l.b16 %v775
      %v1567 = vunpack.c.l.b16 %v776
      %v1568 = vunpack.c.l.b16 %v777
      %v1569 = vunpack.c.l.b16 %v778
      %v1570 = vunpack.c.l.b16 %v779
      %v1571 = vunpack.c.l.b16 %v780
      %v1572 = vunpack.c.l.b16 %v781
      %v1573 = vunpack.c.l.b16 %v782
      %v1574 = vunpack.c.l.b16 %v783
      %v1575 = vunpack.c.l.b16 %v784
      %v1576 = vunpack.c.l.b16 %v785
      %v1577 = vunpack.c.l.b16 %v786
      %v1578 = vunpack.c.l.b16 %v787
      %v1579 = vunpack.c.l.b16 %v788
      %v1580 = vunpack.c.l.b16 %v789
      %v1581 = vunpack.c.l.b16 %v790
      %v1582 = vunpack.c.l.b16 %v791
      %v1583 = vunpack.c.l.b16 %v792
      %v1584 = vunpack.c.l.b16 %v793
      %v1585 = vunpack.c.l.b16 %v794
      %v1586 = vunpack.c.l.b16 %v795
      %v1587 = vunpack.c.l.b16 %v796
      %v1588 = vunpack.c.l.b16 %v797
      %v1589 = vunpack.c.l.b16 %v798
      %v1590 = vunpack.c.l.b16 %v799
      %v1591 = vunpack.c.l.b16 %v800
      %v1592 = vunpack.c.l.b16 %v801
      %v1593 = vunpack.c.l.b16 %v802
      %v1594 = vunpack.c.l.b16 %v803
      %v1595 = vunpack.c.l.b16 %v804
      %v1596 = vunpack.c.l.b16 %v805
      %v1597 = vunpack.c.l.b16 %v806
      %v1598 = vunpack.c.l.b16 %v807
      %v1599 = vunpack.c.l.b16 %v808
      %v1600 = vunpack.c.l.b16 %v809
      %v1601 = vunpack.c.l.b16 %v810
      %v1602 = vunpack.c.l.b16 %v811
      %v1603 = vunpack.c.l.b16 %v812
      %v1604 = vunpack.c.l.b16 %v813
      %v1605 = vunpack.c.l.b16 %v814
      %v1606 = vunpack.c.l.b16 %v815
      %v1607 = vunpack.c.l.b16 %v816
      %v1608 = vunpack.c.l.b16 %v817
      %v1609 = vunpack.c.l.b16 %v818
      %v1610 = vunpack.c.l.b16 %v819
      %v1611 = vunpack.c.l.b16 %v820
      %v1612 = vunpack.c.l.b16 %v821
      %v1613 = vunpack.c.l.b16 %v822
      %v1614 = vunpack.c.l.b16 %v823
      %v1615 = vunpack.c.l.b16 %v824
      %v1616 = vunpack.c.l.b16 %v825
      %v1617 = vunpack.c.l.b16 %v826
      %v1618 = vunpack.c.l.b16 %v827
      %v1619 = vunpack.c.l.b16 %v828
      %v1620 = vunpack.c.l.b16 %v829
      %v1621 = vunpack.c.l.b16 %v830
      %v1622 = vunpack.c.l.b16 %v831
      %v1623 = vunpack.c.l.b16 %v832
      %v1624 = vunpack.c.l.b16 %v833
      %v1625 = vunpack.c.l.b16 %v834
      %v1626 = vunpack.c.l.b16 %v835
      %v1627 = vunpack.c.l.b16 %v836
      %v1628 = vunpack.c.l.b16 %v837
      %v1629 = vunpack.c.l.b16 %v838
      %v1630 = vpack.c.b16 %v1567, %v1566
      %v1631 = vpack.c.b16 %v1569, %v1568
      %v1632 = vpack.c.b16 %v1571, %v1570
      %v1633 = vpack.c.b16 %v1573, %v1572
      %v1634 = vpack.c.b16 %v1575, %v1574
      %v1635 = vpack.c.b16 %v1577, %v1576
      %v1636 = vpack.c.b16 %v1579, %v1578
      %v1637 = vpack.c.b16 %v1581, %v1580
      %v1638 = vpack.c.b16 %v1583, %v1582
      %v1639 = vpack.c.b16 %v1585, %v1584
      %v1640 = vpack.c.b16 %v1587, %v1586
      %v1641 = vpack.c.b16 %v1589, %v1588
      %v1642 = vpack.c.b16 %v1591, %v1590
      %v1643 = vpack.c.b16 %v1593, %v1592
      %v1644 = vpack.c.b16 %v1595, %v1594
      %v1645 = vpack.c.b16 %v1597, %v1596
      %v1646 = vpack.c.b16 %v1599, %v1598
      %v1647 = vpack.c.b16 %v1601, %v1600
      %v1648 = vpack.c.b16 %v1603, %v1602
      %v1649 = vpack.c.b16 %v1605, %v1604
      %v1650 = vpack.c.b16 %v1607, %v1606
      %v1651 = vpack.c.b16 %v1609, %v1608
      %v1652 = vpack.c.b16 %v1611, %v1610
      %v1653 = vpack.c.b16 %v1613, %v1612
      %v1654 = vpack.c.b16 %v1615, %v1614
      %v1655 = vpack.c.b16 %v1617, %v1616
      %v1656 = vpack.c.b16 %v1619, %v1618
      %v1657 = vpack.c.b16 %v1621, %v1620
      %v1658 = vpack.c.b16 %v1623, %v1622
      %v1659 = vpack.c.b16 %v1625, %v1624
      %v1660 = vpack.c.b16 %v1627, %v1626
      %v1661 = vpack.c.b16 %v1629, %v1628
      %1694 = vmatprep.subr.bf16.mxu0 0
      %1695 = vmatpush1.bf16.msra.mxu0 %v1637
      %1696 = vmatprep.subr.bf16.mxu0 0
      %1697 = vmatpush1.bf16.msra.mxu0 %v1636
      %1698 = vmatprep.subr.bf16.mxu0 0
      %1699 = vmatpush1.bf16.msra.mxu0 %v1635
      %1700 = vmatprep.subr.bf16.mxu0 0
      %1701 = vmatpush1.bf16.msra.mxu0 %v1634
      %1702 = vmatprep.subr.bf16.mxu0 0
      %1703 = vmatpush1.bf16.msra.mxu0 %v1633
      %1704 = vmatprep.subr.bf16.mxu0 0
      %1705 = vmatpush1.bf16.msra.mxu0 %v1632
      %1706 = vmatprep.subr.bf16.mxu0 0
      %1707 = vmatpush1.bf16.msra.mxu0 %v1631
      %1708 = vmatprep.subr.bf16.mxu0 0
      %1709 = vmatpush1.bf16.msra.mxu0 %v1630
      %1710 = vmatprep.subr.bf16.mxu0 0
      %1711 = vmatpush2.bf16.msra.mxu0 %v1645
      %1712 = vmatprep.subr.bf16.mxu0 0
      %1713 = vmatpush2.bf16.msra.mxu0 %v1644
      %1714 = vmatprep.subr.bf16.mxu0 0
      %1715 = vmatpush2.bf16.msra.mxu0 %v1643
      %1716 = vmatprep.subr.bf16.mxu0 0
      %1717 = vmatpush2.bf16.msra.mxu0 %v1642
      %1718 = vmatprep.subr.bf16.mxu0 0
      %1719 = vmatpush2.bf16.msra.mxu0 %v1641
      %1720 = vmatprep.subr.bf16.mxu0 0
      %1721 = vmatpush2.bf16.msra.mxu0 %v1640
      %1722 = vmatprep.subr.bf16.mxu0 0
      %1723 = vmatpush2.bf16.msra.mxu0 %v1639
      %1724 = vmatprep.subr.bf16.mxu0 0
      %1725 = vmatpush2.bf16.msra.mxu0 %v1638
      %1726 = vmatprep.mubr.bf16.mxu0 %v760
      %1727 = vmatmul.mubr.bf16.gmra.mxu0 %v759
      %v1728 = vpop.f32.mrf.mxu0
      %v1729 = vadd.f32 %v1472, %v1728
      %v1730 = vpop.f32.mrf.mxu0
      %v1731 = vpop.f32.mrf.mxu0
      %v1732 = vadd.f32 %v1475, %v1731
      %v1733 = vpop.f32.mrf.mxu0
      %1734 = vmatprep.mubr.bf16.mxu0 %v764
      %1735 = vmatmul.mubr.bf16.gmra.mxu0 %v763
      %v1736 = vpop.f32.mrf.mxu0
      %v1737 = vadd.f32 %v1480, %v1736
      %v1738 = vpop.f32.mrf.mxu0
      %v1739 = vpop.f32.mrf.mxu0
      %v1740 = vadd.f32 %v1483, %v1739
      %v1741 = vpop.f32.mrf.mxu0
      %1742 = vmatprep.mubr.bf16.mxu0 %v768
      %1743 = vmatmul.mubr.bf16.gmra.mxu0 %v767
      %v1744 = vpop.f32.mrf.mxu0
      %v1745 = vadd.f32 %v1488, %v1744
      %v1746 = vpop.f32.mrf.mxu0
      %v1747 = vpop.f32.mrf.mxu0
      %v1748 = vadd.f32 %v1491, %v1747
      %v1749 = vpop.f32.mrf.mxu0
      %1750 = vmatprep.mubr.bf16.mxu0 %v772
      %1751 = vmatmul.mubr.bf16.gmra.mxu0 %v771
      %v1752 = vpop.f32.mrf.mxu0
      %v1753 = vadd.f32 %v1496, %v1752
      %v1754 = vpop.f32.mrf.mxu0
      %v1755 = vpop.f32.mrf.mxu0
      %v1756 = vadd.f32 %v1499, %v1755
      %v1757 = vpop.f32.mrf.mxu0
      %1758 = vdwg.mxu0
      %1759 = vmatprep.subr.bf16.mxu0 0
      %1760 = vmatpush1.bf16.msra.mxu0 %v1653
      %1761 = vmatprep.subr.bf16.mxu0 0
      %1762 = vmatpush1.bf16.msra.mxu0 %v1652
      %1763 = vmatprep.subr.bf16.mxu0 0
      %1764 = vmatpush1.bf16.msra.mxu0 %v1651
      %1765 = vmatprep.subr.bf16.mxu0 0
      %1766 = vmatpush1.bf16.msra.mxu0 %v1650
      %1767 = vmatprep.subr.bf16.mxu0 0
      %1768 = vmatpush1.bf16.msra.mxu0 %v1649
      %1769 = vmatprep.subr.bf16.mxu0 0
      %1770 = vmatpush1.bf16.msra.mxu0 %v1648
      %1771 = vmatprep.subr.bf16.mxu0 0
      %1772 = vmatpush1.bf16.msra.mxu0 %v1647
      %1773 = vmatprep.subr.bf16.mxu0 0
      %1774 = vmatpush1.bf16.msra.mxu0 %v1646
      %1775 = vmatprep.subr.bf16.mxu0 0
      %1776 = vmatpush2.bf16.msra.mxu0 %v1661
      %1777 = vmatprep.subr.bf16.mxu0 0
      %1778 = vmatpush2.bf16.msra.mxu0 %v1660
      %1779 = vmatprep.subr.bf16.mxu0 0
      %1780 = vmatpush2.bf16.msra.mxu0 %v1659
      %1781 = vmatprep.subr.bf16.mxu0 0
      %1782 = vmatpush2.bf16.msra.mxu0 %v1658
      %1783 = vmatprep.subr.bf16.mxu0 0
      %1784 = vmatpush2.bf16.msra.mxu0 %v1657
      %1785 = vmatprep.subr.bf16.mxu0 0
      %1786 = vmatpush2.bf16.msra.mxu0 %v1656
      %1787 = vmatprep.subr.bf16.mxu0 0
      %1788 = vmatpush2.bf16.msra.mxu0 %v1655
      %1789 = vmatprep.subr.bf16.mxu0 0
      %1790 = vmatpush2.bf16.msra.mxu0 %v1654
      %1791 = vmatprep.mubr.bf16.mxu0 %v762
      %1792 = vmatmul.mubr.bf16.gmra.mxu0 %v761
      %v1793 = vpop.f32.mrf.mxu0
      %v1794 = vadd.f32 %v1729, %v1793
      %v1795 = vpop.f32.mrf.mxu0
      %v1796 = vpop.f32.mrf.mxu0
      %v1797 = vadd.f32 %v1732, %v1796
      %v1798 = vpop.f32.mrf.mxu0
      %1799 = vmatprep.mubr.bf16.mxu0 %v766
      %1800 = vmatmul.mubr.bf16.gmra.mxu0 %v765
      %v1801 = vpop.f32.mrf.mxu0
      %v1802 = vadd.f32 %v1737, %v1801
      %v1803 = vpop.f32.mrf.mxu0
      %v1804 = vpop.f32.mrf.mxu0
      %v1805 = vadd.f32 %v1740, %v1804
      %v1806 = vpop.f32.mrf.mxu0
      %1807 = vmatprep.mubr.bf16.mxu0 %v770
      %1808 = vmatmul.mubr.bf16.gmra.mxu0 %v769
      %v1809 = vpop.f32.mrf.mxu0
      %v1810 = vadd.f32 %v1745, %v1809
      %v1811 = vpop.f32.mrf.mxu0
      %v1812 = vpop.f32.mrf.mxu0
      %v1813 = vadd.f32 %v1748, %v1812
      %v1814 = vpop.f32.mrf.mxu0
      %1815 = vmatprep.mubr.bf16.mxu0 %v774
      %1816 = vmatmul.mubr.bf16.gmra.mxu0 %v773
      %v1817 = vpop.f32.mrf.mxu0
      %v1818 = vadd.f32 %v1753, %v1817
      %v1819 = vpop.f32.mrf.mxu0
      %v1820 = vpop.f32.mrf.mxu0
      %v1821 = vadd.f32 %v1756, %v1820
      %v1822 = vpop.f32.mrf.mxu0
      %1823 = vdwg.mxu0
      %s1824 = scalar_lea.vmem %s253, 136
      %v1825 = vld [vmem:[%s1824] sm:$0xf]
      %v1826 = vld [vmem:[%s1824 + $0x8] sm:$0xf]
      %v1827 = vld [vmem:[%s1824 + $0x10] sm:$0xf]
      %v1828 = vld [vmem:[%s1824 + $0x18] sm:$0xf]
      %v1829 = vld [vmem:[%s1824 + $0x20] sm:$0xf]
      %v1830 = vld [vmem:[%s1824 + $0x28] sm:$0xf]
      %v1831 = vld [vmem:[%s1824 + $0x30] sm:$0xf]
      %v1832 = vunpack.c.l.bf16 %v1825
      %v1833 = vunpack.c.l.bf16 %v1826
      %v1834 = vunpack.c.l.bf16 %v1827
      %v1835 = vunpack.c.l.bf16 %v1828
      %v1836 = vunpack.c.l.bf16 %v1829
      %v1837 = vunpack.c.l.bf16 %v1830
      %v1838 = vunpack.c.l.bf16 %v1831
      %1839 = vst [vmem:[#allocation3] sm:$0xff] %v1832
      %1840 = vst [vmem:[#allocation3 + $0x20] sm:$0xff] %v1833
      %1841 = vst [vmem:[#allocation3 + $0x40] sm:$0xff] %v1834
      %1842 = vst [vmem:[#allocation3 + $0x60] sm:$0xff] %v1835
      %1843 = vst [vmem:[#allocation3 + $0x80] sm:$0xff] %v1836
      %1844 = vst [vmem:[#allocation3 + $0xa0] sm:$0xff] %v1837
      %1845 = vst [vmem:[#allocation3 + $0xc0] sm:$0xff] %v1838
      %s1846 = scalar_lea.vmem %s263, 16
      %v1847 = vld [vmem:[%s1846] sm:$0xf]
      %v1848 = vunpack.c.l.bf16 %v1847
      %s1849 = scalar_lea.vmem [#allocation3], 224
      %1850 = vst [vmem:[%s1849] sm:$0xff] %v1848
      %s1851 = scalar_lea.vmem %s253, 200
      %v1852 = vld [vmem:[%s1851] sm:$0xf]
      %v1853 = vld [vmem:[%s1851 + $0x8] sm:$0xf]
      %v1854 = vld [vmem:[%s1851 + $0x10] sm:$0xf]
      %v1855 = vld [vmem:[%s1851 + $0x18] sm:$0xf]
      %v1856 = vld [vmem:[%s1851 + $0x20] sm:$0xf]
      %v1857 = vld [vmem:[%s1851 + $0x28] sm:$0xf]
      %v1858 = vld [vmem:[%s1851 + $0x30] sm:$0xf]
      %v1859 = vunpack.c.l.bf16 %v1852
      %v1860 = vunpack.c.l.bf16 %v1853
      %v1861 = vunpack.c.l.bf16 %v1854
      %v1862 = vunpack.c.l.bf16 %v1855
      %v1863 = vunpack.c.l.bf16 %v1856
      %v1864 = vunpack.c.l.bf16 %v1857
      %v1865 = vunpack.c.l.bf16 %v1858
      %1866 = vst [vmem:[#allocation3 + $0x8] sm:$0xff] %v1859
      %1867 = vst [vmem:[#allocation3 + $0x28] sm:$0xff] %v1860
      %1868 = vst [vmem:[#allocation3 + $0x48] sm:$0xff] %v1861
      %1869 = vst [vmem:[#allocation3 + $0x68] sm:$0xff] %v1862
      %1870 = vst [vmem:[#allocation3 + $0x88] sm:$0xff] %v1863
      %1871 = vst [vmem:[#allocation3 + $0xa8] sm:$0xff] %v1864
      %1872 = vst [vmem:[#allocation3 + $0xc8] sm:$0xff] %v1865
      %s1873 = scalar_lea.vmem %s263, 24
      %v1874 = vld [vmem:[%s1873] sm:$0xf]
      %v1875 = vunpack.c.l.bf16 %v1874
      %1876 = vst [vmem:[%s1849 + $0x8] sm:$0xff] %v1875
      %v1877 = vld [vmem:[%s1824] sm:$0xf]
      %v1878 = vld [vmem:[%s1824 + $0x4] sm:$0x1]
      %v1879 = vld [vmem:[%s1824 + $0x8] sm:$0xf]
      %v1880 = vld [vmem:[%s1824 + $0xc] sm:$0x1]
      %v1881 = vld [vmem:[%s1824 + $0x10] sm:$0xf]
      %v1882 = vld [vmem:[%s1824 + $0x14] sm:$0x1]
      %v1883 = vld [vmem:[%s1824 + $0x18] sm:$0xf]
      %v1884 = vld [vmem:[%s1824 + $0x1c] sm:$0x1]
      %v1885 = vld [vmem:[%s1824 + $0x20] sm:$0xf]
      %v1886 = vld [vmem:[%s1824 + $0x24] sm:$0x1]
      %v1887 = vld [vmem:[%s1824 + $0x28] sm:$0xf]
      %v1888 = vld [vmem:[%s1824 + $0x2c] sm:$0x1]
      %v1889 = vld [vmem:[%s1824 + $0x30] sm:$0xf]
      %v1890 = vld [vmem:[%s1824 + $0x34] sm:$0x1]
      %v1891 = vunpack.c.l.bf16 %v1877
      %v1892 = vunpack.c.l.bf16 %v1878
      %v1893 = vunpack.c.l.bf16 %v1879
      %v1894 = vunpack.c.l.bf16 %v1880
      %v1895 = vunpack.c.l.bf16 %v1881
      %v1896 = vunpack.c.l.bf16 %v1882
      %v1897 = vunpack.c.l.bf16 %v1883
      %v1898 = vunpack.c.l.bf16 %v1884
      %v1899 = vunpack.c.l.bf16 %v1885
      %v1900 = vunpack.c.l.bf16 %v1886
      %v1901 = vunpack.c.l.bf16 %v1887
      %v1902 = vunpack.c.l.bf16 %v1888
      %v1903 = vunpack.c.l.bf16 %v1889
      %v1904 = vunpack.c.l.bf16 %v1890
      %v1919 = vrot.slane %v1891, 1
      %v1920 = vrot.slane %v1892, 1
      %v1921 = vsel %vm372, %v1919, %v1920
      %v1922 = vrot.slane %v1893, 1
      %v1923 = vrot.slane %v1894, 1
      %v1924 = vsel %vm372, %v1922, %v1923
      %v1925 = vrot.slane %v1895, 1
      %v1926 = vrot.slane %v1896, 1
      %v1927 = vsel %vm372, %v1925, %v1926
      %v1928 = vrot.slane %v1897, 1
      %v1929 = vrot.slane %v1898, 1
      %v1930 = vsel %vm372, %v1928, %v1929
      %v1931 = vrot.slane %v1899, 1
      %v1932 = vrot.slane %v1900, 1
      %v1933 = vsel %vm372, %v1931, %v1932
      %v1934 = vrot.slane %v1901, 1
      %v1935 = vrot.slane %v1902, 1
      %v1936 = vsel %vm372, %v1934, %v1935
      %v1937 = vrot.slane %v1903, 1
      %v1938 = vrot.slane %v1904, 1
      %v1939 = vsel %vm372, %v1937, %v1938
      %1947 = vst [vmem:[#allocation3 + $0x10] sm:$0xff] %v1921
      %1948 = vst [vmem:[#allocation3 + $0x30] sm:$0xff] %v1924
      %1949 = vst [vmem:[#allocation3 + $0x50] sm:$0xff] %v1927
      %1950 = vst [vmem:[#allocation3 + $0x70] sm:$0xff] %v1930
      %1951 = vst [vmem:[#allocation3 + $0x90] sm:$0xff] %v1933
      %1952 = vst [vmem:[#allocation3 + $0xb0] sm:$0xff] %v1936
      %1953 = vst [vmem:[#allocation3 + $0xd0] sm:$0xff] %v1939
      %v1954 = vld [vmem:[%s1846] sm:$0xf]
      %v1955 = vld [vmem:[%s1846 + $0x4] sm:$0x1]
      %v1956 = vunpack.c.l.bf16 %v1954
      %v1957 = vunpack.c.l.bf16 %v1955
      %v1960 = vrot.slane %v1956, 1
      %v1961 = vrot.slane %v1957, 1
      %v1962 = vsel %vm372, %v1960, %v1961
      %1964 = vst [vmem:[%s1849 + $0x10] sm:$0xff] %v1962
      %v1965 = vld [vmem:[%s1851] sm:$0xf]
      %v1966 = vld [vmem:[%s1851 + $0x4] sm:$0x1]
      %v1967 = vld [vmem:[%s1851 + $0x8] sm:$0xf]
      %v1968 = vld [vmem:[%s1851 + $0xc] sm:$0x1]
      %v1969 = vld [vmem:[%s1851 + $0x10] sm:$0xf]
      %v1970 = vld [vmem:[%s1851 + $0x14] sm:$0x1]
      %v1971 = vld [vmem:[%s1851 + $0x18] sm:$0xf]
      %v1972 = vld [vmem:[%s1851 + $0x1c] sm:$0x1]
      %v1973 = vld [vmem:[%s1851 + $0x20] sm:$0xf]
      %v1974 = vld [vmem:[%s1851 + $0x24] sm:$0x1]
      %v1975 = vld [vmem:[%s1851 + $0x28] sm:$0xf]
      %v1976 = vld [vmem:[%s1851 + $0x2c] sm:$0x1]
      %v1977 = vld [vmem:[%s1851 + $0x30] sm:$0xf]
      %v1978 = vld [vmem:[%s1851 + $0x34] sm:$0x1]
      %v1979 = vunpack.c.l.bf16 %v1965
      %v1980 = vunpack.c.l.bf16 %v1966
      %v1981 = vunpack.c.l.bf16 %v1967
      %v1982 = vunpack.c.l.bf16 %v1968
      %v1983 = vunpack.c.l.bf16 %v1969
      %v1984 = vunpack.c.l.bf16 %v1970
      %v1985 = vunpack.c.l.bf16 %v1971
      %v1986 = vunpack.c.l.bf16 %v1972
      %v1987 = vunpack.c.l.bf16 %v1973
      %v1988 = vunpack.c.l.bf16 %v1974
      %v1989 = vunpack.c.l.bf16 %v1975
      %v1990 = vunpack.c.l.bf16 %v1976
      %v1991 = vunpack.c.l.bf16 %v1977
      %v1992 = vunpack.c.l.bf16 %v1978
      %v2007 = vrot.slane %v1979, 1
      %v2008 = vrot.slane %v1980, 1
      %v2009 = vsel %vm372, %v2007, %v2008
      %v2010 = vrot.slane %v1981, 1
      %v2011 = vrot.slane %v1982, 1
      %v2012 = vsel %vm372, %v2010, %v2011
      %v2013 = vrot.slane %v1983, 1
      %v2014 = vrot.slane %v1984, 1
      %v2015 = vsel %vm372, %v2013, %v2014
      %v2016 = vrot.slane %v1985, 1
      %v2017 = vrot.slane %v1986, 1
      %v2018 = vsel %vm372, %v2016, %v2017
      %v2019 = vrot.slane %v1987, 1
      %v2020 = vrot.slane %v1988, 1
      %v2021 = vsel %vm372, %v2019, %v2020
      %v2022 = vrot.slane %v1989, 1
      %v2023 = vrot.slane %v1990, 1
      %v2024 = vsel %vm372, %v2022, %v2023
      %v2025 = vrot.slane %v1991, 1
      %v2026 = vrot.slane %v1992, 1
      %v2027 = vsel %vm372, %v2025, %v2026
      %2035 = vst [vmem:[#allocation3 + $0x18] sm:$0xff] %v2009
      %2036 = vst [vmem:[#allocation3 + $0x38] sm:$0xff] %v2012
      %2037 = vst [vmem:[#allocation3 + $0x58] sm:$0xff] %v2015
      %2038 = vst [vmem:[#allocation3 + $0x78] sm:$0xff] %v2018
      %2039 = vst [vmem:[#allocation3 + $0x98] sm:$0xff] %v2021
      %2040 = vst [vmem:[#allocation3 + $0xb8] sm:$0xff] %v2024
      %2041 = vst [vmem:[#allocation3 + $0xd8] sm:$0xff] %v2027
      %v2042 = vld [vmem:[%s1873] sm:$0xf]
      %v2043 = vld [vmem:[%s1873 + $0x4] sm:$0x1]
      %v2044 = vunpack.c.l.bf16 %v2042
      %v2045 = vunpack.c.l.bf16 %v2043
      %v2048 = vrot.slane %v2044, 1
      %v2049 = vrot.slane %v2045, 1
      %v2050 = vsel %vm372, %v2048, %v2049
      %2052 = vst [vmem:[%s1849 + $0x18] sm:$0xff] %v2050
      %v2053 = vld [vmem:[#allocation2] sm:$0xff]
      %v2054 = vld [vmem:[#allocation2 + $0x8] sm:$0xff]
      %v2055 = vld [vmem:[#allocation2 + $0x10] sm:$0xff]
      %v2056 = vld [vmem:[#allocation2 + $0x18] sm:$0xff]
      %v2057 = vld [vmem:[#allocation2 + $0x20] sm:$0xff]
      %v2058 = vld [vmem:[#allocation2 + $0x28] sm:$0xff]
      %v2059 = vld [vmem:[#allocation2 + $0x30] sm:$0xff]
      %v2060 = vld [vmem:[#allocation2 + $0x38] sm:$0xff]
      %v2061 = vld [vmem:[#allocation2 + $0x40] sm:$0xff]
      %v2062 = vld [vmem:[#allocation2 + $0x48] sm:$0xff]
      %v2063 = vld [vmem:[#allocation2 + $0x50] sm:$0xff]
      %v2064 = vld [vmem:[#allocation2 + $0x58] sm:$0xff]
      %v2065 = vld [vmem:[#allocation2 + $0x60] sm:$0xff]
      %v2066 = vld [vmem:[#allocation2 + $0x68] sm:$0xff]
      %v2067 = vld [vmem:[#allocation2 + $0x70] sm:$0xff]
      %v2068 = vld [vmem:[#allocation2 + $0x78] sm:$0xff]
      %v2069 = vld [vmem:[#allocation2 + $0x80] sm:$0xff]
      %v2070 = vld [vmem:[#allocation2 + $0x88] sm:$0xff]
      %v2071 = vld [vmem:[#allocation2 + $0x90] sm:$0xff]
      %v2072 = vld [vmem:[#allocation2 + $0x98] sm:$0xff]
      %v2073 = vld [vmem:[#allocation2 + $0xa0] sm:$0xff]
      %v2074 = vld [vmem:[#allocation2 + $0xa8] sm:$0xff]
      %v2075 = vld [vmem:[#allocation2 + $0xb0] sm:$0xff]
      %v2076 = vld [vmem:[#allocation2 + $0xb8] sm:$0xff]
      %v2077 = vld [vmem:[#allocation2 + $0xc0] sm:$0xff]
      %v2078 = vld [vmem:[#allocation2 + $0xc8] sm:$0xff]
      %v2079 = vld [vmem:[#allocation2 + $0xd0] sm:$0xff]
      %v2080 = vld [vmem:[#allocation2 + $0xd8] sm:$0xff]
      %v2081 = vld [vmem:[#allocation2 + $0xe0] sm:$0xff]
      %v2082 = vld [vmem:[#allocation2 + $0xe8] sm:$0xff]
      %v2083 = vld [vmem:[#allocation2 + $0xf0] sm:$0xff]
      %v2084 = vld [vmem:[#allocation2 + $0xf8] sm:$0xff]
      %v2085 = vpack.c.bf16 %v2057, %v2053
      %v2086 = vpack.c.bf16 %v2058, %v2054
      %v2087 = vpack.c.bf16 %v2059, %v2055
      %v2088 = vpack.c.bf16 %v2060, %v2056
      %v2089 = vpack.c.bf16 %v2065, %v2061
      %v2090 = vpack.c.bf16 %v2066, %v2062
      %v2091 = vpack.c.bf16 %v2067, %v2063
      %v2092 = vpack.c.bf16 %v2068, %v2064
      %v2093 = vpack.c.bf16 %v2073, %v2069
      %v2094 = vpack.c.bf16 %v2074, %v2070
      %v2095 = vpack.c.bf16 %v2075, %v2071
      %v2096 = vpack.c.bf16 %v2076, %v2072
      %v2097 = vpack.c.bf16 %v2081, %v2077
      %v2098 = vpack.c.bf16 %v2082, %v2078
      %v2099 = vpack.c.bf16 %v2083, %v2079
      %v2100 = vpack.c.bf16 %v2084, %v2080
      %s2101 = scalar_lea.vmem %s2, 512
      %v2102 = vld [vmem:[%s2101] sm:$0xf]
      %v2103 = vld [vmem:[%s2101 + $0x4] sm:$0xf]
      %v2104 = vld [vmem:[%s2101 + $0x8] sm:$0xf]
      %v2105 = vld [vmem:[%s2101 + $0xc] sm:$0xf]
      %v2106 = vld [vmem:[%s2101 + $0x10] sm:$0xf]
      %v2107 = vld [vmem:[%s2101 + $0x14] sm:$0xf]
      %v2108 = vld [vmem:[%s2101 + $0x18] sm:$0xf]
      %v2109 = vld [vmem:[%s2101 + $0x1c] sm:$0xf]
      %v2110 = vld [vmem:[%s2101 + $0x20] sm:$0xf]
      %v2111 = vld [vmem:[%s2101 + $0x24] sm:$0xf]
      %v2112 = vld [vmem:[%s2101 + $0x28] sm:$0xf]
      %v2113 = vld [vmem:[%s2101 + $0x2c] sm:$0xf]
      %v2114 = vld [vmem:[%s2101 + $0x30] sm:$0xf]
      %v2115 = vld [vmem:[%s2101 + $0x34] sm:$0xf]
      %v2116 = vld [vmem:[%s2101 + $0x38] sm:$0xf]
      %v2117 = vld [vmem:[%s2101 + $0x3c] sm:$0xf]
      %v2118 = vld [vmem:[%s2101 + $0x40] sm:$0xf]
      %v2119 = vld [vmem:[%s2101 + $0x44] sm:$0xf]
      %v2120 = vld [vmem:[%s2101 + $0x48] sm:$0xf]
      %v2121 = vld [vmem:[%s2101 + $0x4c] sm:$0xf]
      %v2122 = vld [vmem:[%s2101 + $0x50] sm:$0xf]
      %v2123 = vld [vmem:[%s2101 + $0x54] sm:$0xf]
      %v2124 = vld [vmem:[%s2101 + $0x58] sm:$0xf]
      %v2125 = vld [vmem:[%s2101 + $0x5c] sm:$0xf]
      %v2126 = vld [vmem:[%s2101 + $0x60] sm:$0xf]
      %v2127 = vld [vmem:[%s2101 + $0x64] sm:$0xf]
      %v2128 = vld [vmem:[%s2101 + $0x68] sm:$0xf]
      %v2129 = vld [vmem:[%s2101 + $0x6c] sm:$0xf]
      %v2130 = vld [vmem:[%s2101 + $0x70] sm:$0xf]
      %v2131 = vld [vmem:[%s2101 + $0x74] sm:$0xf]
      %v2132 = vld [vmem:[%s2101 + $0x78] sm:$0xf]
      %v2133 = vld [vmem:[%s2101 + $0x7c] sm:$0xf]
      %v2134 = vld [vmem:[%s2101 + $0x80] sm:$0xf]
      %v2135 = vld [vmem:[%s2101 + $0x84] sm:$0xf]
      %v2136 = vld [vmem:[%s2101 + $0x88] sm:$0xf]
      %v2137 = vld [vmem:[%s2101 + $0x8c] sm:$0xf]
      %v2138 = vld [vmem:[%s2101 + $0x90] sm:$0xf]
      %v2139 = vld [vmem:[%s2101 + $0x94] sm:$0xf]
      %v2140 = vld [vmem:[%s2101 + $0x98] sm:$0xf]
      %v2141 = vld [vmem:[%s2101 + $0x9c] sm:$0xf]
      %v2142 = vld [vmem:[%s2101 + $0xa0] sm:$0xf]
      %v2143 = vld [vmem:[%s2101 + $0xa4] sm:$0xf]
      %v2144 = vld [vmem:[%s2101 + $0xa8] sm:$0xf]
      %v2145 = vld [vmem:[%s2101 + $0xac] sm:$0xf]
      %v2146 = vld [vmem:[%s2101 + $0xb0] sm:$0xf]
      %v2147 = vld [vmem:[%s2101 + $0xb4] sm:$0xf]
      %v2148 = vld [vmem:[%s2101 + $0xb8] sm:$0xf]
      %v2149 = vld [vmem:[%s2101 + $0xbc] sm:$0xf]
      %v2150 = vld [vmem:[%s2101 + $0xc0] sm:$0xf]
      %v2151 = vld [vmem:[%s2101 + $0xc4] sm:$0xf]
      %v2152 = vld [vmem:[%s2101 + $0xc8] sm:$0xf]
      %v2153 = vld [vmem:[%s2101 + $0xcc] sm:$0xf]
      %v2154 = vld [vmem:[%s2101 + $0xd0] sm:$0xf]
      %v2155 = vld [vmem:[%s2101 + $0xd4] sm:$0xf]
      %v2156 = vld [vmem:[%s2101 + $0xd8] sm:$0xf]
      %v2157 = vld [vmem:[%s2101 + $0xdc] sm:$0xf]
      %v2158 = vld [vmem:[%s2101 + $0xe0] sm:$0xf]
      %v2159 = vld [vmem:[%s2101 + $0xe4] sm:$0xf]
      %v2160 = vld [vmem:[%s2101 + $0xe8] sm:$0xf]
      %v2161 = vld [vmem:[%s2101 + $0xec] sm:$0xf]
      %v2162 = vld [vmem:[%s2101 + $0xf0] sm:$0xf]
      %v2163 = vld [vmem:[%s2101 + $0xf4] sm:$0xf]
      %v2164 = vld [vmem:[%s2101 + $0xf8] sm:$0xf]
      %v2165 = vld [vmem:[%s2101 + $0xfc] sm:$0xf]
      %v2230 = vunpack.c.l.b16 %v2102
      %v2231 = vunpack.c.l.b16 %v2103
      %v2232 = vunpack.c.l.b16 %v2104
      %v2233 = vunpack.c.l.b16 %v2105
      %v2234 = vunpack.c.l.b16 %v2106
      %v2235 = vunpack.c.l.b16 %v2107
      %v2236 = vunpack.c.l.b16 %v2108
      %v2237 = vunpack.c.l.b16 %v2109
      %v2238 = vunpack.c.l.b16 %v2110
      %v2239 = vunpack.c.l.b16 %v2111
      %v2240 = vunpack.c.l.b16 %v2112
      %v2241 = vunpack.c.l.b16 %v2113
      %v2242 = vunpack.c.l.b16 %v2114
      %v2243 = vunpack.c.l.b16 %v2115
      %v2244 = vunpack.c.l.b16 %v2116
      %v2245 = vunpack.c.l.b16 %v2117
      %v2246 = vunpack.c.l.b16 %v2118
      %v2247 = vunpack.c.l.b16 %v2119
      %v2248 = vunpack.c.l.b16 %v2120
      %v2249 = vunpack.c.l.b16 %v2121
      %v2250 = vunpack.c.l.b16 %v2122
      %v2251 = vunpack.c.l.b16 %v2123
      %v2252 = vunpack.c.l.b16 %v2124
      %v2253 = vunpack.c.l.b16 %v2125
      %v2254 = vunpack.c.l.b16 %v2126
      %v2255 = vunpack.c.l.b16 %v2127
      %v2256 = vunpack.c.l.b16 %v2128
      %v2257 = vunpack.c.l.b16 %v2129
      %v2258 = vunpack.c.l.b16 %v2130
      %v2259 = vunpack.c.l.b16 %v2131
      %v2260 = vunpack.c.l.b16 %v2132
      %v2261 = vunpack.c.l.b16 %v2133
      %v2262 = vunpack.c.l.b16 %v2134
      %v2263 = vunpack.c.l.b16 %v2135
      %v2264 = vunpack.c.l.b16 %v2136
      %v2265 = vunpack.c.l.b16 %v2137
      %v2266 = vunpack.c.l.b16 %v2138
      %v2267 = vunpack.c.l.b16 %v2139
      %v2268 = vunpack.c.l.b16 %v2140
      %v2269 = vunpack.c.l.b16 %v2141
      %v2270 = vunpack.c.l.b16 %v2142
      %v2271 = vunpack.c.l.b16 %v2143
      %v2272 = vunpack.c.l.b16 %v2144
      %v2273 = vunpack.c.l.b16 %v2145
      %v2274 = vunpack.c.l.b16 %v2146
      %v2275 = vunpack.c.l.b16 %v2147
      %v2276 = vunpack.c.l.b16 %v2148
      %v2277 = vunpack.c.l.b16 %v2149
      %v2278 = vunpack.c.l.b16 %v2150
      %v2279 = vunpack.c.l.b16 %v2151
      %v2280 = vunpack.c.l.b16 %v2152
      %v2281 = vunpack.c.l.b16 %v2153
      %v2282 = vunpack.c.l.b16 %v2154
      %v2283 = vunpack.c.l.b16 %v2155
      %v2284 = vunpack.c.l.b16 %v2156
      %v2285 = vunpack.c.l.b16 %v2157
      %v2286 = vunpack.c.l.b16 %v2158
      %v2287 = vunpack.c.l.b16 %v2159
      %v2288 = vunpack.c.l.b16 %v2160
      %v2289 = vunpack.c.l.b16 %v2161
      %v2290 = vunpack.c.l.b16 %v2162
      %v2291 = vunpack.c.l.b16 %v2163
      %v2292 = vunpack.c.l.b16 %v2164
      %v2293 = vunpack.c.l.b16 %v2165
      %v2294 = vpack.c.b16 %v2231, %v2230
      %v2295 = vpack.c.b16 %v2233, %v2232
      %v2296 = vpack.c.b16 %v2235, %v2234
      %v2297 = vpack.c.b16 %v2237, %v2236
      %v2298 = vpack.c.b16 %v2239, %v2238
      %v2299 = vpack.c.b16 %v2241, %v2240
      %v2300 = vpack.c.b16 %v2243, %v2242
      %v2301 = vpack.c.b16 %v2245, %v2244
      %v2302 = vpack.c.b16 %v2247, %v2246
      %v2303 = vpack.c.b16 %v2249, %v2248
      %v2304 = vpack.c.b16 %v2251, %v2250
      %v2305 = vpack.c.b16 %v2253, %v2252
      %v2306 = vpack.c.b16 %v2255, %v2254
      %v2307 = vpack.c.b16 %v2257, %v2256
      %v2308 = vpack.c.b16 %v2259, %v2258
      %v2309 = vpack.c.b16 %v2261, %v2260
      %v2310 = vpack.c.b16 %v2263, %v2262
      %v2311 = vpack.c.b16 %v2265, %v2264
      %v2312 = vpack.c.b16 %v2267, %v2266
      %v2313 = vpack.c.b16 %v2269, %v2268
      %v2314 = vpack.c.b16 %v2271, %v2270
      %v2315 = vpack.c.b16 %v2273, %v2272
      %v2316 = vpack.c.b16 %v2275, %v2274
      %v2317 = vpack.c.b16 %v2277, %v2276
      %v2318 = vpack.c.b16 %v2279, %v2278
      %v2319 = vpack.c.b16 %v2281, %v2280
      %v2320 = vpack.c.b16 %v2283, %v2282
      %v2321 = vpack.c.b16 %v2285, %v2284
      %v2322 = vpack.c.b16 %v2287, %v2286
      %v2323 = vpack.c.b16 %v2289, %v2288
      %v2324 = vpack.c.b16 %v2291, %v2290
      %v2325 = vpack.c.b16 %v2293, %v2292
      %2358 = vmatprep.subr.bf16.mxu0 0
      %2359 = vmatpush1.bf16.msra.mxu0 %v2301
      %2360 = vmatprep.subr.bf16.mxu0 0
      %2361 = vmatpush1.bf16.msra.mxu0 %v2300
      %2362 = vmatprep.subr.bf16.mxu0 0
      %2363 = vmatpush1.bf16.msra.mxu0 %v2299
      %2364 = vmatprep.subr.bf16.mxu0 0
      %2365 = vmatpush1.bf16.msra.mxu0 %v2298
      %2366 = vmatprep.subr.bf16.mxu0 0
      %2367 = vmatpush1.bf16.msra.mxu0 %v2297
      %2368 = vmatprep.subr.bf16.mxu0 0
      %2369 = vmatpush1.bf16.msra.mxu0 %v2296
      %2370 = vmatprep.subr.bf16.mxu0 0
      %2371 = vmatpush1.bf16.msra.mxu0 %v2295
      %2372 = vmatprep.subr.bf16.mxu0 0
      %2373 = vmatpush1.bf16.msra.mxu0 %v2294
      %2374 = vmatprep.subr.bf16.mxu0 0
      %2375 = vmatpush2.bf16.msra.mxu0 %v2309
      %2376 = vmatprep.subr.bf16.mxu0 0
      %2377 = vmatpush2.bf16.msra.mxu0 %v2308
      %2378 = vmatprep.subr.bf16.mxu0 0
      %2379 = vmatpush2.bf16.msra.mxu0 %v2307
      %2380 = vmatprep.subr.bf16.mxu0 0
      %2381 = vmatpush2.bf16.msra.mxu0 %v2306
      %2382 = vmatprep.subr.bf16.mxu0 0
      %2383 = vmatpush2.bf16.msra.mxu0 %v2305
      %2384 = vmatprep.subr.bf16.mxu0 0
      %2385 = vmatpush2.bf16.msra.mxu0 %v2304
      %2386 = vmatprep.subr.bf16.mxu0 0
      %2387 = vmatpush2.bf16.msra.mxu0 %v2303
      %2388 = vmatprep.subr.bf16.mxu0 0
      %2389 = vmatpush2.bf16.msra.mxu0 %v2302
      %2390 = vmatprep.mubr.bf16.mxu0 %v2086
      %2391 = vmatmul.mubr.bf16.gmra.mxu0 %v2085
      %v2392 = vpop.f32.mrf.mxu0
      %v2393 = vadd.f32 0.0, %v2392
      %v2394 = vpop.f32.mrf.mxu0
      %v2395 = vpop.f32.mrf.mxu0
      %v2396 = vadd.f32 0.0, %v2395
      %v2397 = vpop.f32.mrf.mxu0
      %2398 = vmatprep.mubr.bf16.mxu0 %v2090
      %2399 = vmatmul.mubr.bf16.gmra.mxu0 %v2089
      %v2400 = vpop.f32.mrf.mxu0
      %v2401 = vadd.f32 0.0, %v2400
      %v2402 = vpop.f32.mrf.mxu0
      %v2403 = vpop.f32.mrf.mxu0
      %v2404 = vadd.f32 0.0, %v2403
      %v2405 = vpop.f32.mrf.mxu0
      %2406 = vmatprep.mubr.bf16.mxu0 %v2094
      %2407 = vmatmul.mubr.bf16.gmra.mxu0 %v2093
      %v2408 = vpop.f32.mrf.mxu0
      %v2409 = vadd.f32 0.0, %v2408
      %v2410 = vpop.f32.mrf.mxu0
      %v2411 = vpop.f32.mrf.mxu0
      %v2412 = vadd.f32 0.0, %v2411
      %v2413 = vpop.f32.mrf.mxu0
      %2414 = vmatprep.mubr.bf16.mxu0 %v2098
      %2415 = vmatmul.mubr.bf16.gmra.mxu0 %v2097
      %v2416 = vpop.f32.mrf.mxu0
      %v2417 = vadd.f32 0.0, %v2416
      %v2418 = vpop.f32.mrf.mxu0
      %v2419 = vpop.f32.mrf.mxu0
      %v2420 = vadd.f32 0.0, %v2419
      %v2421 = vpop.f32.mrf.mxu0
      %2422 = vdwg.mxu0
      %2423 = vmatprep.subr.bf16.mxu0 0
      %2424 = vmatpush1.bf16.msra.mxu0 %v2317
      %2425 = vmatprep.subr.bf16.mxu0 0
      %2426 = vmatpush1.bf16.msra.mxu0 %v2316
      %2427 = vmatprep.subr.bf16.mxu0 0
      %2428 = vmatpush1.bf16.msra.mxu0 %v2315
      %2429 = vmatprep.subr.bf16.mxu0 0
      %2430 = vmatpush1.bf16.msra.mxu0 %v2314
      %2431 = vmatprep.subr.bf16.mxu0 0
      %2432 = vmatpush1.bf16.msra.mxu0 %v2313
      %2433 = vmatprep.subr.bf16.mxu0 0
      %2434 = vmatpush1.bf16.msra.mxu0 %v2312
      %2435 = vmatprep.subr.bf16.mxu0 0
      %2436 = vmatpush1.bf16.msra.mxu0 %v2311
      %2437 = vmatprep.subr.bf16.mxu0 0
      %2438 = vmatpush1.bf16.msra.mxu0 %v2310
      %2439 = vmatprep.subr.bf16.mxu0 0
      %2440 = vmatpush2.bf16.msra.mxu0 %v2325
      %2441 = vmatprep.subr.bf16.mxu0 0
      %2442 = vmatpush2.bf16.msra.mxu0 %v2324
      %2443 = vmatprep.subr.bf16.mxu0 0
      %2444 = vmatpush2.bf16.msra.mxu0 %v2323
      %2445 = vmatprep.subr.bf16.mxu0 0
      %2446 = vmatpush2.bf16.msra.mxu0 %v2322
      %2447 = vmatprep.subr.bf16.mxu0 0
      %2448 = vmatpush2.bf16.msra.mxu0 %v2321
      %2449 = vmatprep.subr.bf16.mxu0 0
      %2450 = vmatpush2.bf16.msra.mxu0 %v2320
      %2451 = vmatprep.subr.bf16.mxu0 0
      %2452 = vmatpush2.bf16.msra.mxu0 %v2319
      %2453 = vmatprep.subr.bf16.mxu0 0
      %2454 = vmatpush2.bf16.msra.mxu0 %v2318
      %2455 = vmatprep.mubr.bf16.mxu0 %v2088
      %2456 = vmatmul.mubr.bf16.gmra.mxu0 %v2087
      %v2457 = vpop.f32.mrf.mxu0
      %v2458 = vadd.f32 %v2393, %v2457
      %v2459 = vpop.f32.mrf.mxu0
      %v2460 = vpop.f32.mrf.mxu0
      %v2461 = vadd.f32 %v2396, %v2460
      %v2462 = vpop.f32.mrf.mxu0
      %2463 = vmatprep.mubr.bf16.mxu0 %v2092
      %2464 = vmatmul.mubr.bf16.gmra.mxu0 %v2091
      %v2465 = vpop.f32.mrf.mxu0
      %v2466 = vadd.f32 %v2401, %v2465
      %v2467 = vpop.f32.mrf.mxu0
      %v2468 = vpop.f32.mrf.mxu0
      %v2469 = vadd.f32 %v2404, %v2468
      %v2470 = vpop.f32.mrf.mxu0
      %2471 = vmatprep.mubr.bf16.mxu0 %v2096
      %2472 = vmatmul.mubr.bf16.gmra.mxu0 %v2095
      %v2473 = vpop.f32.mrf.mxu0
      %v2474 = vadd.f32 %v2409, %v2473
      %v2475 = vpop.f32.mrf.mxu0
      %v2476 = vpop.f32.mrf.mxu0
      %v2477 = vadd.f32 %v2412, %v2476
      %v2478 = vpop.f32.mrf.mxu0
      %2479 = vmatprep.mubr.bf16.mxu0 %v2100
      %2480 = vmatmul.mubr.bf16.gmra.mxu0 %v2099
      %v2481 = vpop.f32.mrf.mxu0
      %v2482 = vadd.f32 %v2417, %v2481
      %v2483 = vpop.f32.mrf.mxu0
      %v2484 = vpop.f32.mrf.mxu0
      %v2485 = vadd.f32 %v2420, %v2484
      %v2486 = vpop.f32.mrf.mxu0
      %2487 = vdwg.mxu0
      %v2488 = vadd.f32 %v1794, %v2458
      %v2489 = vadd.f32 %v1797, %v2461
      %v2490 = vadd.f32 %v1802, %v2466
      %v2491 = vadd.f32 %v1805, %v2469
      %v2492 = vadd.f32 %v1810, %v2474
      %v2493 = vadd.f32 %v1813, %v2477
      %v2494 = vadd.f32 %v1818, %v2482
      %v2495 = vadd.f32 %v1821, %v2485
      %v2496 = vld [vmem:[#allocation3] sm:$0xff]
      %v2497 = vld [vmem:[#allocation3 + $0x8] sm:$0xff]
      %v2498 = vld [vmem:[#allocation3 + $0x10] sm:$0xff]
      %v2499 = vld [vmem:[#allocation3 + $0x18] sm:$0xff]
      %v2500 = vld [vmem:[#allocation3 + $0x20] sm:$0xff]
      %v2501 = vld [vmem:[#allocation3 + $0x28] sm:$0xff]
      %v2502 = vld [vmem:[#allocation3 + $0x30] sm:$0xff]
      %v2503 = vld [vmem:[#allocation3 + $0x38] sm:$0xff]
      %v2504 = vld [vmem:[#allocation3 + $0x40] sm:$0xff]
      %v2505 = vld [vmem:[#allocation3 + $0x48] sm:$0xff]
      %v2506 = vld [vmem:[#allocation3 + $0x50] sm:$0xff]
      %v2507 = vld [vmem:[#allocation3 + $0x58] sm:$0xff]
      %v2508 = vld [vmem:[#allocation3 + $0x60] sm:$0xff]
      %v2509 = vld [vmem:[#allocation3 + $0x68] sm:$0xff]
      %v2510 = vld [vmem:[#allocation3 + $0x70] sm:$0xff]
      %v2511 = vld [vmem:[#allocation3 + $0x78] sm:$0xff]
      %v2512 = vld [vmem:[#allocation3 + $0x80] sm:$0xff]
      %v2513 = vld [vmem:[#allocation3 + $0x88] sm:$0xff]
      %v2514 = vld [vmem:[#allocation3 + $0x90] sm:$0xff]
      %v2515 = vld [vmem:[#allocation3 + $0x98] sm:$0xff]
      %v2516 = vld [vmem:[#allocation3 + $0xa0] sm:$0xff]
      %v2517 = vld [vmem:[#allocation3 + $0xa8] sm:$0xff]
      %v2518 = vld [vmem:[#allocation3 + $0xb0] sm:$0xff]
      %v2519 = vld [vmem:[#allocation3 + $0xb8] sm:$0xff]
      %v2520 = vld [vmem:[#allocation3 + $0xc0] sm:$0xff]
      %v2521 = vld [vmem:[#allocation3 + $0xc8] sm:$0xff]
      %v2522 = vld [vmem:[#allocation3 + $0xd0] sm:$0xff]
      %v2523 = vld [vmem:[#allocation3 + $0xd8] sm:$0xff]
      %v2524 = vld [vmem:[#allocation3 + $0xe0] sm:$0xff]
      %v2525 = vld [vmem:[#allocation3 + $0xe8] sm:$0xff]
      %v2526 = vld [vmem:[#allocation3 + $0xf0] sm:$0xff]
      %v2527 = vld [vmem:[#allocation3 + $0xf8] sm:$0xff]
      %v2528 = vpack.c.bf16 %v2500, %v2496
      %v2529 = vpack.c.bf16 %v2501, %v2497
      %v2530 = vpack.c.bf16 %v2502, %v2498
      %v2531 = vpack.c.bf16 %v2503, %v2499
      %v2532 = vpack.c.bf16 %v2508, %v2504
      %v2533 = vpack.c.bf16 %v2509, %v2505
      %v2534 = vpack.c.bf16 %v2510, %v2506
      %v2535 = vpack.c.bf16 %v2511, %v2507
      %v2536 = vpack.c.bf16 %v2516, %v2512
      %v2537 = vpack.c.bf16 %v2517, %v2513
      %v2538 = vpack.c.bf16 %v2518, %v2514
      %v2539 = vpack.c.bf16 %v2519, %v2515
      %v2540 = vpack.c.bf16 %v2524, %v2520
      %v2541 = vpack.c.bf16 %v2525, %v2521
      %v2542 = vpack.c.bf16 %v2526, %v2522
      %v2543 = vpack.c.bf16 %v2527, %v2523
      %s2544 = scalar_lea.vmem %s2, 768
      %v2545 = vld [vmem:[%s2544] sm:$0xf]
      %v2546 = vld [vmem:[%s2544 + $0x4] sm:$0xf]
      %v2547 = vld [vmem:[%s2544 + $0x8] sm:$0xf]
      %v2548 = vld [vmem:[%s2544 + $0xc] sm:$0xf]
      %v2549 = vld [vmem:[%s2544 + $0x10] sm:$0xf]
      %v2550 = vld [vmem:[%s2544 + $0x14] sm:$0xf]
      %v2551 = vld [vmem:[%s2544 + $0x18] sm:$0xf]
      %v2552 = vld [vmem:[%s2544 + $0x1c] sm:$0xf]
      %v2553 = vld [vmem:[%s2544 + $0x20] sm:$0xf]
      %v2554 = vld [vmem:[%s2544 + $0x24] sm:$0xf]
      %v2555 = vld [vmem:[%s2544 + $0x28] sm:$0xf]
      %v2556 = vld [vmem:[%s2544 + $0x2c] sm:$0xf]
      %v2557 = vld [vmem:[%s2544 + $0x30] sm:$0xf]
      %v2558 = vld [vmem:[%s2544 + $0x34] sm:$0xf]
      %v2559 = vld [vmem:[%s2544 + $0x38] sm:$0xf]
      %v2560 = vld [vmem:[%s2544 + $0x3c] sm:$0xf]
      %v2561 = vld [vmem:[%s2544 + $0x40] sm:$0xf]
      %v2562 = vld [vmem:[%s2544 + $0x44] sm:$0xf]
      %v2563 = vld [vmem:[%s2544 + $0x48] sm:$0xf]
      %v2564 = vld [vmem:[%s2544 + $0x4c] sm:$0xf]
      %v2565 = vld [vmem:[%s2544 + $0x50] sm:$0xf]
      %v2566 = vld [vmem:[%s2544 + $0x54] sm:$0xf]
      %v2567 = vld [vmem:[%s2544 + $0x58] sm:$0xf]
      %v2568 = vld [vmem:[%s2544 + $0x5c] sm:$0xf]
      %v2569 = vld [vmem:[%s2544 + $0x60] sm:$0xf]
      %v2570 = vld [vmem:[%s2544 + $0x64] sm:$0xf]
      %v2571 = vld [vmem:[%s2544 + $0x68] sm:$0xf]
      %v2572 = vld [vmem:[%s2544 + $0x6c] sm:$0xf]
      %v2573 = vld [vmem:[%s2544 + $0x70] sm:$0xf]
      %v2574 = vld [vmem:[%s2544 + $0x74] sm:$0xf]
      %v2575 = vld [vmem:[%s2544 + $0x78] sm:$0xf]
      %v2576 = vld [vmem:[%s2544 + $0x7c] sm:$0xf]
      %v2577 = vld [vmem:[%s2544 + $0x80] sm:$0xf]
      %v2578 = vld [vmem:[%s2544 + $0x84] sm:$0xf]
      %v2579 = vld [vmem:[%s2544 + $0x88] sm:$0xf]
      %v2580 = vld [vmem:[%s2544 + $0x8c] sm:$0xf]
      %v2581 = vld [vmem:[%s2544 + $0x90] sm:$0xf]
      %v2582 = vld [vmem:[%s2544 + $0x94] sm:$0xf]
      %v2583 = vld [vmem:[%s2544 + $0x98] sm:$0xf]
      %v2584 = vld [vmem:[%s2544 + $0x9c] sm:$0xf]
      %v2585 = vld [vmem:[%s2544 + $0xa0] sm:$0xf]
      %v2586 = vld [vmem:[%s2544 + $0xa4] sm:$0xf]
      %v2587 = vld [vmem:[%s2544 + $0xa8] sm:$0xf]
      %v2588 = vld [vmem:[%s2544 + $0xac] sm:$0xf]
      %v2589 = vld [vmem:[%s2544 + $0xb0] sm:$0xf]
      %v2590 = vld [vmem:[%s2544 + $0xb4] sm:$0xf]
      %v2591 = vld [vmem:[%s2544 + $0xb8] sm:$0xf]
      %v2592 = vld [vmem:[%s2544 + $0xbc] sm:$0xf]
      %v2593 = vld [vmem:[%s2544 + $0xc0] sm:$0xf]
      %v2594 = vld [vmem:[%s2544 + $0xc4] sm:$0xf]
      %v2595 = vld [vmem:[%s2544 + $0xc8] sm:$0xf]
      %v2596 = vld [vmem:[%s2544 + $0xcc] sm:$0xf]
      %v2597 = vld [vmem:[%s2544 + $0xd0] sm:$0xf]
      %v2598 = vld [vmem:[%s2544 + $0xd4] sm:$0xf]
      %v2599 = vld [vmem:[%s2544 + $0xd8] sm:$0xf]
      %v2600 = vld [vmem:[%s2544 + $0xdc] sm:$0xf]
      %v2601 = vld [vmem:[%s2544 + $0xe0] sm:$0xf]
      %v2602 = vld [vmem:[%s2544 + $0xe4] sm:$0xf]
      %v2603 = vld [vmem:[%s2544 + $0xe8] sm:$0xf]
      %v2604 = vld [vmem:[%s2544 + $0xec] sm:$0xf]
      %v2605 = vld [vmem:[%s2544 + $0xf0] sm:$0xf]
      %v2606 = vld [vmem:[%s2544 + $0xf4] sm:$0xf]
      %v2607 = vld [vmem:[%s2544 + $0xf8] sm:$0xf]
      %v2608 = vld [vmem:[%s2544 + $0xfc] sm:$0xf]
      %v2673 = vunpack.c.l.b16 %v2545
      %v2674 = vunpack.c.l.b16 %v2546
      %v2675 = vunpack.c.l.b16 %v2547
      %v2676 = vunpack.c.l.b16 %v2548
      %v2677 = vunpack.c.l.b16 %v2549
      %v2678 = vunpack.c.l.b16 %v2550
      %v2679 = vunpack.c.l.b16 %v2551
      %v2680 = vunpack.c.l.b16 %v2552
      %v2681 = vunpack.c.l.b16 %v2553
      %v2682 = vunpack.c.l.b16 %v2554
      %v2683 = vunpack.c.l.b16 %v2555
      %v2684 = vunpack.c.l.b16 %v2556
      %v2685 = vunpack.c.l.b16 %v2557
      %v2686 = vunpack.c.l.b16 %v2558
      %v2687 = vunpack.c.l.b16 %v2559
      %v2688 = vunpack.c.l.b16 %v2560
      %v2689 = vunpack.c.l.b16 %v2561
      %v2690 = vunpack.c.l.b16 %v2562
      %v2691 = vunpack.c.l.b16 %v2563
      %v2692 = vunpack.c.l.b16 %v2564
      %v2693 = vunpack.c.l.b16 %v2565
      %v2694 = vunpack.c.l.b16 %v2566
      %v2695 = vunpack.c.l.b16 %v2567
      %v2696 = vunpack.c.l.b16 %v2568
      %v2697 = vunpack.c.l.b16 %v2569
      %v2698 = vunpack.c.l.b16 %v2570
      %v2699 = vunpack.c.l.b16 %v2571
      %v2700 = vunpack.c.l.b16 %v2572
      %v2701 = vunpack.c.l.b16 %v2573
      %v2702 = vunpack.c.l.b16 %v2574
      %v2703 = vunpack.c.l.b16 %v2575
      %v2704 = vunpack.c.l.b16 %v2576
      %v2705 = vunpack.c.l.b16 %v2577
      %v2706 = vunpack.c.l.b16 %v2578
      %v2707 = vunpack.c.l.b16 %v2579
      %v2708 = vunpack.c.l.b16 %v2580
      %v2709 = vunpack.c.l.b16 %v2581
      %v2710 = vunpack.c.l.b16 %v2582
      %v2711 = vunpack.c.l.b16 %v2583
      %v2712 = vunpack.c.l.b16 %v2584
      %v2713 = vunpack.c.l.b16 %v2585
      %v2714 = vunpack.c.l.b16 %v2586
      %v2715 = vunpack.c.l.b16 %v2587
      %v2716 = vunpack.c.l.b16 %v2588
      %v2717 = vunpack.c.l.b16 %v2589
      %v2718 = vunpack.c.l.b16 %v2590
      %v2719 = vunpack.c.l.b16 %v2591
      %v2720 = vunpack.c.l.b16 %v2592
      %v2721 = vunpack.c.l.b16 %v2593
      %v2722 = vunpack.c.l.b16 %v2594
      %v2723 = vunpack.c.l.b16 %v2595
      %v2724 = vunpack.c.l.b16 %v2596
      %v2725 = vunpack.c.l.b16 %v2597
      %v2726 = vunpack.c.l.b16 %v2598
      %v2727 = vunpack.c.l.b16 %v2599
      %v2728 = vunpack.c.l.b16 %v2600
      %v2729 = vunpack.c.l.b16 %v2601
      %v2730 = vunpack.c.l.b16 %v2602
      %v2731 = vunpack.c.l.b16 %v2603
      %v2732 = vunpack.c.l.b16 %v2604
      %v2733 = vunpack.c.l.b16 %v2605
      %v2734 = vunpack.c.l.b16 %v2606
      %v2735 = vunpack.c.l.b16 %v2607
      %v2736 = vunpack.c.l.b16 %v2608
      %v2737 = vpack.c.b16 %v2674, %v2673
      %v2738 = vpack.c.b16 %v2676, %v2675
      %v2739 = vpack.c.b16 %v2678, %v2677
      %v2740 = vpack.c.b16 %v2680, %v2679
      %v2741 = vpack.c.b16 %v2682, %v2681
      %v2742 = vpack.c.b16 %v2684, %v2683
      %v2743 = vpack.c.b16 %v2686, %v2685
      %v2744 = vpack.c.b16 %v2688, %v2687
      %v2745 = vpack.c.b16 %v2690, %v2689
      %v2746 = vpack.c.b16 %v2692, %v2691
      %v2747 = vpack.c.b16 %v2694, %v2693
      %v2748 = vpack.c.b16 %v2696, %v2695
      %v2749 = vpack.c.b16 %v2698, %v2697
      %v2750 = vpack.c.b16 %v2700, %v2699
      %v2751 = vpack.c.b16 %v2702, %v2701
      %v2752 = vpack.c.b16 %v2704, %v2703
      %v2753 = vpack.c.b16 %v2706, %v2705
      %v2754 = vpack.c.b16 %v2708, %v2707
      %v2755 = vpack.c.b16 %v2710, %v2709
      %v2756 = vpack.c.b16 %v2712, %v2711
      %v2757 = vpack.c.b16 %v2714, %v2713
      %v2758 = vpack.c.b16 %v2716, %v2715
      %v2759 = vpack.c.b16 %v2718, %v2717
      %v2760 = vpack.c.b16 %v2720, %v2719
      %v2761 = vpack.c.b16 %v2722, %v2721
      %v2762 = vpack.c.b16 %v2724, %v2723
      %v2763 = vpack.c.b16 %v2726, %v2725
      %v2764 = vpack.c.b16 %v2728, %v2727
      %v2765 = vpack.c.b16 %v2730, %v2729
      %v2766 = vpack.c.b16 %v2732, %v2731
      %v2767 = vpack.c.b16 %v2734, %v2733
      %v2768 = vpack.c.b16 %v2736, %v2735
      %2801 = vmatprep.subr.bf16.mxu0 0
      %2802 = vmatpush1.bf16.msra.mxu0 %v2744
      %2803 = vmatprep.subr.bf16.mxu0 0
      %2804 = vmatpush1.bf16.msra.mxu0 %v2743
      %2805 = vmatprep.subr.bf16.mxu0 0
      %2806 = vmatpush1.bf16.msra.mxu0 %v2742
      %2807 = vmatprep.subr.bf16.mxu0 0
      %2808 = vmatpush1.bf16.msra.mxu0 %v2741
      %2809 = vmatprep.subr.bf16.mxu0 0
      %2810 = vmatpush1.bf16.msra.mxu0 %v2740
      %2811 = vmatprep.subr.bf16.mxu0 0
      %2812 = vmatpush1.bf16.msra.mxu0 %v2739
      %2813 = vmatprep.subr.bf16.mxu0 0
      %2814 = vmatpush1.bf16.msra.mxu0 %v2738
      %2815 = vmatprep.subr.bf16.mxu0 0
      %2816 = vmatpush1.bf16.msra.mxu0 %v2737
      %2817 = vmatprep.subr.bf16.mxu0 0
      %2818 = vmatpush2.bf16.msra.mxu0 %v2752
      %2819 = vmatprep.subr.bf16.mxu0 0
      %2820 = vmatpush2.bf16.msra.mxu0 %v2751
      %2821 = vmatprep.subr.bf16.mxu0 0
      %2822 = vmatpush2.bf16.msra.mxu0 %v2750
      %2823 = vmatprep.subr.bf16.mxu0 0
      %2824 = vmatpush2.bf16.msra.mxu0 %v2749
      %2825 = vmatprep.subr.bf16.mxu0 0
      %2826 = vmatpush2.bf16.msra.mxu0 %v2748
      %2827 = vmatprep.subr.bf16.mxu0 0
      %2828 = vmatpush2.bf16.msra.mxu0 %v2747
      %2829 = vmatprep.subr.bf16.mxu0 0
      %2830 = vmatpush2.bf16.msra.mxu0 %v2746
      %2831 = vmatprep.subr.bf16.mxu0 0
      %2832 = vmatpush2.bf16.msra.mxu0 %v2745
      %2833 = vmatprep.mubr.bf16.mxu0 %v2529
      %2834 = vmatmul.mubr.bf16.gmra.mxu0 %v2528
      %v2835 = vpop.f32.mrf.mxu0
      %v2836 = vadd.f32 0.0, %v2835
      %v2837 = vpop.f32.mrf.mxu0
      %v2838 = vpop.f32.mrf.mxu0
      %v2839 = vadd.f32 0.0, %v2838
      %v2840 = vpop.f32.mrf.mxu0
      %2841 = vmatprep.mubr.bf16.mxu0 %v2533
      %2842 = vmatmul.mubr.bf16.gmra.mxu0 %v2532
      %v2843 = vpop.f32.mrf.mxu0
      %v2844 = vadd.f32 0.0, %v2843
      %v2845 = vpop.f32.mrf.mxu0
      %v2846 = vpop.f32.mrf.mxu0
      %v2847 = vadd.f32 0.0, %v2846
      %v2848 = vpop.f32.mrf.mxu0
      %2849 = vmatprep.mubr.bf16.mxu0 %v2537
      %2850 = vmatmul.mubr.bf16.gmra.mxu0 %v2536
      %v2851 = vpop.f32.mrf.mxu0
      %v2852 = vadd.f32 0.0, %v2851
      %v2853 = vpop.f32.mrf.mxu0
      %v2854 = vpop.f32.mrf.mxu0
      %v2855 = vadd.f32 0.0, %v2854
      %v2856 = vpop.f32.mrf.mxu0
      %2857 = vmatprep.mubr.bf16.mxu0 %v2541
      %2858 = vmatmul.mubr.bf16.gmra.mxu0 %v2540
      %v2859 = vpop.f32.mrf.mxu0
      %v2860 = vadd.f32 0.0, %v2859
      %v2861 = vpop.f32.mrf.mxu0
      %v2862 = vpop.f32.mrf.mxu0
      %v2863 = vadd.f32 0.0, %v2862
      %v2864 = vpop.f32.mrf.mxu0
      %2865 = vdwg.mxu0
      %2866 = vmatprep.subr.bf16.mxu0 0
      %2867 = vmatpush1.bf16.msra.mxu0 %v2760
      %2868 = vmatprep.subr.bf16.mxu0 0
      %2869 = vmatpush1.bf16.msra.mxu0 %v2759
      %2870 = vmatprep.subr.bf16.mxu0 0
      %2871 = vmatpush1.bf16.msra.mxu0 %v2758
      %2872 = vmatprep.subr.bf16.mxu0 0
      %2873 = vmatpush1.bf16.msra.mxu0 %v2757
      %2874 = vmatprep.subr.bf16.mxu0 0
      %2875 = vmatpush1.bf16.msra.mxu0 %v2756
      %2876 = vmatprep.subr.bf16.mxu0 0
      %2877 = vmatpush1.bf16.msra.mxu0 %v2755
      %2878 = vmatprep.subr.bf16.mxu0 0
      %2879 = vmatpush1.bf16.msra.mxu0 %v2754
      %2880 = vmatprep.subr.bf16.mxu0 0
      %2881 = vmatpush1.bf16.msra.mxu0 %v2753
      %2882 = vmatprep.subr.bf16.mxu0 0
      %2883 = vmatpush2.bf16.msra.mxu0 %v2768
      %2884 = vmatprep.subr.bf16.mxu0 0
      %2885 = vmatpush2.bf16.msra.mxu0 %v2767
      %2886 = vmatprep.subr.bf16.mxu0 0
      %2887 = vmatpush2.bf16.msra.mxu0 %v2766
      %2888 = vmatprep.subr.bf16.mxu0 0
      %2889 = vmatpush2.bf16.msra.mxu0 %v2765
      %2890 = vmatprep.subr.bf16.mxu0 0
      %2891 = vmatpush2.bf16.msra.mxu0 %v2764
      %2892 = vmatprep.subr.bf16.mxu0 0
      %2893 = vmatpush2.bf16.msra.mxu0 %v2763
      %2894 = vmatprep.subr.bf16.mxu0 0
      %2895 = vmatpush2.bf16.msra.mxu0 %v2762
      %2896 = vmatprep.subr.bf16.mxu0 0
      %2897 = vmatpush2.bf16.msra.mxu0 %v2761
      %2898 = vmatprep.mubr.bf16.mxu0 %v2531
      %2899 = vmatmul.mubr.bf16.gmra.mxu0 %v2530
      %v2900 = vpop.f32.mrf.mxu0
      %v2901 = vadd.f32 %v2836, %v2900
      %v2902 = vpop.f32.mrf.mxu0
      %v2903 = vpop.f32.mrf.mxu0
      %v2904 = vadd.f32 %v2839, %v2903
      %v2905 = vpop.f32.mrf.mxu0
      %2906 = vmatprep.mubr.bf16.mxu0 %v2535
      %2907 = vmatmul.mubr.bf16.gmra.mxu0 %v2534
      %v2908 = vpop.f32.mrf.mxu0
      %v2909 = vadd.f32 %v2844, %v2908
      %v2910 = vpop.f32.mrf.mxu0
      %v2911 = vpop.f32.mrf.mxu0
      %v2912 = vadd.f32 %v2847, %v2911
      %v2913 = vpop.f32.mrf.mxu0
      %2914 = vmatprep.mubr.bf16.mxu0 %v2539
      %2915 = vmatmul.mubr.bf16.gmra.mxu0 %v2538
      %v2916 = vpop.f32.mrf.mxu0
      %v2917 = vadd.f32 %v2852, %v2916
      %v2918 = vpop.f32.mrf.mxu0
      %v2919 = vpop.f32.mrf.mxu0
      %v2920 = vadd.f32 %v2855, %v2919
      %v2921 = vpop.f32.mrf.mxu0
      %2922 = vmatprep.mubr.bf16.mxu0 %v2543
      %2923 = vmatmul.mubr.bf16.gmra.mxu0 %v2542
      %v2924 = vpop.f32.mrf.mxu0
      %v2925 = vadd.f32 %v2860, %v2924
      %v2926 = vpop.f32.mrf.mxu0
      %v2927 = vpop.f32.mrf.mxu0
      %v2928 = vadd.f32 %v2863, %v2927
      %v2929 = vpop.f32.mrf.mxu0
      %2930 = vdwg.mxu0
      %v2931 = vadd.f32 %v2488, %v2901
      %v2932 = vadd.f32 %v2489, %v2904
      %v2933 = vadd.f32 %v2490, %v2909
      %v2934 = vadd.f32 %v2491, %v2912
      %v2935 = vadd.f32 %v2492, %v2917
      %v2936 = vadd.f32 %v2493, %v2920
      %v2937 = vadd.f32 %v2494, %v2925
      %v2938 = vadd.f32 %v2495, %v2928
      %v2939 = vld [vmem:[%s3] sm:$0x1]
      %v2941 = vlaneseq
      %v2942 = vshrl.u32 %v2941, 7
      %v2943 = vsub.s32 0, %v2942
      %v2944 = vrot.slane %v2939, %v2943
      %v2946 = vadd.f32 %v2931, %v2944
      %v2947 = vadd.f32 %v2932, %v2944
      %v2948 = vadd.f32 %v2933, %v2944
      %v2949 = vadd.f32 %v2934, %v2944
      %v2950 = vadd.f32 %v2935, %v2944
      %v2951 = vadd.f32 %v2936, %v2944
      %v2952 = vadd.f32 %v2937, %v2944
      %v2953 = vadd.f32 %v2938, %v2944
      %vm2954 = vcmp.ge.f32.partialorder %v2946, 0.0
      %vm2955 = vcmp.ge.f32.partialorder %v2947, 0.0
      %vm2956 = vcmp.ge.f32.partialorder %v2948, 0.0
      %vm2957 = vcmp.ge.f32.partialorder %v2949, 0.0
      %vm2958 = vcmp.ge.f32.partialorder %v2950, 0.0
      %vm2959 = vcmp.ge.f32.partialorder %v2951, 0.0
      %vm2960 = vcmp.ge.f32.partialorder %v2952, 0.0
      %vm2961 = vcmp.ge.f32.partialorder %v2953, 0.0
      %v2962 = vmul.f32 %v2946, 0.2
      %v2963 = vmul.f32 %v2947, 0.2
      %v2964 = vmul.f32 %v2948, 0.2
      %v2965 = vmul.f32 %v2949, 0.2
      %v2966 = vmul.f32 %v2950, 0.2
      %v2967 = vmul.f32 %v2951, 0.2
      %v2968 = vmul.f32 %v2952, 0.2
      %v2969 = vmul.f32 %v2953, 0.2
      %v2970 = vsel %vm2954, %v2946, %v2962
      %v2971 = vsel %vm2955, %v2947, %v2963
      %v2972 = vsel %vm2956, %v2948, %v2964
      %v2973 = vsel %vm2957, %v2949, %v2965
      %v2974 = vsel %vm2958, %v2950, %v2966
      %v2975 = vsel %vm2959, %v2951, %v2967
      %v2976 = vsel %vm2960, %v2952, %v2968
      %v2977 = vsel %vm2961, %v2953, %v2969
      %2978 = vst [vmem:[%s272] sm:$0xff] %v2970
      %2979 = vst [vmem:[%s272 + $0x8] sm:$0xff] %v2971
      %2980 = vst [vmem:[%s272 + $0x10] sm:$0xff] %v2972
      %2981 = vst [vmem:[%s272 + $0x18] sm:$0xff] %v2973
      %2982 = vst [vmem:[%s272 + $0x20] sm:$0xff] %v2974
      %2983 = vst [vmem:[%s272 + $0x28] sm:$0xff] %v2975
      %2984 = vst [vmem:[%s272 + $0x30] sm:$0xff] %v2976
      %2985 = vst [vmem:[%s272 + $0x38] sm:$0xff] %v2977
      %s2986 = smul.u32 8, %s20
      %p2987 = scmp.lt.s32.totalorder %s19, 1
      %s2988 = scalar_select %p2987, %s19, 1
      %p2989 = scmp.lt.s32.totalorder %s2986, 7
      %s2990 = scalar_select %p2989, %s2986, 7
      %s2991 = smul.addr %s2988, 8
      %s2992 = sadd.s32 %s2990, %s2991
      %s2993 = smul.addr %s2992, 8
      %s2994 = scalar_lea.vmem %s4, %s2993
      // Predicated region
      $region37: #{down_pallas.1} parent=35 // pred_check
        %p2995 = pneg %p145
      $region38: #{down_pallas.1} parent=35 // pred_check_branch
        %2997 = sbr.rel (%p2995) target = $region40
      $region39: #{down_pallas.1} parent=35 // pred_region
        %s2998 = smul.u32 8, %s20
      $region40: #{down_pallas.1} parent=35 // pred_fallthru
        _
    $region36: #{down_pallas.1} parent=5 // pred_fallthru
      _
    %p2999 = scmp.le.s32.totalorder 2, %s10
    // Predicated region
    $region41: #{down_pallas.1} parent=5 // pred_check
      %p3000 = pneg %p2999
    $region42: #{down_pallas.1} parent=5 // pred_check_branch
      %3002 = sbr.rel (%p3000) target = $region44
    $region43: #{down_pallas.1} parent=5 // pred_region
      %s3003 = ssub.s32 %s10, 2
      // Predicated region
      $region45: #{down_pallas.1} parent=43 // pred_check
        %p3004 = pneg %p151
      $region46: #{down_pallas.1} parent=43 // pred_check_branch
        %3006 = sbr.rel (%p3004) target = $region48
      $region47: #{down_pallas.1} parent=43 // pred_region
        %s3007 = smul.u32 8, %s22
        %p3008 = scmp.lt.s32.totalorder %s21, 1
        %s3009 = scalar_select %p3008, %s21, 1
        %p3010 = scmp.lt.s32.totalorder %s3007, 7
        %s3011 = scalar_select %p3010, %s3007, 7
        %s3012 = smul.addr %s3009, 8
        %s3013 = sadd.s32 %s3011, %s3012
        %s3014 = smul.addr %s3013, 8
        %s3015 = scalar_lea.vmem %s4, %s3014
      $region48: #{down_pallas.1} parent=43 // pred_fallthru
        _
    $region44: #{down_pallas.1} parent=5 // pred_fallthru
      _
  $region6: #{down_pallas.1} parent=0 // loop_footer
    %s14 = sadd.s32 1, %s10
  $region7: #{down_pallas.1} parent=0 // loop_footer_branch
    %9 = sbr.rel target = $region3
  $region8: #{down_pallas.1} parent=0 // loop_exit
    _

</llo_original>
